<compile_context>
chip_gen: v5e
topology: v5e:2x2
jax: 0.10.0
libtpu: 0.0.40
codegen_flags: <defaults>
</compile_context>

<pallas_src>
import math

import jax
import jax.numpy as jnp
from jax.experimental import pallas as pl
from jax.experimental.pallas import tpu as pltpu


def _cdiv(a, b):
    return -(-a // b)


def _num_tensorcores() -> int:
    """Best-effort TensorCores-per-chip (v7x has 2; v5e/v6e have 1)."""
    try:
        dev = jax.devices()[0]
        kind = (getattr(dev, "device_kind", "") or "").lower()
        if "v7" in kind:
            return 2
        nc = getattr(dev, "num_cores", None)
        if isinstance(nc, int) and nc >= 1:
            return nc
    except Exception:
        pass
    return 1


def _pick_pack(dim_in, hidden, dim_out, max_weight_bytes=4 << 20):
    """Node rows folded per packed row so loads AND stores are 128-lane dense."""
    if dim_out <= 0 or dim_out >= 128 or 128 % dim_out != 0:
        return 1
    p_out = 128 // dim_out
    cands = [p_out]
    if 0 < dim_in < 128 and 128 % dim_in == 0:
        p_in = 128 // dim_in
        cands.insert(0, (p_out * p_in) // math.gcd(p_out, p_in))  # lcm: both dense
    for p in cands:
        kron_bytes = p * p * (dim_in * hidden + hidden * dim_out) * 4
        if kron_bytes <= max_weight_bytes:
            return p
    return 1


def projector_kernel(x_ref, w1_ref, b1_ref, w2_ref, b2_ref, o_ref):
    # x_ref : (tm, pack*dim_in)            streamed tile of packed node rows
    # w1_ref: (pack*dim_in, pack*hidden)   block-diagonal kron(I_pack, W1), x's dtype
    # b1_ref: (1, pack*hidden)             tiled bias, fp32
    # w2_ref: (pack*hidden, pack*dim_out)  block-diagonal kron(I_pack, W2), x's dtype
    # b2_ref: (1, pack*dim_out)            tiled bias, fp32
    # o_ref : (tm, pack*dim_out)
    h = jnp.dot(x_ref[...], w1_ref[...], preferred_element_type=jnp.float32)
    h = jnp.maximum(h + b1_ref[...], 0.0)                      # bias + ReLU in fp32
    # Keep the 2nd matmul on the same MXU dtype path as the weights (no-op for fp32).
    out = jnp.dot(h.astype(w2_ref.dtype), w2_ref[...],
                  preferred_element_type=jnp.float32) + b2_ref[...]
    # Dropout with p=0.0 (inference / eval mode) is the identity.
    # TODO(synk): training-mode dropout (p>0) would need pltpu.prng_* masking here.
    o_ref[...] = out.astype(o_ref.dtype)


def projector_block(x, w1, b1, w2, b2, *, tm=4096, stream_dtype=None, out_dtype=None):
    """ProjectorBlock forward: relu(x @ w1 + b1) @ w2 + b2 for x of shape [N, dim_in].

    tm           row tile measured in *packed* rows (1 packed row = `pack` node rows).
    stream_dtype HBM-streaming / MXU dtype for x and the weights. None keeps x.dtype
                 (exact parity, no extra cast pass); jnp.bfloat16 halves streamed bytes.
    out_dtype    output dtype. None keeps x.dtype; bf16 cuts write bytes (the single
                 biggest HBM lever for this bandwidth-bound kernel).
    """
    n, dim_in = x.shape
    hidden = w1.shape[1]
    dim_out = w2.shape[1]
    compute_dtype = jnp.dtype(stream_dtype) if stream_dtype is not None else x.dtype
    out_dtype = jnp.dtype(out_dtype) if out_dtype is not None else x.dtype

    # ---- lane-dense packing factor ------------------------------------------
    pack = _pick_pack(dim_in, hidden, dim_out)

    # ---- block-diagonal (kron) weights so packing is "just a matmul" ---------
    # TODO(synk): in a real model hoist/cache this prep (per-parameter, not per-call).
    if pack > 1:
        eye = jnp.eye(pack, dtype=jnp.float32)
        w1_k = jnp.kron(eye, w1.astype(jnp.float32)).astype(compute_dtype)
        w2_k = jnp.kron(eye, w2.astype(jnp.float32)).astype(compute_dtype)
        b1_k = jnp.tile(b1.astype(jnp.float32), pack).reshape(1, pack * hidden)
        b2_k = jnp.tile(b2.astype(jnp.float32), pack).reshape(1, pack * dim_out)
    else:
        w1_k = w1.astype(compute_dtype)
        w2_k = w2.astype(compute_dtype)
        b1_k = b1.astype(jnp.float32).reshape(1, hidden)
        b2_k = b2.astype(jnp.float32).reshape(1, dim_out)

    # ---- pad N only to a multiple of `pack`; ragged grid handles the rest ----
    n_pad = _cdiv(n, pack) * pack
    if n_pad != n:
        x = jnp.pad(x, ((0, n_pad - n), (0, 0)))
    if stream_dtype is not None and x.dtype != compute_dtype:
        # Opt-in narrow streaming only (avoids an extra HBM pass on fp32 inputs).
        x = x.astype(compute_dtype)
    n_rows_p = n_pad // pack
    x_packed = x.reshape(n_rows_p, pack * dim_in)

    sbytes = jnp.dtype(compute_dtype).itemsize
    obytes = jnp.dtype(out_dtype).itemsize

    # ---- tile-size heuristic: VMEM budget + TensorCore balance ---------------
    def per_step_vmem(t):
        return (2 * t * pack * dim_in * sbytes      # x tile (double-buffered)
                + 2 * t * pack * dim_out * obytes   # out tile (double-buffered)
                + 2 * t * pack * hidden * 4)        # fp32 intermediates headroom

    VMEM_BUDGET = 36 << 20                          # safe on v7x's 64 MiB per TC
    while tm > 512 and per_step_vmem(tm) > VMEM_BUDGET:
        tm //= 2
    ncores = _num_tensorcores()
    if ncores > 1:
        # >= ncores grid steps so ("parallel",) can shard across v7x TensorCores.
        rows_per_core = _cdiv(n_rows_p, ncores)
        tm = min(tm, max(32, _cdiv(rows_per_core, 32) * 32))
    if n_rows_p <= tm:
        tm = n_rows_p                   # full-extent block: one step, always legal
    else:
        tm = max(32, (tm // 32) * 32)   # multiple of 32 (covers bf16 sublane packing)
    grid = (pl.cdiv(n_rows_p, tm),)

    weight_bytes = ((int(w1_k.size) + int(w2_k.size)) * sbytes
                    + (int(b1_k.size) + int(b2_k.size)) * 4)
    vmem_limit = int(per_step_vmem(tm) + 2 * weight_bytes + (2 << 20))
    vmem_limit = min(max(vmem_limit, 32 << 20), 56 << 20)

    # Useful (non-kron-inflated) work, so XLA's scheduler isn't biased.
    cost = pl.CostEstimate(
        flops=int(2 * n * (dim_in * hidden + hidden * dim_out)),
        transcendentals=0,
        bytes_accessed=int(n * dim_in * sbytes + n * dim_out * obytes + weight_bytes),
    )

    def run(single_buffer_weights):
        wmode = {"pipeline_mode": pl.Buffered(1)} if single_buffer_weights else {}
        return pl.pallas_call(
            projector_kernel,
            out_shape=jax.ShapeDtypeStruct((n_rows_p, pack * dim_out), out_dtype),
            grid_spec=pltpu.PrefetchScalarGridSpec(
                num_scalar_prefetch=0,
                grid=grid,
                in_specs=[
                    pl.BlockSpec((tm, pack * dim_in), lambda i: (i, 0)),
                    # Grid-invariant operands (same block every step; DMA'd once).
                    pl.BlockSpec((pack * dim_in, pack * hidden), lambda i: (0, 0), **wmode),
                    pl.BlockSpec((1, pack * hidden), lambda i: (0, 0), **wmode),
                    pl.BlockSpec((pack * hidden, pack * dim_out), lambda i: (0, 0), **wmode),
                    pl.BlockSpec((1, pack * dim_out), lambda i: (0, 0), **wmode),
                ],
                out_specs=pl.BlockSpec((tm, pack * dim_out), lambda i: (i, 0)),
            ),
            compiler_params=pltpu.CompilerParams(
                dimension_semantics=("parallel",),
                vmem_limit_bytes=vmem_limit,
            ),
            cost_estimate=cost,
        )(x_packed, w1_k, b1_k, w2_k, b2_k)

    try:
        out_packed = run(True)
    except Exception:
        # Fallback if pl.Buffered(1) on invariant operands is rejected by the
        # installed jax/Mosaic version; default double-buffering is also correct.
        out_packed = run(False)

    # Unfold packed rows and drop the pack-padding rows.
    # TODO(synk): in a fused pipeline keep the packed (n_rows_p, pack*dim_out) layout
    # into the consumer; this minor-dim-changing reshape costs an extra relayout pass.
    return out_packed.reshape(n_pad, dim_out)[:n]


if __name__ == "__main__":
    # graph.x is [num_nodes, dim_in]; small dims consistent with the module.
    # N deliberately not a multiple of pack/tile to exercise padding + ragged grid.
    N, DIM_IN, HIDDEN, DIM_OUT = 5000, 8, 32, 16

    key = jax.random.PRNGKey(0)
    kx, kw1, kb1, kw2, kb2 = jax.random.split(key, 5)

    x = jax.random.normal(kx, (N, DIM_IN), dtype=jnp.float32)
    w1 = jax.random.normal(kw1, (DIM_IN, HIDDEN), dtype=jnp.float32) * 0.1
    b1 = jax.random.normal(kb1, (HIDDEN,), dtype=jnp.float32) * 0.1
    w2 = jax.random.normal(kw2, (HIDDEN, DIM_OUT), dtype=jnp.float32) * 0.1
    b2 = jax.random.normal(kb2, (DIM_OUT,), dtype=jnp.float32) * 0.1

    ref = jnp.maximum(x @ w1 + b1, 0.0) @ w2 + b2

    # Default path: x.dtype (fp32) streaming, fp32 accumulation, fp32 output.
    out = jax.block_until_ready(projector_block(x, w1, b1, w2, b2))
    assert out.shape == (N, DIM_OUT) and out.dtype == x.dtype
    # Tolerance covers MXU default-precision pass/reduction-order differences.
    assert jnp.allclose(out, ref, atol=2e-2, rtol=2e-2), \
        float(jnp.max(jnp.abs(out - ref)))

    # Opt-in bandwidth-optimized path: bf16 streaming + bf16 output.
    out_bf16 = jax.block_until_ready(
        projector_block(x, w1, b1, w2, b2,
                        stream_dtype=jnp.bfloat16, out_dtype=jnp.bfloat16))
    assert out_bf16.shape == (N, DIM_OUT) and out_bf16.dtype == jnp.bfloat16
    err = jnp.max(jnp.abs(out_bf16.astype(jnp.float32) - ref))
    assert jnp.allclose(out_bf16.astype(jnp.float32), ref, atol=6e-2, rtol=6e-2), float(err)

    print("KERNEL_OK")
</pallas_src>

<mosaic_0001>
module attributes {stable_mosaic.version = 11 : i64} {
  func.func @projector_kernel(%arg0: i32, %arg1: memref<313x128xf32, #tpu.memory_space<vmem>>, %arg2: memref<128x512xf32, #tpu.memory_space<vmem>>, %arg3: memref<1x512xf32, #tpu.memory_space<vmem>>, %arg4: memref<512x256xf32, #tpu.memory_space<vmem>>, %arg5: memref<1x256xf32, #tpu.memory_space<vmem>>, %arg6: memref<313x256xf32, #tpu.memory_space<vmem>>) attributes {dimension_semantics = [#tpu.dimension_semantics<parallel>], iteration_bounds = array<i64: 1>, scalar_prefetch = 0 : i64, scratch_operands = 0 : i64, tpu.core_type = #tpu.core_type<tc>, window_params = [{transform_indices = @transform_0, window_bounds = array<i64: 313, 128>}, {pipeline_mode = #tpu.pipeline_mode<synchronous>, transform_indices = @transform_1, window_bounds = array<i64: 128, 512>}, {pipeline_mode = #tpu.pipeline_mode<synchronous>, transform_indices = @transform_2, window_bounds = array<i64: 1, 512>}, {pipeline_mode = #tpu.pipeline_mode<synchronous>, transform_indices = @transform_3, window_bounds = array<i64: 512, 256>}, {pipeline_mode = #tpu.pipeline_mode<synchronous>, transform_indices = @transform_4, window_bounds = array<i64: 1, 256>}, {transform_indices = @transform_5, window_bounds = array<i64: 313, 256>}]} {
    %c0 = arith.constant 0 : index
    %c0_0 = arith.constant 0 : index
    %0 = vector.load %arg1[%c0, %c0_0] : memref<313x128xf32, #tpu.memory_space<vmem>>, vector<313x128xf32>
    %c0_1 = arith.constant 0 : index
    %c0_2 = arith.constant 0 : index
    %1 = vector.load %arg2[%c0_1, %c0_2] : memref<128x512xf32, #tpu.memory_space<vmem>>, vector<128x512xf32>
    %cst = arith.constant dense<0.000000e+00> : vector<313x512xf32>
    %2 = tpu.matmul %0, %1, %cst {dimension_numbers = #tpu.dot_dimension_numbers<[1], [0], [0], [1], [0, 0, 1, 1], [], []>} : vector<313x128xf32>, vector<128x512xf32>, vector<313x512xf32> -> vector<313x512xf32>
    %c0_3 = arith.constant 0 : index
    %c0_4 = arith.constant 0 : index
    %3 = vector.load %arg3[%c0_3, %c0_4] : memref<1x512xf32, #tpu.memory_space<vmem>>, vector<1x512xf32>
    %4 = vector.broadcast %3 : vector<1x512xf32> to vector<313x512xf32>
    %5 = arith.addf %2, %4 : vector<313x512xf32>
    %cst_5 = arith.constant 0.000000e+00 : f32
    %6 = vector.broadcast %cst_5 : f32 to vector<313x512xf32>
    %7 = arith.maximumf %5, %6 : vector<313x512xf32>
    %c0_6 = arith.constant 0 : index
    %c0_7 = arith.constant 0 : index
    %8 = vector.load %arg4[%c0_6, %c0_7] : memref<512x256xf32, #tpu.memory_space<vmem>>, vector<512x256xf32>
    %cst_8 = arith.constant dense<0.000000e+00> : vector<313x256xf32>
    %9 = tpu.matmul %7, %8, %cst_8 {dimension_numbers = #tpu.dot_dimension_numbers<[1], [0], [0], [1], [0, 0, 1, 1], [], []>} : vector<313x512xf32>, vector<512x256xf32>, vector<313x256xf32> -> vector<313x256xf32>
    %c0_9 = arith.constant 0 : index
    %c0_10 = arith.constant 0 : index
    %10 = vector.load %arg5[%c0_9, %c0_10] : memref<1x256xf32, #tpu.memory_space<vmem>>, vector<1x256xf32>
    %11 = vector.broadcast %10 : vector<1x256xf32> to vector<313x256xf32>
    %12 = arith.addf %9, %11 : vector<313x256xf32>
    %c0_11 = arith.constant 0 : index
    %c0_12 = arith.constant 0 : index
    %13 = vector.load %arg6[%c0_11, %c0_12] : memref<313x256xf32, #tpu.memory_space<vmem>>, vector<313x256xf32>
    tpu.vector_store %arg6[%c0_11, %c0_12], %12 {strides = array<i32>} : memref<313x256xf32, #tpu.memory_space<vmem>>, vector<313x256xf32>,
    return
  }
  func.func @transform_0(%arg0: i32) -> (i32, i32) {
    %c0_i32 = arith.constant 0 : i32
    %c0_i32_0 = arith.constant 0 : i32
    return %arg0, %c0_i32 : i32, i32
  }
  func.func @transform_1(%arg0: i32) -> (i32, i32) {
    %c0_i32 = arith.constant 0 : i32
    %c0_i32_0 = arith.constant 0 : i32
    %c0_i32_1 = arith.constant 0 : i32
    return %c0_i32, %c0_i32_0 : i32, i32
  }
  func.func @transform_2(%arg0: i32) -> (i32, i32) {
    %c0_i32 = arith.constant 0 : i32
    %c0_i32_0 = arith.constant 0 : i32
    %c0_i32_1 = arith.constant 0 : i32
    return %c0_i32, %c0_i32_0 : i32, i32
  }
  func.func @transform_3(%arg0: i32) -> (i32, i32) {
    %c0_i32 = arith.constant 0 : i32
    %c0_i32_0 = arith.constant 0 : i32
    %c0_i32_1 = arith.constant 0 : i32
    return %c0_i32, %c0_i32_0 : i32, i32
  }
  func.func @transform_4(%arg0: i32) -> (i32, i32) {
    %c0_i32 = arith.constant 0 : i32
    %c0_i32_0 = arith.constant 0 : i32
    %c0_i32_1 = arith.constant 0 : i32
    return %c0_i32, %c0_i32_0 : i32, i32
  }
  func.func @transform_5(%arg0: i32) -> (i32, i32) {
    %c0_i32 = arith.constant 0 : i32
    %c0_i32_0 = arith.constant 0 : i32
    return %arg0, %c0_i32 : i32, i32
  }
}

module attributes {stable_mosaic.version = 11 : i64} {
  func.func @projector_kernel(%arg0: i32, %arg1: memref<313x128xf32, #tpu.memory_space<vmem>>, %arg2: memref<128x512xf32, #tpu.memory_space<vmem>>, %arg3: memref<1x512xf32, #tpu.memory_space<vmem>>, %arg4: memref<512x256xf32, #tpu.memory_space<vmem>>, %arg5: memref<1x256xf32, #tpu.memory_space<vmem>>, %arg6: memref<313x256xf32, #tpu.memory_space<vmem>>) attributes {dimension_semantics = [#tpu.dimension_semantics<parallel>], iteration_bounds = array<i64: 1>, scalar_prefetch = 0 : i64, scratch_operands = 0 : i64, tpu.core_type = #tpu.core_type<tc>, window_params = [{transform_indices = @transform_0, window_bounds = array<i64: 313, 128>}, {pipeline_mode = #tpu.pipeline_mode<synchronous>, transform_indices = @transform_1, window_bounds = array<i64: 128, 512>}, {pipeline_mode = #tpu.pipeline_mode<synchronous>, transform_indices = @transform_2, window_bounds = array<i64: 1, 512>}, {pipeline_mode = #tpu.pipeline_mode<synchronous>, transform_indices = @transform_3, window_bounds = array<i64: 512, 256>}, {pipeline_mode = #tpu.pipeline_mode<synchronous>, transform_indices = @transform_4, window_bounds = array<i64: 1, 256>}, {transform_indices = @transform_5, window_bounds = array<i64: 313, 256>}]} {
    %c0 = arith.constant 0 : index
    %c0_0 = arith.constant 0 : index
    %0 = vector.load %arg1[%c0, %c0_0] : memref<313x128xf32, #tpu.memory_space<vmem>>, vector<313x128xf32>
    %c0_1 = arith.constant 0 : index
    %c0_2 = arith.constant 0 : index
    %1 = vector.load %arg2[%c0_1, %c0_2] : memref<128x512xf32, #tpu.memory_space<vmem>>, vector<128x512xf32>
    %cst = arith.constant dense<0.000000e+00> : vector<313x512xf32>
    %2 = tpu.matmul %0, %1, %cst {dimension_numbers = #tpu.dot_dimension_numbers<[1], [0], [0], [1], [0, 0, 1, 1], [], []>} : vector<313x128xf32>, vector<128x512xf32>, vector<313x512xf32> -> vector<313x512xf32>
    %c0_3 = arith.constant 0 : index
    %c0_4 = arith.constant 0 : index
    %3 = vector.load %arg3[%c0_3, %c0_4] : memref<1x512xf32, #tpu.memory_space<vmem>>, vector<1x512xf32>
    %4 = vector.broadcast %3 : vector<1x512xf32> to vector<313x512xf32>
    %5 = arith.addf %2, %4 : vector<313x512xf32>
    %cst_5 = arith.constant 0.000000e+00 : f32
    %6 = vector.broadcast %cst_5 : f32 to vector<313x512xf32>
    %7 = arith.maximumf %5, %6 : vector<313x512xf32>
    %c0_6 = arith.constant 0 : index
    %c0_7 = arith.constant 0 : index
    %8 = vector.load %arg4[%c0_6, %c0_7] : memref<512x256xf32, #tpu.memory_space<vmem>>, vector<512x256xf32>
    %cst_8 = arith.constant dense<0.000000e+00> : vector<313x256xf32>
    %9 = tpu.matmul %7, %8, %cst_8 {dimension_numbers = #tpu.dot_dimension_numbers<[1], [0], [0], [1], [0, 0, 1, 1], [], []>} : vector<313x512xf32>, vector<512x256xf32>, vector<313x256xf32> -> vector<313x256xf32>
    %c0_9 = arith.constant 0 : index
    %c0_10 = arith.constant 0 : index
    %10 = vector.load %arg5[%c0_9, %c0_10] : memref<1x256xf32, #tpu.memory_space<vmem>>, vector<1x256xf32>
    %11 = vector.broadcast %10 : vector<1x256xf32> to vector<313x256xf32>
    %12 = arith.addf %9, %11 : vector<313x256xf32>
    %c0_11 = arith.constant 0 : index
    %c0_12 = arith.constant 0 : index
    %13 = vector.load %arg6[%c0_11, %c0_12] : memref<313x256xf32, #tpu.memory_space<vmem>>, vector<313x256xf32>
    tpu.vector_store %arg6[%c0_11, %c0_12], %12 {strides = array<i32>} : memref<313x256xf32, #tpu.memory_space<vmem>>, vector<313x256xf32>,
    return
  }
  func.func @transform_0(%arg0: i32) -> (i32, i32) {
    %c0_i32 = arith.constant 0 : i32
    %c0_i32_0 = arith.constant 0 : i32
    return %arg0, %c0_i32 : i32, i32
  }
  func.func @transform_1(%arg0: i32) -> (i32, i32) {
    %c0_i32 = arith.constant 0 : i32
    %c0_i32_0 = arith.constant 0 : i32
    %c0_i32_1 = arith.constant 0 : i32
    return %c0_i32, %c0_i32_0 : i32, i32
  }
  func.func @transform_2(%arg0: i32) -> (i32, i32) {
    %c0_i32 = arith.constant 0 : i32
    %c0_i32_0 = arith.constant 0 : i32
    %c0_i32_1 = arith.constant 0 : i32
    return %c0_i32, %c0_i32_0 : i32, i32
  }
  func.func @transform_3(%arg0: i32) -> (i32, i32) {
    %c0_i32 = arith.constant 0 : i32
    %c0_i32_0 = arith.constant 0 : i32
    %c0_i32_1 = arith.constant 0 : i32
    return %c0_i32, %c0_i32_0 : i32, i32
  }
  func.func @transform_4(%arg0: i32) -> (i32, i32) {
    %c0_i32 = arith.constant 0 : i32
    %c0_i32_0 = arith.constant 0 : i32
    %c0_i32_1 = arith.constant 0 : i32
    return %c0_i32, %c0_i32_0 : i32, i32
  }
  func.func @transform_5(%arg0: i32) -> (i32, i32) {
    %c0_i32 = arith.constant 0 : i32
    %c0_i32_0 = arith.constant 0 : i32
    return %arg0, %c0_i32 : i32, i32
  }
}

</mosaic_0001>

<llo_original>
// kernel: tpu_custom_call.1
$region0: #{tpu_custom_call.1}
  #allocation0 [shape = 'u32[]', space=smem, size = 0x4, offset = 0x4, fixed_abs, tag = 'smem constant byte address 0x4 - core index']
  #allocation1 [shape = 'u32[72,128]{1,0:T(1,128)}', space=vmem, size = 0x9000, scoped, tag = 'internal scratch']
  %s0 = inlined_call_operand.hbm [shape: f32[313,128], index: 0, kind: input, shape index: {}]
  %s1 = inlined_call_operand.hbm [shape: f32[128,512], index: 1, kind: input, shape index: {}]
  %s2 = inlined_call_operand.hbm [shape: f32[1,512], index: 2, kind: input, shape index: {}]
  %s3 = inlined_call_operand.hbm [shape: f32[512,256], index: 3, kind: input, shape index: {}]
  %s4 = inlined_call_operand.vmem [shape: f32[1,256], index: 4, kind: input, shape index: {}]
  %s5 = inlined_call_operand.hbm [shape: f32[313,256], index: 5, kind: output, shape index: {}]
  %s6 = sld [smem:[#allocation0]]
  $region46: #{tpu_custom_call.1} parent=0
    _
  %s8 = ssub.s32 1, %s6
  %s9 = scalar_select 0, %s8, %s6
  $region1: #{tpu_custom_call.1} parent=0
    #allocation2 [shape = 'u8[163840]{0}', space=vmem, size = 0x28000, scoped, tag = 'input window, operand 0, single buffered']
    #allocation3 [shape = 's32[1]{0}', space=sflag, size = 0x4, scoped, tag = 'scoped memory for tpu_custom_call.1']
    #allocation4 [shape = 's32[1]{0}', space=sflag, size = 0x4, scoped, tag = 'scoped memory for tpu_custom_call.1']
    #allocation5 [shape = 'u8[262144]{0}', space=vmem, size = 0x40000, scoped, tag = 'input window, operand 1, single buffered']
    #allocation6 [shape = 's32[1]{0}', space=sflag, size = 0x4, scoped, tag = 'scoped memory for tpu_custom_call.1']
    #allocation7 [shape = 'u8[2048]{0}', space=vmem, size = 0x800, scoped, tag = 'input window, operand 2, single buffered']
    #allocation8 [shape = 'u8[524288]{0}', space=vmem, size = 0x80000, scoped, tag = 'input window, operand 3, single buffered']
    #allocation9 [shape = 's32[1]{0}', space=sflag, size = 0x4, scoped, tag = 'scoped memory for tpu_custom_call.1']
    #allocation10 [shape = 'u8[327680]{0}', space=vmem, size = 0x50000, scoped, tag = 'output window, operand 0, single buffered']
    %10 = vsyncpa [#allocation3], 0
    %11 = vsyncpa [#allocation6], 0
    %12 = vsyncpa [#allocation9], 0
    %13 = vsyncpa [#allocation4], 0
    // Predicated region
    $region2: #{tpu_custom_call.1} parent=1 // pred_check
      _
    $region3: #{tpu_custom_call.1} parent=1 // pred_check_branch
      %15 = sbr.rel (0) target = $region5
    $region4: #{tpu_custom_call.1} parent=1 // pred_region
      %17 = vsyncadd [#allocation3], 0
      %s18 = sshll.u32 %s0, 4
      %s19 = int_to_ptr.hbm [resolvable:$true] %s18
      %s20 = sshll.u32 [#allocation2], 4
      %s21 = int_to_ptr.vmem [resolvable:$true] %s20
      %26 = dma.hbm_to_vmem [thread:$0]  %s19, 5120, %s21, [#allocation3], 128, 128, 8
    $region5: #{tpu_custom_call.1} parent=1 // pred_fallthru
      _
    // Predicated region
    $region6: #{tpu_custom_call.1} parent=1 // pred_check
      _
    $region7: #{tpu_custom_call.1} parent=1 // pred_check_branch
      %28 = sbr.rel (0) target = $region9
    $region8: #{tpu_custom_call.1} parent=1 // pred_region
      %30 = vsyncadd [#allocation6], 0
      %s31 = sshll.u32 %s1, 4
      %s32 = int_to_ptr.hbm [resolvable:$true] %s31
      %s33 = sshll.u32 [#allocation5], 4
      %s34 = int_to_ptr.vmem [resolvable:$true] %s33
      %39 = dma.hbm_to_vmem [thread:$0]  %s32, 8192, %s34, [#allocation6], 512, 512, 32
    $region9: #{tpu_custom_call.1} parent=1 // pred_fallthru
      _
    // Predicated region
    $region10: #{tpu_custom_call.1} parent=1 // pred_check
      _
    $region11: #{tpu_custom_call.1} parent=1 // pred_check_branch
      %41 = sbr.rel (0) target = $region13
    $region12: #{tpu_custom_call.1} parent=1 // pred_region
      %43 = vsyncadd [#allocation6], 0
      %s45 = sshll.u32 %s2, 4
      %s46 = int_to_ptr.hbm [resolvable:$true] %s45
      %s47 = sshll.u32 [#allocation7], 4
      %s48 = int_to_ptr.vmem [resolvable:$true] %s47
      %50 = dma.hbm_to_vmem [thread:$0]  %s46, 64, %s48, [#allocation6]
    $region13: #{tpu_custom_call.1} parent=1 // pred_fallthru
      _
    // Predicated region
    $region14: #{tpu_custom_call.1} parent=1 // pred_check
      _
    $region15: #{tpu_custom_call.1} parent=1 // pred_check_branch
      %52 = sbr.rel (0) target = $region17
    $region16: #{tpu_custom_call.1} parent=1 // pred_region
      %54 = vsyncadd [#allocation9], 0
      %s55 = sshll.u32 %s3, 4
      %s56 = int_to_ptr.hbm [resolvable:$true] %s55
      %s57 = sshll.u32 [#allocation8], 4
      %s58 = int_to_ptr.vmem [resolvable:$true] %s57
      %63 = dma.hbm_to_vmem [thread:$0]  %s56, 16384, %s58, [#allocation9], 256, 256, 16
    $region17: #{tpu_custom_call.1} parent=1 // pred_fallthru
      _
    // Predicated region
    $region18: #{tpu_custom_call.1} parent=1 // pred_check
      _
    $region19: #{tpu_custom_call.1} parent=1 // pred_check_branch
      %65 = sbr.rel (0) target = $region21
    $region20: #{tpu_custom_call.1} parent=1 // pred_region
      _
    $region21: #{tpu_custom_call.1} parent=1 // pred_fallthru
      _
    // Predicated region
    $region22: #{tpu_custom_call.1} parent=1 // pred_check
      _
    $region23: #{tpu_custom_call.1} parent=1 // pred_check_branch
      %67 = sbr.rel (0) target = $region25
    $region24: #{tpu_custom_call.1} parent=1 // pred_region
      %69 = dma.done [#allocation3], 5120
    $region25: #{tpu_custom_call.1} parent=1 // pred_fallthru
      _
    // Predicated region
    $region26: #{tpu_custom_call.1} parent=1 // pred_check
      _
    $region27: #{tpu_custom_call.1} parent=1 // pred_check_branch
      %71 = sbr.rel (0) target = $region29
    $region28: #{tpu_custom_call.1} parent=1 // pred_region
      %73 = dma.done [#allocation6], 8192
    $region29: #{tpu_custom_call.1} parent=1 // pred_fallthru
      _
    // Predicated region
    $region30: #{tpu_custom_call.1} parent=1 // pred_check
      _
    $region31: #{tpu_custom_call.1} parent=1 // pred_check_branch
      %75 = sbr.rel (0) target = $region33
    $region32: #{tpu_custom_call.1} parent=1 // pred_region
      %77 = dma.done [#allocation6], 64
    $region33: #{tpu_custom_call.1} parent=1 // pred_fallthru
      _
    // Predicated region
    $region34: #{tpu_custom_call.1} parent=1 // pred_check
      _
    $region35: #{tpu_custom_call.1} parent=1 // pred_check_branch
      %79 = sbr.rel (0) target = $region37
    $region36: #{tpu_custom_call.1} parent=1 // pred_region
      %81 = dma.done [#allocation9], 16384
    $region37: #{tpu_custom_call.1} parent=1 // pred_fallthru
      _
    %v82 = vld [vmem:[#allocation2] sm:$0xff]
    %v83 = vld [vmem:[#allocation2 + $0x8] sm:$0xff]
    %v84 = vld [vmem:[#allocation2 + $0x10] sm:$0xff]
    %v85 = vld [vmem:[#allocation2 + $0x18] sm:$0xff]
    %v86 = vld [vmem:[#allocation2 + $0x20] sm:$0xff]
    %v87 = vld [vmem:[#allocation2 + $0x28] sm:$0xff]
    %v88 = vld [vmem:[#allocation2 + $0x30] sm:$0xff]
    %v89 = vld [vmem:[#allocation2 + $0x38] sm:$0xff]
    %v90 = vld [vmem:[#allocation2 + $0x40] sm:$0xff]
    %v91 = vld [vmem:[#allocation2 + $0x48] sm:$0xff]
    %v92 = vld [vmem:[#allocation2 + $0x50] sm:$0xff]
    %v93 = vld [vmem:[#allocation2 + $0x58] sm:$0xff]
    %v94 = vld [vmem:[#allocation2 + $0x60] sm:$0xff]
    %v95 = vld [vmem:[#allocation2 + $0x68] sm:$0xff]
    %v96 = vld [vmem:[#allocation2 + $0x70] sm:$0xff]
    %v97 = vld [vmem:[#allocation2 + $0x78] sm:$0xff]
    %v98 = vld [vmem:[#allocation2 + $0x80] sm:$0xff]
    %v99 = vld [vmem:[#allocation2 + $0x88] sm:$0xff]
    %v100 = vld [vmem:[#allocation2 + $0x90] sm:$0xff]
    %v101 = vld [vmem:[#allocation2 + $0x98] sm:$0xff]
    %v102 = vld [vmem:[#allocation2 + $0xa0] sm:$0xff]
    %v103 = vld [vmem:[#allocation2 + $0xa8] sm:$0xff]
    %v104 = vld [vmem:[#allocation2 + $0xb0] sm:$0xff]
    %v105 = vld [vmem:[#allocation2 + $0xb8] sm:$0xff]
    %v106 = vld [vmem:[#allocation2 + $0xc0] sm:$0xff]
    %v107 = vld [vmem:[#allocation2 + $0xc8] sm:$0xff]
    %v108 = vld [vmem:[#allocation2 + $0xd0] sm:$0xff]
    %v109 = vld [vmem:[#allocation2 + $0xd8] sm:$0xff]
    %v110 = vld [vmem:[#allocation2 + $0xe0] sm:$0xff]
    %v111 = vld [vmem:[#allocation2 + $0xe8] sm:$0xff]
    %v112 = vld [vmem:[#allocation2 + $0xf0] sm:$0xff]
    %v113 = vld [vmem:[#allocation2 + $0xf8] sm:$0xff]
    %v114 = vld [vmem:[#allocation2 + $0x100] sm:$0xff]
    %v115 = vld [vmem:[#allocation2 + $0x108] sm:$0xff]
    %v116 = vld [vmem:[#allocation2 + $0x110] sm:$0xff]
    %v117 = vld [vmem:[#allocation2 + $0x118] sm:$0xff]
    %v118 = vld [vmem:[#allocation2 + $0x120] sm:$0xff]
    %v119 = vld [vmem:[#allocation2 + $0x128] sm:$0xff]
    %v120 = vld [vmem:[#allocation2 + $0x130] sm:$0xff]
    %v121 = vld [vmem:[#allocation2 + $0x138] sm:$0x1]
    %v122 = vld [vmem:[#allocation5] sm:$0xff]
    %v123 = vld [vmem:[#allocation5 + $0x8] sm:$0xff]
    %v124 = vld [vmem:[#allocation5 + $0x10] sm:$0xff]
    %v125 = vld [vmem:[#allocation5 + $0x18] sm:$0xff]
    %v126 = vld [vmem:[#allocation5 + $0x20] sm:$0xff]
    %v127 = vld [vmem:[#allocation5 + $0x28] sm:$0xff]
    %v128 = vld [vmem:[#allocation5 + $0x30] sm:$0xff]
    %v129 = vld [vmem:[#allocation5 + $0x38] sm:$0xff]
    %v130 = vld [vmem:[#allocation5 + $0x40] sm:$0xff]
    %v131 = vld [vmem:[#allocation5 + $0x48] sm:$0xff]
    %v132 = vld [vmem:[#allocation5 + $0x50] sm:$0xff]
    %v133 = vld [vmem:[#allocation5 + $0x58] sm:$0xff]
    %v134 = vld [vmem:[#allocation5 + $0x60] sm:$0xff]
    %v135 = vld [vmem:[#allocation5 + $0x68] sm:$0xff]
    %v136 = vld [vmem:[#allocation5 + $0x70] sm:$0xff]
    %v137 = vld [vmem:[#allocation5 + $0x78] sm:$0xff]
    %v138 = vld [vmem:[#allocation5 + $0x80] sm:$0xff]
    %v139 = vld [vmem:[#allocation5 + $0x88] sm:$0xff]
    %v140 = vld [vmem:[#allocation5 + $0x90] sm:$0xff]
    %v141 = vld [vmem:[#allocation5 + $0x98] sm:$0xff]
    %v142 = vld [vmem:[#allocation5 + $0xa0] sm:$0xff]
    %v143 = vld [vmem:[#allocation5 + $0xa8] sm:$0xff]
    %v144 = vld [vmem:[#allocation5 + $0xb0] sm:$0xff]
    %v145 = vld [vmem:[#allocation5 + $0xb8] sm:$0xff]
    %v146 = vld [vmem:[#allocation5 + $0xc0] sm:$0xff]
    %v147 = vld [vmem:[#allocation5 + $0xc8] sm:$0xff]
    %v148 = vld [vmem:[#allocation5 + $0xd0] sm:$0xff]
    %v149 = vld [vmem:[#allocation5 + $0xd8] sm:$0xff]
    %v150 = vld [vmem:[#allocation5 + $0xe0] sm:$0xff]
    %v151 = vld [vmem:[#allocation5 + $0xe8] sm:$0xff]
    %v152 = vld [vmem:[#allocation5 + $0xf0] sm:$0xff]
    %v153 = vld [vmem:[#allocation5 + $0xf8] sm:$0xff]
    %v154 = vld [vmem:[#allocation5 + $0x100] sm:$0xff]
    %v155 = vld [vmem:[#allocation5 + $0x108] sm:$0xff]
    %v156 = vld [vmem:[#allocation5 + $0x110] sm:$0xff]
    %v157 = vld [vmem:[#allocation5 + $0x118] sm:$0xff]
    %v158 = vld [vmem:[#allocation5 + $0x120] sm:$0xff]
    %v159 = vld [vmem:[#allocation5 + $0x128] sm:$0xff]
    %v160 = vld [vmem:[#allocation5 + $0x130] sm:$0xff]
    %v161 = vld [vmem:[#allocation5 + $0x138] sm:$0xff]
    %v162 = vld [vmem:[#allocation5 + $0x140] sm:$0xff]
    %v163 = vld [vmem:[#allocation5 + $0x148] sm:$0xff]
    %v164 = vld [vmem:[#allocation5 + $0x150] sm:$0xff]
    %v165 = vld [vmem:[#allocation5 + $0x158] sm:$0xff]
    %v166 = vld [vmem:[#allocation5 + $0x160] sm:$0xff]
    %v167 = vld [vmem:[#allocation5 + $0x168] sm:$0xff]
    %v168 = vld [vmem:[#allocation5 + $0x170] sm:$0xff]
    %v169 = vld [vmem:[#allocation5 + $0x178] sm:$0xff]
    %v170 = vld [vmem:[#allocation5 + $0x180] sm:$0xff]
    %v171 = vld [vmem:[#allocation5 + $0x188] sm:$0xff]
    %v172 = vld [vmem:[#allocation5 + $0x190] sm:$0xff]
    %v173 = vld [vmem:[#allocation5 + $0x198] sm:$0xff]
    %v174 = vld [vmem:[#allocation5 + $0x1a0] sm:$0xff]
    %v175 = vld [vmem:[#allocation5 + $0x1a8] sm:$0xff]
    %v176 = vld [vmem:[#allocation5 + $0x1b0] sm:$0xff]
    %v177 = vld [vmem:[#allocation5 + $0x1b8] sm:$0xff]
    %v178 = vld [vmem:[#allocation5 + $0x1c0] sm:$0xff]
    %v179 = vld [vmem:[#allocation5 + $0x1c8] sm:$0xff]
    %v180 = vld [vmem:[#allocation5 + $0x1d0] sm:$0xff]
    %v181 = vld [vmem:[#allocation5 + $0x1d8] sm:$0xff]
    %v182 = vld [vmem:[#allocation5 + $0x1e0] sm:$0xff]
    %v183 = vld [vmem:[#allocation5 + $0x1e8] sm:$0xff]
    %v184 = vld [vmem:[#allocation5 + $0x1f0] sm:$0xff]
    %v185 = vld [vmem:[#allocation5 + $0x1f8] sm:$0xff]
    %v186 = vld [vmem:[#allocation7] sm:$0xf]
    %v188 = vperm.slane %v186, 0
    %v189 = vperm.slane %v186, 1
    %v190 = vperm.slane %v186, 2
    %v191 = vperm.slane %v186, 3
    %196 = vmatpush.msra.mxu0 %v182
    %197 = vmatpush.msra.mxu0 %v178
    %198 = vmatpush.msra.mxu0 %v174
    %199 = vmatpush.msra.mxu0 %v170
    %200 = vmatpush.msra.mxu0 %v166
    %201 = vmatpush.msra.mxu0 %v162
    %202 = vmatpush.msra.mxu0 %v158
    %203 = vmatpush.msra.mxu0 %v154
    %204 = vmatpush.msra.mxu0 %v150
    %205 = vmatpush.msra.mxu0 %v146
    %206 = vmatpush.msra.mxu0 %v142
    %207 = vmatpush.msra.mxu0 %v138
    %208 = vmatpush.msra.mxu0 %v134
    %209 = vmatpush.msra.mxu0 %v130
    %210 = vmatpush.msra.mxu0 %v126
    %211 = vmatpush.msra.mxu0 %v122
    %212 = vmatmul.f32.gmra.mxu0 %v82
    %v213 = vpop.f32.mrf.mxu0
    %v214 = vadd.f32 %v188, %v213
    %215 = vmatmul.f32.gmra.mxu0 %v83
    %v216 = vpop.f32.mrf.mxu0
    %v217 = vadd.f32 %v188, %v216
    %218 = vmatmul.f32.gmra.mxu0 %v84
    %v219 = vpop.f32.mrf.mxu0
    %v220 = vadd.f32 %v188, %v219
    %221 = vmatmul.f32.gmra.mxu0 %v85
    %v222 = vpop.f32.mrf.mxu0
    %v223 = vadd.f32 %v188, %v222
    %224 = vmatmul.f32.gmra.mxu0 %v86
    %v225 = vpop.f32.mrf.mxu0
    %v226 = vadd.f32 %v188, %v225
    %227 = vmatmul.f32.gmra.mxu0 %v87
    %v228 = vpop.f32.mrf.mxu0
    %v229 = vadd.f32 %v188, %v228
    %230 = vmatmul.f32.gmra.mxu0 %v88
    %v231 = vpop.f32.mrf.mxu0
    %v232 = vadd.f32 %v188, %v231
    %233 = vmatmul.f32.gmra.mxu0 %v89
    %v234 = vpop.f32.mrf.mxu0
    %v235 = vadd.f32 %v188, %v234
    %236 = vmatmul.f32.gmra.mxu0 %v90
    %v237 = vpop.f32.mrf.mxu0
    %v238 = vadd.f32 %v188, %v237
    %239 = vmatmul.f32.gmra.mxu0 %v91
    %v240 = vpop.f32.mrf.mxu0
    %v241 = vadd.f32 %v188, %v240
    %242 = vmatmul.f32.gmra.mxu0 %v92
    %v243 = vpop.f32.mrf.mxu0
    %v244 = vadd.f32 %v188, %v243
    %245 = vmatmul.f32.gmra.mxu0 %v93
    %v246 = vpop.f32.mrf.mxu0
    %v247 = vadd.f32 %v188, %v246
    %248 = vmatmul.f32.gmra.mxu0 %v94
    %v249 = vpop.f32.mrf.mxu0
    %v250 = vadd.f32 %v188, %v249
    %251 = vmatmul.f32.gmra.mxu0 %v95
    %v252 = vpop.f32.mrf.mxu0
    %v253 = vadd.f32 %v188, %v252
    %254 = vmatmul.f32.gmra.mxu0 %v96
    %v255 = vpop.f32.mrf.mxu0
    %v256 = vadd.f32 %v188, %v255
    %257 = vmatmul.f32.gmra.mxu0 %v97
    %v258 = vpop.f32.mrf.mxu0
    %v259 = vadd.f32 %v188, %v258
    %260 = vmatmul.f32.gmra.mxu0 %v98
    %v261 = vpop.f32.mrf.mxu0
    %v262 = vadd.f32 %v188, %v261
    %263 = vmatmul.f32.gmra.mxu0 %v99
    %v264 = vpop.f32.mrf.mxu0
    %v265 = vadd.f32 %v188, %v264
    %266 = vmatmul.f32.gmra.mxu0 %v100
    %v267 = vpop.f32.mrf.mxu0
    %v268 = vadd.f32 %v188, %v267
    %269 = vmatmul.f32.gmra.mxu0 %v101
    %v270 = vpop.f32.mrf.mxu0
    %v271 = vadd.f32 %v188, %v270
    %272 = vmatmul.f32.gmra.mxu0 %v102
    %v273 = vpop.f32.mrf.mxu0
    %v274 = vadd.f32 %v188, %v273
    %275 = vmatmul.f32.gmra.mxu0 %v103
    %v276 = vpop.f32.mrf.mxu0
    %v277 = vadd.f32 %v188, %v276
    %278 = vmatmul.f32.gmra.mxu0 %v104
    %v279 = vpop.f32.mrf.mxu0
    %v280 = vadd.f32 %v188, %v279
    %281 = vmatmul.f32.gmra.mxu0 %v105
    %v282 = vpop.f32.mrf.mxu0
    %v283 = vadd.f32 %v188, %v282
    %284 = vmatmul.f32.gmra.mxu0 %v106
    %v285 = vpop.f32.mrf.mxu0
    %v286 = vadd.f32 %v188, %v285
    %287 = vmatmul.f32.gmra.mxu0 %v107
    %v288 = vpop.f32.mrf.mxu0
    %v289 = vadd.f32 %v188, %v288
    %290 = vmatmul.f32.gmra.mxu0 %v108
    %v291 = vpop.f32.mrf.mxu0
    %v292 = vadd.f32 %v188, %v291
    %293 = vmatmul.f32.gmra.mxu0 %v109
    %v294 = vpop.f32.mrf.mxu0
    %v295 = vadd.f32 %v188, %v294
    %296 = vmatmul.f32.gmra.mxu0 %v110
    %v297 = vpop.f32.mrf.mxu0
    %v298 = vadd.f32 %v188, %v297
    %299 = vmatmul.f32.gmra.mxu0 %v111
    %v300 = vpop.f32.mrf.mxu0
    %v301 = vadd.f32 %v188, %v300
    %302 = vmatmul.f32.gmra.mxu0 %v112
    %v303 = vpop.f32.mrf.mxu0
    %v304 = vadd.f32 %v188, %v303
    %305 = vmatmul.f32.gmra.mxu0 %v113
    %v306 = vpop.f32.mrf.mxu0
    %v307 = vadd.f32 %v188, %v306
    %308 = vmatmul.f32.gmra.mxu0 %v114
    %v309 = vpop.f32.mrf.mxu0
    %v310 = vadd.f32 %v188, %v309
    %311 = vmatmul.f32.gmra.mxu0 %v115
    %v312 = vpop.f32.mrf.mxu0
    %v313 = vadd.f32 %v188, %v312
    %314 = vmatmul.f32.gmra.mxu0 %v116
    %v315 = vpop.f32.mrf.mxu0
    %v316 = vadd.f32 %v188, %v315
    %317 = vmatmul.f32.gmra.mxu0 %v117
    %v318 = vpop.f32.mrf.mxu0
    %v319 = vadd.f32 %v188, %v318
    %320 = vmatmul.f32.gmra.mxu0 %v118
    %v321 = vpop.f32.mrf.mxu0
    %v322 = vadd.f32 %v188, %v321
    %323 = vmatmul.f32.gmra.mxu0 %v119
    %v324 = vpop.f32.mrf.mxu0
    %v325 = vadd.f32 %v188, %v324
    %326 = vmatmul.f32.gmra.mxu0 %v120
    %v327 = vpop.f32.mrf.mxu0
    %v328 = vadd.f32 %v188, %v327
    %329 = vmatmul.f32.gmra.mxu0 %v121
    %v330 = vpop.f32.mrf.mxu0
    %v331 = vadd.f32 %v188, %v330
    %332 = vdwg.mxu0
    %333 = vmatpush.msra.mxu0 %v183
    %334 = vmatpush.msra.mxu0 %v179
    %335 = vmatpush.msra.mxu0 %v175
    %336 = vmatpush.msra.mxu0 %v171
    %337 = vmatpush.msra.mxu0 %v167
    %338 = vmatpush.msra.mxu0 %v163
    %339 = vmatpush.msra.mxu0 %v159
    %340 = vmatpush.msra.mxu0 %v155
    %341 = vmatpush.msra.mxu0 %v151
    %342 = vmatpush.msra.mxu0 %v147
    %343 = vmatpush.msra.mxu0 %v143
    %344 = vmatpush.msra.mxu0 %v139
    %345 = vmatpush.msra.mxu0 %v135
    %346 = vmatpush.msra.mxu0 %v131
    %347 = vmatpush.msra.mxu0 %v127
    %348 = vmatpush.msra.mxu0 %v123
    %349 = vmatmul.f32.gmra.mxu0 %v82
    %v350 = vpop.f32.mrf.mxu0
    %v351 = vadd.f32 %v189, %v350
    %352 = vmatmul.f32.gmra.mxu0 %v83
    %v353 = vpop.f32.mrf.mxu0
    %v354 = vadd.f32 %v189, %v353
    %355 = vmatmul.f32.gmra.mxu0 %v84
    %v356 = vpop.f32.mrf.mxu0
    %v357 = vadd.f32 %v189, %v356
    %358 = vmatmul.f32.gmra.mxu0 %v85
    %v359 = vpop.f32.mrf.mxu0
    %v360 = vadd.f32 %v189, %v359
    %361 = vmatmul.f32.gmra.mxu0 %v86
    %v362 = vpop.f32.mrf.mxu0
    %v363 = vadd.f32 %v189, %v362
    %364 = vmatmul.f32.gmra.mxu0 %v87
    %v365 = vpop.f32.mrf.mxu0
    %v366 = vadd.f32 %v189, %v365
    %367 = vmatmul.f32.gmra.mxu0 %v88
    %v368 = vpop.f32.mrf.mxu0
    %v369 = vadd.f32 %v189, %v368
    %370 = vmatmul.f32.gmra.mxu0 %v89
    %v371 = vpop.f32.mrf.mxu0
    %v372 = vadd.f32 %v189, %v371
    %373 = vmatmul.f32.gmra.mxu0 %v90
    %v374 = vpop.f32.mrf.mxu0
    %v375 = vadd.f32 %v189, %v374
    %376 = vmatmul.f32.gmra.mxu0 %v91
    %v377 = vpop.f32.mrf.mxu0
    %v378 = vadd.f32 %v189, %v377
    %379 = vmatmul.f32.gmra.mxu0 %v92
    %v380 = vpop.f32.mrf.mxu0
    %v381 = vadd.f32 %v189, %v380
    %382 = vmatmul.f32.gmra.mxu0 %v93
    %v383 = vpop.f32.mrf.mxu0
    %v384 = vadd.f32 %v189, %v383
    %385 = vmatmul.f32.gmra.mxu0 %v94
    %v386 = vpop.f32.mrf.mxu0
    %v387 = vadd.f32 %v189, %v386
    %388 = vmatmul.f32.gmra.mxu0 %v95
    %v389 = vpop.f32.mrf.mxu0
    %v390 = vadd.f32 %v189, %v389
    %391 = vmatmul.f32.gmra.mxu0 %v96
    %v392 = vpop.f32.mrf.mxu0
    %v393 = vadd.f32 %v189, %v392
    %394 = vmatmul.f32.gmra.mxu0 %v97
    %v395 = vpop.f32.mrf.mxu0
    %v396 = vadd.f32 %v189, %v395
    %397 = vmatmul.f32.gmra.mxu0 %v98
    %v398 = vpop.f32.mrf.mxu0
    %v399 = vadd.f32 %v189, %v398
    %400 = vmatmul.f32.gmra.mxu0 %v99
    %v401 = vpop.f32.mrf.mxu0
    %v402 = vadd.f32 %v189, %v401
    %403 = vmatmul.f32.gmra.mxu0 %v100
    %v404 = vpop.f32.mrf.mxu0
    %v405 = vadd.f32 %v189, %v404
    %406 = vmatmul.f32.gmra.mxu0 %v101
    %v407 = vpop.f32.mrf.mxu0
    %v408 = vadd.f32 %v189, %v407
    %409 = vmatmul.f32.gmra.mxu0 %v102
    %v410 = vpop.f32.mrf.mxu0
    %v411 = vadd.f32 %v189, %v410
    %412 = vmatmul.f32.gmra.mxu0 %v103
    %v413 = vpop.f32.mrf.mxu0
    %v414 = vadd.f32 %v189, %v413
    %415 = vmatmul.f32.gmra.mxu0 %v104
    %v416 = vpop.f32.mrf.mxu0
    %v417 = vadd.f32 %v189, %v416
    %418 = vmatmul.f32.gmra.mxu0 %v105
    %v419 = vpop.f32.mrf.mxu0
    %v420 = vadd.f32 %v189, %v419
    %421 = vmatmul.f32.gmra.mxu0 %v106
    %v422 = vpop.f32.mrf.mxu0
    %v423 = vadd.f32 %v189, %v422
    %424 = vmatmul.f32.gmra.mxu0 %v107
    %v425 = vpop.f32.mrf.mxu0
    %v426 = vadd.f32 %v189, %v425
    %427 = vmatmul.f32.gmra.mxu0 %v108
    %v428 = vpop.f32.mrf.mxu0
    %v429 = vadd.f32 %v189, %v428
    %430 = vmatmul.f32.gmra.mxu0 %v109
    %v431 = vpop.f32.mrf.mxu0
    %v432 = vadd.f32 %v189, %v431
    %433 = vmatmul.f32.gmra.mxu0 %v110
    %v434 = vpop.f32.mrf.mxu0
    %v435 = vadd.f32 %v189, %v434
    %436 = vmatmul.f32.gmra.mxu0 %v111
    %v437 = vpop.f32.mrf.mxu0
    %v438 = vadd.f32 %v189, %v437
    %439 = vmatmul.f32.gmra.mxu0 %v112
    %v440 = vpop.f32.mrf.mxu0
    %v441 = vadd.f32 %v189, %v440
    %442 = vmatmul.f32.gmra.mxu0 %v113
    %v443 = vpop.f32.mrf.mxu0
    %v444 = vadd.f32 %v189, %v443
    %445 = vmatmul.f32.gmra.mxu0 %v114
    %v446 = vpop.f32.mrf.mxu0
    %v447 = vadd.f32 %v189, %v446
    %448 = vmatmul.f32.gmra.mxu0 %v115
    %v449 = vpop.f32.mrf.mxu0
    %v450 = vadd.f32 %v189, %v449
    %451 = vmatmul.f32.gmra.mxu0 %v116
    %v452 = vpop.f32.mrf.mxu0
    %v453 = vadd.f32 %v189, %v452
    %454 = vmatmul.f32.gmra.mxu0 %v117
    %v455 = vpop.f32.mrf.mxu0
    %v456 = vadd.f32 %v189, %v455
    %457 = vmatmul.f32.gmra.mxu0 %v118
    %v458 = vpop.f32.mrf.mxu0
    %v459 = vadd.f32 %v189, %v458
    %460 = vmatmul.f32.gmra.mxu0 %v119
    %v461 = vpop.f32.mrf.mxu0
    %v462 = vadd.f32 %v189, %v461
    %463 = vmatmul.f32.gmra.mxu0 %v120
    %v464 = vpop.f32.mrf.mxu0
    %v465 = vadd.f32 %v189, %v464
    %466 = vmatmul.f32.gmra.mxu0 %v121
    %v467 = vpop.f32.mrf.mxu0
    %v468 = vadd.f32 %v189, %v467
    %469 = vdwg.mxu0
    %470 = vmatpush.msra.mxu0 %v184
    %471 = vmatpush.msra.mxu0 %v180
    %472 = vmatpush.msra.mxu0 %v176
    %473 = vmatpush.msra.mxu0 %v172
    %474 = vmatpush.msra.mxu0 %v168
    %475 = vmatpush.msra.mxu0 %v164
    %476 = vmatpush.msra.mxu0 %v160
    %477 = vmatpush.msra.mxu0 %v156
    %478 = vmatpush.msra.mxu0 %v152
    %479 = vmatpush.msra.mxu0 %v148
    %480 = vmatpush.msra.mxu0 %v144
    %481 = vmatpush.msra.mxu0 %v140
    %482 = vmatpush.msra.mxu0 %v136
    %483 = vmatpush.msra.mxu0 %v132
    %484 = vmatpush.msra.mxu0 %v128
    %485 = vmatpush.msra.mxu0 %v124
    %486 = vmatmul.f32.gmra.mxu0 %v82
    %v487 = vpop.f32.mrf.mxu0
    %v488 = vadd.f32 %v190, %v487
    %489 = vmatmul.f32.gmra.mxu0 %v83
    %v490 = vpop.f32.mrf.mxu0
    %v491 = vadd.f32 %v190, %v490
    %492 = vmatmul.f32.gmra.mxu0 %v84
    %v493 = vpop.f32.mrf.mxu0
    %v494 = vadd.f32 %v190, %v493
    %495 = vmatmul.f32.gmra.mxu0 %v85
    %v496 = vpop.f32.mrf.mxu0
    %v497 = vadd.f32 %v190, %v496
    %498 = vmatmul.f32.gmra.mxu0 %v86
    %v499 = vpop.f32.mrf.mxu0
    %v500 = vadd.f32 %v190, %v499
    %501 = vmatmul.f32.gmra.mxu0 %v87
    %v502 = vpop.f32.mrf.mxu0
    %v503 = vadd.f32 %v190, %v502
    %504 = vmatmul.f32.gmra.mxu0 %v88
    %v505 = vpop.f32.mrf.mxu0
    %v506 = vadd.f32 %v190, %v505
    %507 = vmatmul.f32.gmra.mxu0 %v89
    %v508 = vpop.f32.mrf.mxu0
    %v509 = vadd.f32 %v190, %v508
    %510 = vmatmul.f32.gmra.mxu0 %v90
    %v511 = vpop.f32.mrf.mxu0
    %v512 = vadd.f32 %v190, %v511
    %513 = vmatmul.f32.gmra.mxu0 %v91
    %v514 = vpop.f32.mrf.mxu0
    %v515 = vadd.f32 %v190, %v514
    %516 = vmatmul.f32.gmra.mxu0 %v92
    %v517 = vpop.f32.mrf.mxu0
    %v518 = vadd.f32 %v190, %v517
    %519 = vmatmul.f32.gmra.mxu0 %v93
    %v520 = vpop.f32.mrf.mxu0
    %v521 = vadd.f32 %v190, %v520
    %522 = vmatmul.f32.gmra.mxu0 %v94
    %v523 = vpop.f32.mrf.mxu0
    %v524 = vadd.f32 %v190, %v523
    %525 = vmatmul.f32.gmra.mxu0 %v95
    %v526 = vpop.f32.mrf.mxu0
    %v527 = vadd.f32 %v190, %v526
    %528 = vmatmul.f32.gmra.mxu0 %v96
    %v529 = vpop.f32.mrf.mxu0
    %v530 = vadd.f32 %v190, %v529
    %531 = vmatmul.f32.gmra.mxu0 %v97
    %v532 = vpop.f32.mrf.mxu0
    %v533 = vadd.f32 %v190, %v532
    %534 = vmatmul.f32.gmra.mxu0 %v98
    %v535 = vpop.f32.mrf.mxu0
    %v536 = vadd.f32 %v190, %v535
    %537 = vmatmul.f32.gmra.mxu0 %v99
    %v538 = vpop.f32.mrf.mxu0
    %v539 = vadd.f32 %v190, %v538
    %540 = vmatmul.f32.gmra.mxu0 %v100
    %v541 = vpop.f32.mrf.mxu0
    %v542 = vadd.f32 %v190, %v541
    %543 = vmatmul.f32.gmra.mxu0 %v101
    %v544 = vpop.f32.mrf.mxu0
    %v545 = vadd.f32 %v190, %v544
    %546 = vmatmul.f32.gmra.mxu0 %v102
    %v547 = vpop.f32.mrf.mxu0
    %v548 = vadd.f32 %v190, %v547
    %549 = vmatmul.f32.gmra.mxu0 %v103
    %v550 = vpop.f32.mrf.mxu0
    %v551 = vadd.f32 %v190, %v550
    %552 = vmatmul.f32.gmra.mxu0 %v104
    %v553 = vpop.f32.mrf.mxu0
    %v554 = vadd.f32 %v190, %v553
    %555 = vmatmul.f32.gmra.mxu0 %v105
    %v556 = vpop.f32.mrf.mxu0
    %v557 = vadd.f32 %v190, %v556
    %558 = vmatmul.f32.gmra.mxu0 %v106
    %v559 = vpop.f32.mrf.mxu0
    %v560 = vadd.f32 %v190, %v559
    %561 = vmatmul.f32.gmra.mxu0 %v107
    %v562 = vpop.f32.mrf.mxu0
    %v563 = vadd.f32 %v190, %v562
    %564 = vmatmul.f32.gmra.mxu0 %v108
    %v565 = vpop.f32.mrf.mxu0
    %v566 = vadd.f32 %v190, %v565
    %567 = vmatmul.f32.gmra.mxu0 %v109
    %v568 = vpop.f32.mrf.mxu0
    %v569 = vadd.f32 %v190, %v568
    %570 = vmatmul.f32.gmra.mxu0 %v110
    %v571 = vpop.f32.mrf.mxu0
    %v572 = vadd.f32 %v190, %v571
    %573 = vmatmul.f32.gmra.mxu0 %v111
    %v574 = vpop.f32.mrf.mxu0
    %v575 = vadd.f32 %v190, %v574
    %576 = vmatmul.f32.gmra.mxu0 %v112
    %v577 = vpop.f32.mrf.mxu0
    %v578 = vadd.f32 %v190, %v577
    %579 = vmatmul.f32.gmra.mxu0 %v113
    %v580 = vpop.f32.mrf.mxu0
    %v581 = vadd.f32 %v190, %v580
    %582 = vmatmul.f32.gmra.mxu0 %v114
    %v583 = vpop.f32.mrf.mxu0
    %v584 = vadd.f32 %v190, %v583
    %585 = vmatmul.f32.gmra.mxu0 %v115
    %v586 = vpop.f32.mrf.mxu0
    %v587 = vadd.f32 %v190, %v586
    %588 = vmatmul.f32.gmra.mxu0 %v116
    %v589 = vpop.f32.mrf.mxu0
    %v590 = vadd.f32 %v190, %v589
    %591 = vmatmul.f32.gmra.mxu0 %v117
    %v592 = vpop.f32.mrf.mxu0
    %v593 = vadd.f32 %v190, %v592
    %594 = vmatmul.f32.gmra.mxu0 %v118
    %v595 = vpop.f32.mrf.mxu0
    %v596 = vadd.f32 %v190, %v595
    %597 = vmatmul.f32.gmra.mxu0 %v119
    %v598 = vpop.f32.mrf.mxu0
    %v599 = vadd.f32 %v190, %v598
    %600 = vmatmul.f32.gmra.mxu0 %v120
    %v601 = vpop.f32.mrf.mxu0
    %v602 = vadd.f32 %v190, %v601
    %603 = vmatmul.f32.gmra.mxu0 %v121
    %v604 = vpop.f32.mrf.mxu0
    %v605 = vadd.f32 %v190, %v604
    %606 = vdwg.mxu0
    %607 = vmatpush.msra.mxu0 %v185
    %608 = vmatpush.msra.mxu0 %v181
    %609 = vmatpush.msra.mxu0 %v177
    %610 = vmatpush.msra.mxu0 %v173
    %611 = vmatpush.msra.mxu0 %v169
    %612 = vmatpush.msra.mxu0 %v165
    %613 = vmatpush.msra.mxu0 %v161
    %614 = vmatpush.msra.mxu0 %v157
    %615 = vmatpush.msra.mxu0 %v153
    %616 = vmatpush.msra.mxu0 %v149
    %617 = vmatpush.msra.mxu0 %v145
    %618 = vmatpush.msra.mxu0 %v141
    %619 = vmatpush.msra.mxu0 %v137
    %620 = vmatpush.msra.mxu0 %v133
    %621 = vmatpush.msra.mxu0 %v129
    %622 = vmatpush.msra.mxu0 %v125
    %623 = vmatmul.f32.gmra.mxu0 %v82
    %v624 = vpop.f32.mrf.mxu0
    %v625 = vadd.f32 %v191, %v624
    %626 = vmatmul.f32.gmra.mxu0 %v83
    %v627 = vpop.f32.mrf.mxu0
    %v628 = vadd.f32 %v191, %v627
    %629 = vmatmul.f32.gmra.mxu0 %v84
    %v630 = vpop.f32.mrf.mxu0
    %v631 = vadd.f32 %v191, %v630
    %632 = vmatmul.f32.gmra.mxu0 %v85
    %v633 = vpop.f32.mrf.mxu0
    %v634 = vadd.f32 %v191, %v633
    %635 = vmatmul.f32.gmra.mxu0 %v86
    %v636 = vpop.f32.mrf.mxu0
    %v637 = vadd.f32 %v191, %v636
    %638 = vmatmul.f32.gmra.mxu0 %v87
    %v639 = vpop.f32.mrf.mxu0
    %v640 = vadd.f32 %v191, %v639
    %641 = vmatmul.f32.gmra.mxu0 %v88
    %v642 = vpop.f32.mrf.mxu0
    %v643 = vadd.f32 %v191, %v642
    %644 = vmatmul.f32.gmra.mxu0 %v89
    %v645 = vpop.f32.mrf.mxu0
    %v646 = vadd.f32 %v191, %v645
    %647 = vmatmul.f32.gmra.mxu0 %v90
    %v648 = vpop.f32.mrf.mxu0
    %v649 = vadd.f32 %v191, %v648
    %650 = vmatmul.f32.gmra.mxu0 %v91
    %v651 = vpop.f32.mrf.mxu0
    %v652 = vadd.f32 %v191, %v651
    %653 = vmatmul.f32.gmra.mxu0 %v92
    %v654 = vpop.f32.mrf.mxu0
    %v655 = vadd.f32 %v191, %v654
    %656 = vmatmul.f32.gmra.mxu0 %v93
    %v657 = vpop.f32.mrf.mxu0
    %v658 = vadd.f32 %v191, %v657
    %659 = vmatmul.f32.gmra.mxu0 %v94
    %v660 = vpop.f32.mrf.mxu0
    %v661 = vadd.f32 %v191, %v660
    %662 = vmatmul.f32.gmra.mxu0 %v95
    %v663 = vpop.f32.mrf.mxu0
    %v664 = vadd.f32 %v191, %v663
    %665 = vmatmul.f32.gmra.mxu0 %v96
    %v666 = vpop.f32.mrf.mxu0
    %v667 = vadd.f32 %v191, %v666
    %668 = vmatmul.f32.gmra.mxu0 %v97
    %v669 = vpop.f32.mrf.mxu0
    %v670 = vadd.f32 %v191, %v669
    %671 = vmatmul.f32.gmra.mxu0 %v98
    %v672 = vpop.f32.mrf.mxu0
    %v673 = vadd.f32 %v191, %v672
    %674 = vmatmul.f32.gmra.mxu0 %v99
    %v675 = vpop.f32.mrf.mxu0
    %v676 = vadd.f32 %v191, %v675
    %677 = vmatmul.f32.gmra.mxu0 %v100
    %v678 = vpop.f32.mrf.mxu0
    %v679 = vadd.f32 %v191, %v678
    %680 = vmatmul.f32.gmra.mxu0 %v101
    %v681 = vpop.f32.mrf.mxu0
    %v682 = vadd.f32 %v191, %v681
    %683 = vmatmul.f32.gmra.mxu0 %v102
    %v684 = vpop.f32.mrf.mxu0
    %v685 = vadd.f32 %v191, %v684
    %686 = vmatmul.f32.gmra.mxu0 %v103
    %v687 = vpop.f32.mrf.mxu0
    %v688 = vadd.f32 %v191, %v687
    %689 = vmatmul.f32.gmra.mxu0 %v104
    %v690 = vpop.f32.mrf.mxu0
    %v691 = vadd.f32 %v191, %v690
    %692 = vmatmul.f32.gmra.mxu0 %v105
    %v693 = vpop.f32.mrf.mxu0
    %v694 = vadd.f32 %v191, %v693
    %695 = vmatmul.f32.gmra.mxu0 %v106
    %v696 = vpop.f32.mrf.mxu0
    %v697 = vadd.f32 %v191, %v696
    %698 = vmatmul.f32.gmra.mxu0 %v107
    %v699 = vpop.f32.mrf.mxu0
    %v700 = vadd.f32 %v191, %v699
    %701 = vmatmul.f32.gmra.mxu0 %v108
    %v702 = vpop.f32.mrf.mxu0
    %v703 = vadd.f32 %v191, %v702
    %704 = vmatmul.f32.gmra.mxu0 %v109
    %v705 = vpop.f32.mrf.mxu0
    %v706 = vadd.f32 %v191, %v705
    %707 = vmatmul.f32.gmra.mxu0 %v110
    %v708 = vpop.f32.mrf.mxu0
    %v709 = vadd.f32 %v191, %v708
    %710 = vmatmul.f32.gmra.mxu0 %v111
    %v711 = vpop.f32.mrf.mxu0
    %v712 = vadd.f32 %v191, %v711
    %713 = vmatmul.f32.gmra.mxu0 %v112
    %v714 = vpop.f32.mrf.mxu0
    %v715 = vadd.f32 %v191, %v714
    %716 = vmatmul.f32.gmra.mxu0 %v113
    %v717 = vpop.f32.mrf.mxu0
    %v718 = vadd.f32 %v191, %v717
    %719 = vmatmul.f32.gmra.mxu0 %v114
    %v720 = vpop.f32.mrf.mxu0
    %v721 = vadd.f32 %v191, %v720
    %722 = vmatmul.f32.gmra.mxu0 %v115
    %v723 = vpop.f32.mrf.mxu0
    %v724 = vadd.f32 %v191, %v723
    %725 = vmatmul.f32.gmra.mxu0 %v116
    %v726 = vpop.f32.mrf.mxu0
    %v727 = vadd.f32 %v191, %v726
    %728 = vmatmul.f32.gmra.mxu0 %v117
    %v729 = vpop.f32.mrf.mxu0
    %v730 = vadd.f32 %v191, %v729
    %731 = vmatmul.f32.gmra.mxu0 %v118
    %v732 = vpop.f32.mrf.mxu0
    %v733 = vadd.f32 %v191, %v732
    %734 = vmatmul.f32.gmra.mxu0 %v119
    %v735 = vpop.f32.mrf.mxu0
    %v736 = vadd.f32 %v191, %v735
    %737 = vmatmul.f32.gmra.mxu0 %v120
    %v738 = vpop.f32.mrf.mxu0
    %v739 = vadd.f32 %v191, %v738
    %740 = vmatmul.f32.gmra.mxu0 %v121
    %v741 = vpop.f32.mrf.mxu0
    %v742 = vadd.f32 %v191, %v741
    %743 = vdwg.mxu0
    %v744 = vmax.f32 %v214, 0.0
    %v745 = vmax.f32 %v351, 0.0
    %v746 = vmax.f32 %v488, 0.0
    %v747 = vmax.f32 %v625, 0.0
    %v748 = vmax.f32 %v217, 0.0
    %v749 = vmax.f32 %v354, 0.0
    %v750 = vmax.f32 %v491, 0.0
    %v751 = vmax.f32 %v628, 0.0
    %v752 = vmax.f32 %v220, 0.0
    %v753 = vmax.f32 %v357, 0.0
    %v754 = vmax.f32 %v494, 0.0
    %v755 = vmax.f32 %v631, 0.0
    %v756 = vmax.f32 %v223, 0.0
    %v757 = vmax.f32 %v360, 0.0
    %v758 = vmax.f32 %v497, 0.0
    %v759 = vmax.f32 %v634, 0.0
    %v760 = vmax.f32 %v226, 0.0
    %v761 = vmax.f32 %v363, 0.0
    %v762 = vmax.f32 %v500, 0.0
    %v763 = vmax.f32 %v637, 0.0
    %v764 = vmax.f32 %v229, 0.0
    %v765 = vmax.f32 %v366, 0.0
    %v766 = vmax.f32 %v503, 0.0
    %v767 = vmax.f32 %v640, 0.0
    %v768 = vmax.f32 %v232, 0.0
    %v769 = vmax.f32 %v369, 0.0
    %v770 = vmax.f32 %v506, 0.0
    %v771 = vmax.f32 %v643, 0.0
    %v772 = vmax.f32 %v235, 0.0
    %v773 = vmax.f32 %v372, 0.0
    %v774 = vmax.f32 %v509, 0.0
    %v775 = vmax.f32 %v646, 0.0
    %v776 = vmax.f32 %v238, 0.0
    %v777 = vmax.f32 %v375, 0.0
    %v778 = vmax.f32 %v512, 0.0
    %v779 = vmax.f32 %v649, 0.0
    %v780 = vmax.f32 %v241, 0.0
    %v781 = vmax.f32 %v378, 0.0
    %v782 = vmax.f32 %v515, 0.0
    %v783 = vmax.f32 %v652, 0.0
    %v784 = vmax.f32 %v244, 0.0
    %v785 = vmax.f32 %v381, 0.0
    %v786 = vmax.f32 %v518, 0.0
    %v787 = vmax.f32 %v655, 0.0
    %v788 = vmax.f32 %v247, 0.0
    %v789 = vmax.f32 %v384, 0.0
    %v790 = vmax.f32 %v521, 0.0
    %v791 = vmax.f32 %v658, 0.0
    %v792 = vmax.f32 %v250, 0.0
    %v793 = vmax.f32 %v387, 0.0
    %v794 = vmax.f32 %v524, 0.0
    %v795 = vmax.f32 %v661, 0.0
    %v796 = vmax.f32 %v253, 0.0
    %v797 = vmax.f32 %v390, 0.0
    %v798 = vmax.f32 %v527, 0.0
    %v799 = vmax.f32 %v664, 0.0
    %v800 = vmax.f32 %v256, 0.0
    %v801 = vmax.f32 %v393, 0.0
    %v802 = vmax.f32 %v530, 0.0
    %v803 = vmax.f32 %v667, 0.0
    %v804 = vmax.f32 %v259, 0.0
    %v805 = vmax.f32 %v396, 0.0
    %v806 = vmax.f32 %v533, 0.0
    %v807 = vmax.f32 %v670, 0.0
    %v808 = vmax.f32 %v262, 0.0
    %v809 = vmax.f32 %v399, 0.0
    %v810 = vmax.f32 %v536, 0.0
    %v811 = vmax.f32 %v673, 0.0
    %v812 = vmax.f32 %v265, 0.0
    %v813 = vmax.f32 %v402, 0.0
    %v814 = vmax.f32 %v539, 0.0
    %v815 = vmax.f32 %v676, 0.0
    %v816 = vmax.f32 %v268, 0.0
    %v817 = vmax.f32 %v405, 0.0
    %v818 = vmax.f32 %v542, 0.0
    %v819 = vmax.f32 %v679, 0.0
    %v820 = vmax.f32 %v271, 0.0
    %v821 = vmax.f32 %v408, 0.0
    %v822 = vmax.f32 %v545, 0.0
    %v823 = vmax.f32 %v682, 0.0
    %v824 = vmax.f32 %v274, 0.0
    %v825 = vmax.f32 %v411, 0.0
    %v826 = vmax.f32 %v548, 0.0
    %v827 = vmax.f32 %v685, 0.0
    %v828 = vmax.f32 %v277, 0.0
    %v829 = vmax.f32 %v414, 0.0
    %v830 = vmax.f32 %v551, 0.0
    %v831 = vmax.f32 %v688, 0.0
    %v832 = vmax.f32 %v280, 0.0
    %v833 = vmax.f32 %v417, 0.0
    %v834 = vmax.f32 %v554, 0.0
    %v835 = vmax.f32 %v691, 0.0
    %v836 = vmax.f32 %v283, 0.0
    %v837 = vmax.f32 %v420, 0.0
    %v838 = vmax.f32 %v557, 0.0
    %v839 = vmax.f32 %v694, 0.0
    %v840 = vmax.f32 %v286, 0.0
    %v841 = vmax.f32 %v423, 0.0
    %v842 = vmax.f32 %v560, 0.0
    %v843 = vmax.f32 %v697, 0.0
    %v844 = vmax.f32 %v289, 0.0
    %v845 = vmax.f32 %v426, 0.0
    %v846 = vmax.f32 %v563, 0.0
    %v847 = vmax.f32 %v700, 0.0
    %v848 = vmax.f32 %v292, 0.0
    %v849 = vmax.f32 %v429, 0.0
    %v850 = vmax.f32 %v566, 0.0
    %v851 = vmax.f32 %v703, 0.0
    %v852 = vmax.f32 %v295, 0.0
    %v853 = vmax.f32 %v432, 0.0
    %v854 = vmax.f32 %v569, 0.0
    %v855 = vmax.f32 %v706, 0.0
    %v856 = vmax.f32 %v298, 0.0
    %v857 = vmax.f32 %v435, 0.0
    %v858 = vmax.f32 %v572, 0.0
    %v859 = vmax.f32 %v709, 0.0
    %v860 = vmax.f32 %v301, 0.0
    %v861 = vmax.f32 %v438, 0.0
    %v862 = vmax.f32 %v575, 0.0
    %v863 = vmax.f32 %v712, 0.0
    %v864 = vmax.f32 %v304, 0.0
    %v865 = vmax.f32 %v441, 0.0
    %v866 = vmax.f32 %v578, 0.0
    %v867 = vmax.f32 %v715, 0.0
    %v868 = vmax.f32 %v307, 0.0
    %v869 = vmax.f32 %v444, 0.0
    %v870 = vmax.f32 %v581, 0.0
    %v871 = vmax.f32 %v718, 0.0
    %v872 = vmax.f32 %v310, 0.0
    %v873 = vmax.f32 %v447, 0.0
    %v874 = vmax.f32 %v584, 0.0
    %v875 = vmax.f32 %v721, 0.0
    %v876 = vmax.f32 %v313, 0.0
    %v877 = vmax.f32 %v450, 0.0
    %v878 = vmax.f32 %v587, 0.0
    %v879 = vmax.f32 %v724, 0.0
    %v880 = vmax.f32 %v316, 0.0
    %v881 = vmax.f32 %v453, 0.0
    %v882 = vmax.f32 %v590, 0.0
    %v883 = vmax.f32 %v727, 0.0
    %v884 = vmax.f32 %v319, 0.0
    %v885 = vmax.f32 %v456, 0.0
    %v886 = vmax.f32 %v593, 0.0
    %v887 = vmax.f32 %v730, 0.0
    %v888 = vmax.f32 %v322, 0.0
    %v889 = vmax.f32 %v459, 0.0
    %v890 = vmax.f32 %v596, 0.0
    %v891 = vmax.f32 %v733, 0.0
    %v892 = vmax.f32 %v325, 0.0
    %v893 = vmax.f32 %v462, 0.0
    %v894 = vmax.f32 %v599, 0.0
    %v895 = vmax.f32 %v736, 0.0
    %v896 = vmax.f32 %v328, 0.0
    %v897 = vmax.f32 %v465, 0.0
    %v898 = vmax.f32 %v602, 0.0
    %v899 = vmax.f32 %v739, 0.0
    %v900 = vmax.f32 %v331, 0.0
    %v901 = vmax.f32 %v468, 0.0
    %v902 = vmax.f32 %v605, 0.0
    %v903 = vmax.f32 %v742, 0.0
    %v904 = vld [vmem:[#allocation8] sm:$0xff]
    %v905 = vld [vmem:[#allocation8 + $0x8] sm:$0xff]
    %v906 = vld [vmem:[#allocation8 + $0x10] sm:$0xff]
    %v907 = vld [vmem:[#allocation8 + $0x18] sm:$0xff]
    %v908 = vld [vmem:[#allocation8 + $0x20] sm:$0xff]
    %v909 = vld [vmem:[#allocation8 + $0x28] sm:$0xff]
    %v910 = vld [vmem:[#allocation8 + $0x30] sm:$0xff]
    %v911 = vld [vmem:[#allocation8 + $0x38] sm:$0xff]
    %v912 = vld [vmem:[#allocation8 + $0x40] sm:$0xff]
    %v913 = vld [vmem:[#allocation8 + $0x48] sm:$0xff]
    %v914 = vld [vmem:[#allocation8 + $0x50] sm:$0xff]
    %v915 = vld [vmem:[#allocation8 + $0x58] sm:$0xff]
    %v916 = vld [vmem:[#allocation8 + $0x60] sm:$0xff]
    %v917 = vld [vmem:[#allocation8 + $0x68] sm:$0xff]
    %v918 = vld [vmem:[#allocation8 + $0x70] sm:$0xff]
    %v919 = vld [vmem:[#allocation8 + $0x78] sm:$0xff]
    %v920 = vld [vmem:[#allocation8 + $0x80] sm:$0xff]
    %v921 = vld [vmem:[#allocation8 + $0x88] sm:$0xff]
    %v922 = vld [vmem:[#allocation8 + $0x90] sm:$0xff]
    %v923 = vld [vmem:[#allocation8 + $0x98] sm:$0xff]
    %v924 = vld [vmem:[#allocation8 + $0xa0] sm:$0xff]
    %v925 = vld [vmem:[#allocation8 + $0xa8] sm:$0xff]
    %v926 = vld [vmem:[#allocation8 + $0xb0] sm:$0xff]
    %v927 = vld [vmem:[#allocation8 + $0xb8] sm:$0xff]
    %v928 = vld [vmem:[#allocation8 + $0xc0] sm:$0xff]
    %v929 = vld [vmem:[#allocation8 + $0xc8] sm:$0xff]
    %v930 = vld [vmem:[#allocation8 + $0xd0] sm:$0xff]
    %v931 = vld [vmem:[#allocation8 + $0xd8] sm:$0xff]
    %v932 = vld [vmem:[#allocation8 + $0xe0] sm:$0xff]
    %v933 = vld [vmem:[#allocation8 + $0xe8] sm:$0xff]
    %v934 = vld [vmem:[#allocation8 + $0xf0] sm:$0xff]
    %v935 = vld [vmem:[#allocation8 + $0xf8] sm:$0xff]
    %v936 = vld [vmem:[#allocation8 + $0x100] sm:$0xff]
    %v937 = vld [vmem:[#allocation8 + $0x108] sm:$0xff]
    %v938 = vld [vmem:[#allocation8 + $0x110] sm:$0xff]
    %v939 = vld [vmem:[#allocation8 + $0x118] sm:$0xff]
    %v940 = vld [vmem:[#allocation8 + $0x120] sm:$0xff]
    %v941 = vld [vmem:[#allocation8 + $0x128] sm:$0xff]
    %v942 = vld [vmem:[#allocation8 + $0x130] sm:$0xff]
    %v943 = vld [vmem:[#allocation8 + $0x138] sm:$0xff]
    %v944 = vld [vmem:[#allocation8 + $0x140] sm:$0xff]
    %v945 = vld [vmem:[#allocation8 + $0x148] sm:$0xff]
    %v946 = vld [vmem:[#allocation8 + $0x150] sm:$0xff]
    %v947 = vld [vmem:[#allocation8 + $0x158] sm:$0xff]
    %v948 = vld [vmem:[#allocation8 + $0x160] sm:$0xff]
    %v949 = vld [vmem:[#allocation8 + $0x168] sm:$0xff]
    %v950 = vld [vmem:[#allocation8 + $0x170] sm:$0xff]
    %v951 = vld [vmem:[#allocation8 + $0x178] sm:$0xff]
    %v952 = vld [vmem:[#allocation8 + $0x180] sm:$0xff]
    %v953 = vld [vmem:[#allocation8 + $0x188] sm:$0xff]
    %v954 = vld [vmem:[#allocation8 + $0x190] sm:$0xff]
    %v955 = vld [vmem:[#allocation8 + $0x198] sm:$0xff]
    %v956 = vld [vmem:[#allocation8 + $0x1a0] sm:$0xff]
    %v957 = vld [vmem:[#allocation8 + $0x1a8] sm:$0xff]
    %v958 = vld [vmem:[#allocation8 + $0x1b0] sm:$0xff]
    %v959 = vld [vmem:[#allocation8 + $0x1b8] sm:$0xff]
    %v960 = vld [vmem:[#allocation8 + $0x1c0] sm:$0xff]
    %v961 = vld [vmem:[#allocation8 + $0x1c8] sm:$0xff]
    %v962 = vld [vmem:[#allocation8 + $0x1d0] sm:$0xff]
    %v963 = vld [vmem:[#allocation8 + $0x1d8] sm:$0xff]
    %v964 = vld [vmem:[#allocation8 + $0x1e0] sm:$0xff]
    %v965 = vld [vmem:[#allocation8 + $0x1e8] sm:$0xff]
    %v966 = vld [vmem:[#allocation8 + $0x1f0] sm:$0xff]
    %v967 = vld [vmem:[#allocation8 + $0x1f8] sm:$0xff]
    %v968 = vld [vmem:[#allocation8 + $0x200] sm:$0xff]
    %v969 = vld [vmem:[#allocation8 + $0x208] sm:$0xff]
    %v970 = vld [vmem:[#allocation8 + $0x210] sm:$0xff]
    %v971 = vld [vmem:[#allocation8 + $0x218] sm:$0xff]
    %v972 = vld [vmem:[#allocation8 + $0x220] sm:$0xff]
    %v973 = vld [vmem:[#allocation8 + $0x228] sm:$0xff]
    %v974 = vld [vmem:[#allocation8 + $0x230] sm:$0xff]
    %v975 = vld [vmem:[#allocation8 + $0x238] sm:$0xff]
    %v976 = vld [vmem:[#allocation8 + $0x240] sm:$0xff]
    %v977 = vld [vmem:[#allocation8 + $0x248] sm:$0xff]
    %v978 = vld [vmem:[#allocation8 + $0x250] sm:$0xff]
    %v979 = vld [vmem:[#allocation8 + $0x258] sm:$0xff]
    %v980 = vld [vmem:[#allocation8 + $0x260] sm:$0xff]
    %v981 = vld [vmem:[#allocation8 + $0x268] sm:$0xff]
    %v982 = vld [vmem:[#allocation8 + $0x270] sm:$0xff]
    %v983 = vld [vmem:[#allocation8 + $0x278] sm:$0xff]
    %v984 = vld [vmem:[#allocation8 + $0x280] sm:$0xff]
    %v985 = vld [vmem:[#allocation8 + $0x288] sm:$0xff]
    %v986 = vld [vmem:[#allocation8 + $0x290] sm:$0xff]
    %v987 = vld [vmem:[#allocation8 + $0x298] sm:$0xff]
    %v988 = vld [vmem:[#allocation8 + $0x2a0] sm:$0xff]
    %v989 = vld [vmem:[#allocation8 + $0x2a8] sm:$0xff]
    %v990 = vld [vmem:[#allocation8 + $0x2b0] sm:$0xff]
    %v991 = vld [vmem:[#allocation8 + $0x2b8] sm:$0xff]
    %v992 = vld [vmem:[#allocation8 + $0x2c0] sm:$0xff]
    %v993 = vld [vmem:[#allocation8 + $0x2c8] sm:$0xff]
    %v994 = vld [vmem:[#allocation8 + $0x2d0] sm:$0xff]
    %v995 = vld [vmem:[#allocation8 + $0x2d8] sm:$0xff]
    %v996 = vld [vmem:[#allocation8 + $0x2e0] sm:$0xff]
    %v997 = vld [vmem:[#allocation8 + $0x2e8] sm:$0xff]
    %v998 = vld [vmem:[#allocation8 + $0x2f0] sm:$0xff]
    %v999 = vld [vmem:[#allocation8 + $0x2f8] sm:$0xff]
    %v1000 = vld [vmem:[#allocation8 + $0x300] sm:$0xff]
    %v1001 = vld [vmem:[#allocation8 + $0x308] sm:$0xff]
    %v1002 = vld [vmem:[#allocation8 + $0x310] sm:$0xff]
    %v1003 = vld [vmem:[#allocation8 + $0x318] sm:$0xff]
    %v1004 = vld [vmem:[#allocation8 + $0x320] sm:$0xff]
    %v1005 = vld [vmem:[#allocation8 + $0x328] sm:$0xff]
    %v1006 = vld [vmem:[#allocation8 + $0x330] sm:$0xff]
    %v1007 = vld [vmem:[#allocation8 + $0x338] sm:$0xff]
    %v1008 = vld [vmem:[#allocation8 + $0x340] sm:$0xff]
    %v1009 = vld [vmem:[#allocation8 + $0x348] sm:$0xff]
    %v1010 = vld [vmem:[#allocation8 + $0x350] sm:$0xff]
    %v1011 = vld [vmem:[#allocation8 + $0x358] sm:$0xff]
    %v1012 = vld [vmem:[#allocation8 + $0x360] sm:$0xff]
    %v1013 = vld [vmem:[#allocation8 + $0x368] sm:$0xff]
    %v1014 = vld [vmem:[#allocation8 + $0x370] sm:$0xff]
    %v1015 = vld [vmem:[#allocation8 + $0x378] sm:$0xff]
    %v1016 = vld [vmem:[#allocation8 + $0x380] sm:$0xff]
    %v1017 = vld [vmem:[#allocation8 + $0x388] sm:$0xff]
    %v1018 = vld [vmem:[#allocation8 + $0x390] sm:$0xff]
    %v1019 = vld [vmem:[#allocation8 + $0x398] sm:$0xff]
    %v1020 = vld [vmem:[#allocation8 + $0x3a0] sm:$0xff]
    %v1021 = vld [vmem:[#allocation8 + $0x3a8] sm:$0xff]
    %v1022 = vld [vmem:[#allocation8 + $0x3b0] sm:$0xff]
    %v1023 = vld [vmem:[#allocation8 + $0x3b8] sm:$0xff]
    %v1024 = vld [vmem:[#allocation8 + $0x3c0] sm:$0xff]
    %v1025 = vld [vmem:[#allocation8 + $0x3c8] sm:$0xff]
    %v1026 = vld [vmem:[#allocation8 + $0x3d0] sm:$0xff]
    %v1027 = vld [vmem:[#allocation8 + $0x3d8] sm:$0xff]
    %v1028 = vld [vmem:[#allocation8 + $0x3e0] sm:$0xff]
    %v1029 = vld [vmem:[#allocation8 + $0x3e8] sm:$0xff]
    %v1030 = vld [vmem:[#allocation8 + $0x3f0] sm:$0xff]
    %v1031 = vld [vmem:[#allocation8 + $0x3f8] sm:$0xff]
    %v1032 = vld [vmem:[%s4] sm:$0x3]
    %v1034 = vperm.slane %v1032, 0
    %v1035 = vperm.slane %v1032, 1
    %1038 = vmatpush.msra.mxu0 %v934
    %1039 = vmatpush.msra.mxu0 %v932
    %1040 = vmatpush.msra.mxu0 %v930
    %1041 = vmatpush.msra.mxu0 %v928
    %1042 = vmatpush.msra.mxu0 %v926
    %1043 = vmatpush.msra.mxu0 %v924
    %1044 = vmatpush.msra.mxu0 %v922
    %1045 = vmatpush.msra.mxu0 %v920
    %1046 = vmatpush.msra.mxu0 %v918
    %1047 = vmatpush.msra.mxu0 %v916
    %1048 = vmatpush.msra.mxu0 %v914
    %1049 = vmatpush.msra.mxu0 %v912
    %1050 = vmatpush.msra.mxu0 %v910
    %1051 = vmatpush.msra.mxu0 %v908
    %1052 = vmatpush.msra.mxu0 %v906
    %1053 = vmatpush.msra.mxu0 %v904
    %1054 = vmatmul.f32.gmra.mxu0 %v744
    %v1055 = vpop.f32.mrf.mxu0
    %v1056 = vadd.f32 %v1034, %v1055
    %1057 = vmatmul.f32.gmra.mxu0 %v748
    %v1058 = vpop.f32.mrf.mxu0
    %v1059 = vadd.f32 %v1034, %v1058
    %1060 = vmatmul.f32.gmra.mxu0 %v752
    %v1061 = vpop.f32.mrf.mxu0
    %v1062 = vadd.f32 %v1034, %v1061
    %1063 = vmatmul.f32.gmra.mxu0 %v756
    %v1064 = vpop.f32.mrf.mxu0
    %v1065 = vadd.f32 %v1034, %v1064
    %1066 = vmatmul.f32.gmra.mxu0 %v760
    %v1067 = vpop.f32.mrf.mxu0
    %v1068 = vadd.f32 %v1034, %v1067
    %1069 = vmatmul.f32.gmra.mxu0 %v764
    %v1070 = vpop.f32.mrf.mxu0
    %v1071 = vadd.f32 %v1034, %v1070
    %1072 = vmatmul.f32.gmra.mxu0 %v768
    %v1073 = vpop.f32.mrf.mxu0
    %v1074 = vadd.f32 %v1034, %v1073
    %1075 = vmatmul.f32.gmra.mxu0 %v772
    %v1076 = vpop.f32.mrf.mxu0
    %v1077 = vadd.f32 %v1034, %v1076
    %1078 = vmatmul.f32.gmra.mxu0 %v776
    %v1079 = vpop.f32.mrf.mxu0
    %v1080 = vadd.f32 %v1034, %v1079
    %1081 = vmatmul.f32.gmra.mxu0 %v780
    %v1082 = vpop.f32.mrf.mxu0
    %v1083 = vadd.f32 %v1034, %v1082
    %1084 = vmatmul.f32.gmra.mxu0 %v784
    %v1085 = vpop.f32.mrf.mxu0
    %v1086 = vadd.f32 %v1034, %v1085
    %1087 = vmatmul.f32.gmra.mxu0 %v788
    %v1088 = vpop.f32.mrf.mxu0
    %v1089 = vadd.f32 %v1034, %v1088
    %1090 = vmatmul.f32.gmra.mxu0 %v792
    %v1091 = vpop.f32.mrf.mxu0
    %v1092 = vadd.f32 %v1034, %v1091
    %1093 = vmatmul.f32.gmra.mxu0 %v796
    %v1094 = vpop.f32.mrf.mxu0
    %v1095 = vadd.f32 %v1034, %v1094
    %1096 = vmatmul.f32.gmra.mxu0 %v800
    %v1097 = vpop.f32.mrf.mxu0
    %v1098 = vadd.f32 %v1034, %v1097
    %1099 = vmatmul.f32.gmra.mxu0 %v804
    %v1100 = vpop.f32.mrf.mxu0
    %v1101 = vadd.f32 %v1034, %v1100
    %1102 = vmatmul.f32.gmra.mxu0 %v808
    %v1103 = vpop.f32.mrf.mxu0
    %v1104 = vadd.f32 %v1034, %v1103
    %1105 = vmatmul.f32.gmra.mxu0 %v812
    %v1106 = vpop.f32.mrf.mxu0
    %v1107 = vadd.f32 %v1034, %v1106
    %1108 = vmatmul.f32.gmra.mxu0 %v816
    %v1109 = vpop.f32.mrf.mxu0
    %v1110 = vadd.f32 %v1034, %v1109
    %1111 = vmatmul.f32.gmra.mxu0 %v820
    %v1112 = vpop.f32.mrf.mxu0
    %v1113 = vadd.f32 %v1034, %v1112
    %1114 = vmatmul.f32.gmra.mxu0 %v824
    %v1115 = vpop.f32.mrf.mxu0
    %v1116 = vadd.f32 %v1034, %v1115
    %1117 = vmatmul.f32.gmra.mxu0 %v828
    %v1118 = vpop.f32.mrf.mxu0
    %v1119 = vadd.f32 %v1034, %v1118
    %1120 = vmatmul.f32.gmra.mxu0 %v832
    %v1121 = vpop.f32.mrf.mxu0
    %v1122 = vadd.f32 %v1034, %v1121
    %1123 = vmatmul.f32.gmra.mxu0 %v836
    %v1124 = vpop.f32.mrf.mxu0
    %v1125 = vadd.f32 %v1034, %v1124
    %1126 = vmatmul.f32.gmra.mxu0 %v840
    %v1127 = vpop.f32.mrf.mxu0
    %v1128 = vadd.f32 %v1034, %v1127
    %1129 = vmatmul.f32.gmra.mxu0 %v844
    %v1130 = vpop.f32.mrf.mxu0
    %v1131 = vadd.f32 %v1034, %v1130
    %1132 = vmatmul.f32.gmra.mxu0 %v848
    %v1133 = vpop.f32.mrf.mxu0
    %v1134 = vadd.f32 %v1034, %v1133
    %1135 = vmatmul.f32.gmra.mxu0 %v852
    %v1136 = vpop.f32.mrf.mxu0
    %v1137 = vadd.f32 %v1034, %v1136
    %1138 = vmatmul.f32.gmra.mxu0 %v856
    %v1139 = vpop.f32.mrf.mxu0
    %v1140 = vadd.f32 %v1034, %v1139
    %1141 = vmatmul.f32.gmra.mxu0 %v860
    %v1142 = vpop.f32.mrf.mxu0
    %v1143 = vadd.f32 %v1034, %v1142
    %1144 = vmatmul.f32.gmra.mxu0 %v864
    %v1145 = vpop.f32.mrf.mxu0
    %v1146 = vadd.f32 %v1034, %v1145
    %1147 = vmatmul.f32.gmra.mxu0 %v868
    %v1148 = vpop.f32.mrf.mxu0
    %v1149 = vadd.f32 %v1034, %v1148
    %1150 = vmatmul.f32.gmra.mxu0 %v872
    %v1151 = vpop.f32.mrf.mxu0
    %v1152 = vadd.f32 %v1034, %v1151
    %1153 = vmatmul.f32.gmra.mxu0 %v876
    %v1154 = vpop.f32.mrf.mxu0
    %v1155 = vadd.f32 %v1034, %v1154
    %1156 = vmatmul.f32.gmra.mxu0 %v880
    %v1157 = vpop.f32.mrf.mxu0
    %v1158 = vadd.f32 %v1034, %v1157
    %1159 = vmatmul.f32.gmra.mxu0 %v884
    %v1160 = vpop.f32.mrf.mxu0
    %v1161 = vadd.f32 %v1034, %v1160
    %1162 = vmatmul.f32.gmra.mxu0 %v888
    %v1163 = vpop.f32.mrf.mxu0
    %v1164 = vadd.f32 %v1034, %v1163
    %1165 = vmatmul.f32.gmra.mxu0 %v892
    %v1166 = vpop.f32.mrf.mxu0
    %v1167 = vadd.f32 %v1034, %v1166
    %1168 = vmatmul.f32.gmra.mxu0 %v896
    %v1169 = vpop.f32.mrf.mxu0
    %v1170 = vadd.f32 %v1034, %v1169
    %1171 = vmatmul.f32.gmra.mxu0 %v900
    %v1172 = vpop.f32.mrf.mxu0
    %v1173 = vadd.f32 %v1034, %v1172
    %1174 = vdwg.mxu0
    %1175 = vmatpush.msra.mxu0 %v966
    %1176 = vmatpush.msra.mxu0 %v964
    %1177 = vmatpush.msra.mxu0 %v962
    %1178 = vmatpush.msra.mxu0 %v960
    %1179 = vmatpush.msra.mxu0 %v958
    %1180 = vmatpush.msra.mxu0 %v956
    %1181 = vmatpush.msra.mxu0 %v954
    %1182 = vmatpush.msra.mxu0 %v952
    %1183 = vmatpush.msra.mxu0 %v950
    %1184 = vmatpush.msra.mxu0 %v948
    %1185 = vmatpush.msra.mxu0 %v946
    %1186 = vmatpush.msra.mxu0 %v944
    %1187 = vmatpush.msra.mxu0 %v942
    %1188 = vmatpush.msra.mxu0 %v940
    %1189 = vmatpush.msra.mxu0 %v938
    %1190 = vmatpush.msra.mxu0 %v936
    %1191 = vmatmul.f32.gmra.mxu0 %v745
    %v1192 = vpop.f32.mrf.mxu0
    %v1193 = vadd.f32 %v1056, %v1192
    %1194 = vmatmul.f32.gmra.mxu0 %v749
    %v1195 = vpop.f32.mrf.mxu0
    %v1196 = vadd.f32 %v1059, %v1195
    %1197 = vmatmul.f32.gmra.mxu0 %v753
    %v1198 = vpop.f32.mrf.mxu0
    %v1199 = vadd.f32 %v1062, %v1198
    %1200 = vmatmul.f32.gmra.mxu0 %v757
    %v1201 = vpop.f32.mrf.mxu0
    %v1202 = vadd.f32 %v1065, %v1201
    %1203 = vmatmul.f32.gmra.mxu0 %v761
    %v1204 = vpop.f32.mrf.mxu0
    %v1205 = vadd.f32 %v1068, %v1204
    %1206 = vmatmul.f32.gmra.mxu0 %v765
    %v1207 = vpop.f32.mrf.mxu0
    %v1208 = vadd.f32 %v1071, %v1207
    %1209 = vmatmul.f32.gmra.mxu0 %v769
    %v1210 = vpop.f32.mrf.mxu0
    %v1211 = vadd.f32 %v1074, %v1210
    %1212 = vmatmul.f32.gmra.mxu0 %v773
    %v1213 = vpop.f32.mrf.mxu0
    %v1214 = vadd.f32 %v1077, %v1213
    %1215 = vmatmul.f32.gmra.mxu0 %v777
    %v1216 = vpop.f32.mrf.mxu0
    %v1217 = vadd.f32 %v1080, %v1216
    %1218 = vmatmul.f32.gmra.mxu0 %v781
    %v1219 = vpop.f32.mrf.mxu0
    %v1220 = vadd.f32 %v1083, %v1219
    %1221 = vmatmul.f32.gmra.mxu0 %v785
    %v1222 = vpop.f32.mrf.mxu0
    %v1223 = vadd.f32 %v1086, %v1222
    %1224 = vmatmul.f32.gmra.mxu0 %v789
    %v1225 = vpop.f32.mrf.mxu0
    %v1226 = vadd.f32 %v1089, %v1225
    %1227 = vmatmul.f32.gmra.mxu0 %v793
    %v1228 = vpop.f32.mrf.mxu0
    %v1229 = vadd.f32 %v1092, %v1228
    %1230 = vmatmul.f32.gmra.mxu0 %v797
    %v1231 = vpop.f32.mrf.mxu0
    %v1232 = vadd.f32 %v1095, %v1231
    %1233 = vmatmul.f32.gmra.mxu0 %v801
    %v1234 = vpop.f32.mrf.mxu0
    %v1235 = vadd.f32 %v1098, %v1234
    %1236 = vmatmul.f32.gmra.mxu0 %v805
    %v1237 = vpop.f32.mrf.mxu0
    %v1238 = vadd.f32 %v1101, %v1237
    %1239 = vmatmul.f32.gmra.mxu0 %v809
    %v1240 = vpop.f32.mrf.mxu0
    %v1241 = vadd.f32 %v1104, %v1240
    %1242 = vmatmul.f32.gmra.mxu0 %v813
    %v1243 = vpop.f32.mrf.mxu0
    %v1244 = vadd.f32 %v1107, %v1243
    %1245 = vmatmul.f32.gmra.mxu0 %v817
    %v1246 = vpop.f32.mrf.mxu0
    %v1247 = vadd.f32 %v1110, %v1246
    %1248 = vmatmul.f32.gmra.mxu0 %v821
    %v1249 = vpop.f32.mrf.mxu0
    %v1250 = vadd.f32 %v1113, %v1249
    %1251 = vmatmul.f32.gmra.mxu0 %v825
    %v1252 = vpop.f32.mrf.mxu0
    %v1253 = vadd.f32 %v1116, %v1252
    %1254 = vmatmul.f32.gmra.mxu0 %v829
    %v1255 = vpop.f32.mrf.mxu0
    %v1256 = vadd.f32 %v1119, %v1255
    %1257 = vmatmul.f32.gmra.mxu0 %v833
    %v1258 = vpop.f32.mrf.mxu0
    %v1259 = vadd.f32 %v1122, %v1258
    %1260 = vmatmul.f32.gmra.mxu0 %v837
    %v1261 = vpop.f32.mrf.mxu0
    %v1262 = vadd.f32 %v1125, %v1261
    %1263 = vmatmul.f32.gmra.mxu0 %v841
    %v1264 = vpop.f32.mrf.mxu0
    %v1265 = vadd.f32 %v1128, %v1264
    %1266 = vmatmul.f32.gmra.mxu0 %v845
    %v1267 = vpop.f32.mrf.mxu0
    %v1268 = vadd.f32 %v1131, %v1267
    %1269 = vmatmul.f32.gmra.mxu0 %v849
    %v1270 = vpop.f32.mrf.mxu0
    %v1271 = vadd.f32 %v1134, %v1270
    %1272 = vmatmul.f32.gmra.mxu0 %v853
    %v1273 = vpop.f32.mrf.mxu0
    %v1274 = vadd.f32 %v1137, %v1273
    %1275 = vmatmul.f32.gmra.mxu0 %v857
    %v1276 = vpop.f32.mrf.mxu0
    %v1277 = vadd.f32 %v1140, %v1276
    %1278 = vmatmul.f32.gmra.mxu0 %v861
    %v1279 = vpop.f32.mrf.mxu0
    %v1280 = vadd.f32 %v1143, %v1279
    %1281 = vmatmul.f32.gmra.mxu0 %v865
    %v1282 = vpop.f32.mrf.mxu0
    %v1283 = vadd.f32 %v1146, %v1282
    %1284 = vmatmul.f32.gmra.mxu0 %v869
    %v1285 = vpop.f32.mrf.mxu0
    %v1286 = vadd.f32 %v1149, %v1285
    %1287 = vmatmul.f32.gmra.mxu0 %v873
    %v1288 = vpop.f32.mrf.mxu0
    %v1289 = vadd.f32 %v1152, %v1288
    %1290 = vmatmul.f32.gmra.mxu0 %v877
    %v1291 = vpop.f32.mrf.mxu0
    %v1292 = vadd.f32 %v1155, %v1291
    %1293 = vmatmul.f32.gmra.mxu0 %v881
    %v1294 = vpop.f32.mrf.mxu0
    %v1295 = vadd.f32 %v1158, %v1294
    %1296 = vmatmul.f32.gmra.mxu0 %v885
    %v1297 = vpop.f32.mrf.mxu0
    %v1298 = vadd.f32 %v1161, %v1297
    %1299 = vmatmul.f32.gmra.mxu0 %v889
    %v1300 = vpop.f32.mrf.mxu0
    %v1301 = vadd.f32 %v1164, %v1300
    %1302 = vmatmul.f32.gmra.mxu0 %v893
    %v1303 = vpop.f32.mrf.mxu0
    %v1304 = vadd.f32 %v1167, %v1303
    %1305 = vmatmul.f32.gmra.mxu0 %v897
    %v1306 = vpop.f32.mrf.mxu0
    %v1307 = vadd.f32 %v1170, %v1306
    %1308 = vmatmul.f32.gmra.mxu0 %v901
    %v1309 = vpop.f32.mrf.mxu0
    %v1310 = vadd.f32 %v1173, %v1309
    %1311 = vdwg.mxu0
    %1312 = vmatpush.msra.mxu0 %v998
    %1313 = vmatpush.msra.mxu0 %v996
    %1314 = vmatpush.msra.mxu0 %v994
    %1315 = vmatpush.msra.mxu0 %v992
    %1316 = vmatpush.msra.mxu0 %v990
    %1317 = vmatpush.msra.mxu0 %v988
    %1318 = vmatpush.msra.mxu0 %v986
    %1319 = vmatpush.msra.mxu0 %v984
    %1320 = vmatpush.msra.mxu0 %v982
    %1321 = vmatpush.msra.mxu0 %v980
    %1322 = vmatpush.msra.mxu0 %v978
    %1323 = vmatpush.msra.mxu0 %v976
    %1324 = vmatpush.msra.mxu0 %v974
    %1325 = vmatpush.msra.mxu0 %v972
    %1326 = vmatpush.msra.mxu0 %v970
    %1327 = vmatpush.msra.mxu0 %v968
    %1328 = vmatmul.f32.gmra.mxu0 %v746
    %v1329 = vpop.f32.mrf.mxu0
    %v1330 = vadd.f32 %v1193, %v1329
    %1331 = vmatmul.f32.gmra.mxu0 %v750
    %v1332 = vpop.f32.mrf.mxu0
    %v1333 = vadd.f32 %v1196, %v1332
    %1334 = vmatmul.f32.gmra.mxu0 %v754
    %v1335 = vpop.f32.mrf.mxu0
    %v1336 = vadd.f32 %v1199, %v1335
    %1337 = vmatmul.f32.gmra.mxu0 %v758
    %v1338 = vpop.f32.mrf.mxu0
    %v1339 = vadd.f32 %v1202, %v1338
    %1340 = vmatmul.f32.gmra.mxu0 %v762
    %v1341 = vpop.f32.mrf.mxu0
    %v1342 = vadd.f32 %v1205, %v1341
    %1343 = vmatmul.f32.gmra.mxu0 %v766
    %v1344 = vpop.f32.mrf.mxu0
    %v1345 = vadd.f32 %v1208, %v1344
    %1346 = vmatmul.f32.gmra.mxu0 %v770
    %v1347 = vpop.f32.mrf.mxu0
    %v1348 = vadd.f32 %v1211, %v1347
    %1349 = vmatmul.f32.gmra.mxu0 %v774
    %v1350 = vpop.f32.mrf.mxu0
    %v1351 = vadd.f32 %v1214, %v1350
    %1352 = vmatmul.f32.gmra.mxu0 %v778
    %v1353 = vpop.f32.mrf.mxu0
    %v1354 = vadd.f32 %v1217, %v1353
    %1355 = vmatmul.f32.gmra.mxu0 %v782
    %v1356 = vpop.f32.mrf.mxu0
    %v1357 = vadd.f32 %v1220, %v1356
    %1358 = vmatmul.f32.gmra.mxu0 %v786
    %v1359 = vpop.f32.mrf.mxu0
    %v1360 = vadd.f32 %v1223, %v1359
    %1361 = vmatmul.f32.gmra.mxu0 %v790
    %v1362 = vpop.f32.mrf.mxu0
    %v1363 = vadd.f32 %v1226, %v1362
    %1364 = vmatmul.f32.gmra.mxu0 %v794
    %v1365 = vpop.f32.mrf.mxu0
    %v1366 = vadd.f32 %v1229, %v1365
    %1367 = vmatmul.f32.gmra.mxu0 %v798
    %v1368 = vpop.f32.mrf.mxu0
    %v1369 = vadd.f32 %v1232, %v1368
    %1370 = vmatmul.f32.gmra.mxu0 %v802
    %v1371 = vpop.f32.mrf.mxu0
    %v1372 = vadd.f32 %v1235, %v1371
    %1373 = vmatmul.f32.gmra.mxu0 %v806
    %v1374 = vpop.f32.mrf.mxu0
    %v1375 = vadd.f32 %v1238, %v1374
    %1376 = vmatmul.f32.gmra.mxu0 %v810
    %v1377 = vpop.f32.mrf.mxu0
    %v1378 = vadd.f32 %v1241, %v1377
    %1379 = vmatmul.f32.gmra.mxu0 %v814
    %v1380 = vpop.f32.mrf.mxu0
    %v1381 = vadd.f32 %v1244, %v1380
    %1382 = vmatmul.f32.gmra.mxu0 %v818
    %v1383 = vpop.f32.mrf.mxu0
    %v1384 = vadd.f32 %v1247, %v1383
    %1385 = vmatmul.f32.gmra.mxu0 %v822
    %v1386 = vpop.f32.mrf.mxu0
    %v1387 = vadd.f32 %v1250, %v1386
    %1388 = vmatmul.f32.gmra.mxu0 %v826
    %v1389 = vpop.f32.mrf.mxu0
    %v1390 = vadd.f32 %v1253, %v1389
    %1391 = vmatmul.f32.gmra.mxu0 %v830
    %v1392 = vpop.f32.mrf.mxu0
    %v1393 = vadd.f32 %v1256, %v1392
    %1394 = vmatmul.f32.gmra.mxu0 %v834
    %v1395 = vpop.f32.mrf.mxu0
    %v1396 = vadd.f32 %v1259, %v1395
    %1397 = vmatmul.f32.gmra.mxu0 %v838
    %v1398 = vpop.f32.mrf.mxu0
    %v1399 = vadd.f32 %v1262, %v1398
    %1400 = vmatmul.f32.gmra.mxu0 %v842
    %v1401 = vpop.f32.mrf.mxu0
    %v1402 = vadd.f32 %v1265, %v1401
    %1403 = vmatmul.f32.gmra.mxu0 %v846
    %v1404 = vpop.f32.mrf.mxu0
    %v1405 = vadd.f32 %v1268, %v1404
    %1406 = vmatmul.f32.gmra.mxu0 %v850
    %v1407 = vpop.f32.mrf.mxu0
    %v1408 = vadd.f32 %v1271, %v1407
    %1409 = vmatmul.f32.gmra.mxu0 %v854
    %v1410 = vpop.f32.mrf.mxu0
    %v1411 = vadd.f32 %v1274, %v1410
    %1412 = vmatmul.f32.gmra.mxu0 %v858
    %v1413 = vpop.f32.mrf.mxu0
    %v1414 = vadd.f32 %v1277, %v1413
    %1415 = vmatmul.f32.gmra.mxu0 %v862
    %v1416 = vpop.f32.mrf.mxu0
    %v1417 = vadd.f32 %v1280, %v1416
    %1418 = vmatmul.f32.gmra.mxu0 %v866
    %v1419 = vpop.f32.mrf.mxu0
    %v1420 = vadd.f32 %v1283, %v1419
    %1421 = vmatmul.f32.gmra.mxu0 %v870
    %v1422 = vpop.f32.mrf.mxu0
    %v1423 = vadd.f32 %v1286, %v1422
    %1424 = vmatmul.f32.gmra.mxu0 %v874
    %v1425 = vpop.f32.mrf.mxu0
    %v1426 = vadd.f32 %v1289, %v1425
    %1427 = vmatmul.f32.gmra.mxu0 %v878
    %v1428 = vpop.f32.mrf.mxu0
    %v1429 = vadd.f32 %v1292, %v1428
    %1430 = vmatmul.f32.gmra.mxu0 %v882
    %v1431 = vpop.f32.mrf.mxu0
    %v1432 = vadd.f32 %v1295, %v1431
    %1433 = vmatmul.f32.gmra.mxu0 %v886
    %v1434 = vpop.f32.mrf.mxu0
    %v1435 = vadd.f32 %v1298, %v1434
    %1436 = vmatmul.f32.gmra.mxu0 %v890
    %v1437 = vpop.f32.mrf.mxu0
    %v1438 = vadd.f32 %v1301, %v1437
    %1439 = vmatmul.f32.gmra.mxu0 %v894
    %v1440 = vpop.f32.mrf.mxu0
    %v1441 = vadd.f32 %v1304, %v1440
    %1442 = vmatmul.f32.gmra.mxu0 %v898
    %v1443 = vpop.f32.mrf.mxu0
    %v1444 = vadd.f32 %v1307, %v1443
    %1445 = vmatmul.f32.gmra.mxu0 %v902
    %v1446 = vpop.f32.mrf.mxu0
    %v1447 = vadd.f32 %v1310, %v1446
    %1448 = vdwg.mxu0
    %1449 = vmatpush.msra.mxu0 %v1030
    %1450 = vmatpush.msra.mxu0 %v1028
    %1451 = vmatpush.msra.mxu0 %v1026
    %1452 = vmatpush.msra.mxu0 %v1024
    %1453 = vmatpush.msra.mxu0 %v1022
    %1454 = vmatpush.msra.mxu0 %v1020
    %1455 = vmatpush.msra.mxu0 %v1018
    %1456 = vmatpush.msra.mxu0 %v1016
    %1457 = vmatpush.msra.mxu0 %v1014
    %1458 = vmatpush.msra.mxu0 %v1012
    %1459 = vmatpush.msra.mxu0 %v1010
    %1460 = vmatpush.msra.mxu0 %v1008
    %1461 = vmatpush.msra.mxu0 %v1006
    %1462 = vmatpush.msra.mxu0 %v1004
    %1463 = vmatpush.msra.mxu0 %v1002
    %1464 = vmatpush.msra.mxu0 %v1000
    %1465 = vmatmul.f32.gmra.mxu0 %v747
    %v1466 = vpop.f32.mrf.mxu0
    %v1467 = vadd.f32 %v1330, %v1466
    %1468 = vmatmul.f32.gmra.mxu0 %v751
    %v1469 = vpop.f32.mrf.mxu0
    %v1470 = vadd.f32 %v1333, %v1469
    %1471 = vmatmul.f32.gmra.mxu0 %v755
    %v1472 = vpop.f32.mrf.mxu0
    %v1473 = vadd.f32 %v1336, %v1472
    %1474 = vmatmul.f32.gmra.mxu0 %v759
    %v1475 = vpop.f32.mrf.mxu0
    %v1476 = vadd.f32 %v1339, %v1475
    %1477 = vmatmul.f32.gmra.mxu0 %v763
    %v1478 = vpop.f32.mrf.mxu0
    %v1479 = vadd.f32 %v1342, %v1478
    %1480 = vmatmul.f32.gmra.mxu0 %v767
    %v1481 = vpop.f32.mrf.mxu0
    %v1482 = vadd.f32 %v1345, %v1481
    %1483 = vmatmul.f32.gmra.mxu0 %v771
    %v1484 = vpop.f32.mrf.mxu0
    %v1485 = vadd.f32 %v1348, %v1484
    %1486 = vmatmul.f32.gmra.mxu0 %v775
    %v1487 = vpop.f32.mrf.mxu0
    %v1488 = vadd.f32 %v1351, %v1487
    %1489 = vmatmul.f32.gmra.mxu0 %v779
    %v1490 = vpop.f32.mrf.mxu0
    %v1491 = vadd.f32 %v1354, %v1490
    %1492 = vmatmul.f32.gmra.mxu0 %v783
    %v1493 = vpop.f32.mrf.mxu0
    %v1494 = vadd.f32 %v1357, %v1493
    %1495 = vmatmul.f32.gmra.mxu0 %v787
    %v1496 = vpop.f32.mrf.mxu0
    %v1497 = vadd.f32 %v1360, %v1496
    %1498 = vmatmul.f32.gmra.mxu0 %v791
    %v1499 = vpop.f32.mrf.mxu0
    %v1500 = vadd.f32 %v1363, %v1499
    %1501 = vmatmul.f32.gmra.mxu0 %v795
    %v1502 = vpop.f32.mrf.mxu0
    %v1503 = vadd.f32 %v1366, %v1502
    %1504 = vmatmul.f32.gmra.mxu0 %v799
    %v1505 = vpop.f32.mrf.mxu0
    %v1506 = vadd.f32 %v1369, %v1505
    %1507 = vmatmul.f32.gmra.mxu0 %v803
    %v1508 = vpop.f32.mrf.mxu0
    %v1509 = vadd.f32 %v1372, %v1508
    %1510 = vmatmul.f32.gmra.mxu0 %v807
    %v1511 = vpop.f32.mrf.mxu0
    %v1512 = vadd.f32 %v1375, %v1511
    %1513 = vmatmul.f32.gmra.mxu0 %v811
    %v1514 = vpop.f32.mrf.mxu0
    %v1515 = vadd.f32 %v1378, %v1514
    %1516 = vmatmul.f32.gmra.mxu0 %v815
    %v1517 = vpop.f32.mrf.mxu0
    %v1518 = vadd.f32 %v1381, %v1517
    %1519 = vmatmul.f32.gmra.mxu0 %v819
    %v1520 = vpop.f32.mrf.mxu0
    %v1521 = vadd.f32 %v1384, %v1520
    %1522 = vmatmul.f32.gmra.mxu0 %v823
    %v1523 = vpop.f32.mrf.mxu0
    %v1524 = vadd.f32 %v1387, %v1523
    %1525 = vmatmul.f32.gmra.mxu0 %v827
    %v1526 = vpop.f32.mrf.mxu0
    %v1527 = vadd.f32 %v1390, %v1526
    %1528 = vmatmul.f32.gmra.mxu0 %v831
    %v1529 = vpop.f32.mrf.mxu0
    %v1530 = vadd.f32 %v1393, %v1529
    %1531 = vmatmul.f32.gmra.mxu0 %v835
    %v1532 = vpop.f32.mrf.mxu0
    %v1533 = vadd.f32 %v1396, %v1532
    %1534 = vmatmul.f32.gmra.mxu0 %v839
    %v1535 = vpop.f32.mrf.mxu0
    %v1536 = vadd.f32 %v1399, %v1535
    %1537 = vmatmul.f32.gmra.mxu0 %v843
    %v1538 = vpop.f32.mrf.mxu0
    %v1539 = vadd.f32 %v1402, %v1538
    %1540 = vmatmul.f32.gmra.mxu0 %v847
    %v1541 = vpop.f32.mrf.mxu0
    %v1542 = vadd.f32 %v1405, %v1541
    %1543 = vmatmul.f32.gmra.mxu0 %v851
    %v1544 = vpop.f32.mrf.mxu0
    %v1545 = vadd.f32 %v1408, %v1544
    %1546 = vmatmul.f32.gmra.mxu0 %v855
    %v1547 = vpop.f32.mrf.mxu0
    %v1548 = vadd.f32 %v1411, %v1547
    %1549 = vmatmul.f32.gmra.mxu0 %v859
    %v1550 = vpop.f32.mrf.mxu0
    %v1551 = vadd.f32 %v1414, %v1550
    %1552 = vmatmul.f32.gmra.mxu0 %v863
    %v1553 = vpop.f32.mrf.mxu0
    %v1554 = vadd.f32 %v1417, %v1553
    %1555 = vmatmul.f32.gmra.mxu0 %v867
    %v1556 = vpop.f32.mrf.mxu0
    %v1557 = vadd.f32 %v1420, %v1556
    %1558 = vmatmul.f32.gmra.mxu0 %v871
    %v1559 = vpop.f32.mrf.mxu0
    %v1560 = vadd.f32 %v1423, %v1559
    %1561 = vmatmul.f32.gmra.mxu0 %v875
    %v1562 = vpop.f32.mrf.mxu0
    %v1563 = vadd.f32 %v1426, %v1562
    %1564 = vmatmul.f32.gmra.mxu0 %v879
    %v1565 = vpop.f32.mrf.mxu0
    %v1566 = vadd.f32 %v1429, %v1565
    %1567 = vmatmul.f32.gmra.mxu0 %v883
    %v1568 = vpop.f32.mrf.mxu0
    %v1569 = vadd.f32 %v1432, %v1568
    %1570 = vmatmul.f32.gmra.mxu0 %v887
    %v1571 = vpop.f32.mrf.mxu0
    %v1572 = vadd.f32 %v1435, %v1571
    %1573 = vmatmul.f32.gmra.mxu0 %v891
    %v1574 = vpop.f32.mrf.mxu0
    %v1575 = vadd.f32 %v1438, %v1574
    %1576 = vmatmul.f32.gmra.mxu0 %v895
    %v1577 = vpop.f32.mrf.mxu0
    %v1578 = vadd.f32 %v1441, %v1577
    %1579 = vmatmul.f32.gmra.mxu0 %v899
    %v1580 = vpop.f32.mrf.mxu0
    %v1581 = vadd.f32 %v1444, %v1580
    %1582 = vmatmul.f32.gmra.mxu0 %v903
    %v1583 = vpop.f32.mrf.mxu0
    %v1584 = vadd.f32 %v1447, %v1583
    %1585 = vdwg.mxu0
    %1586 = vmatpush.msra.mxu0 %v935
    %1587 = vmatpush.msra.mxu0 %v933
    %1588 = vmatpush.msra.mxu0 %v931
    %1589 = vmatpush.msra.mxu0 %v929
    %1590 = vmatpush.msra.mxu0 %v927
    %1591 = vmatpush.msra.mxu0 %v925
    %1592 = vmatpush.msra.mxu0 %v923
    %1593 = vmatpush.msra.mxu0 %v921
    %1594 = vmatpush.msra.mxu0 %v919
    %1595 = vmatpush.msra.mxu0 %v917
    %1596 = vmatpush.msra.mxu0 %v915
    %1597 = vmatpush.msra.mxu0 %v913
    %1598 = vmatpush.msra.mxu0 %v911
    %1599 = vmatpush.msra.mxu0 %v909
    %1600 = vmatpush.msra.mxu0 %v907
    %1601 = vmatpush.msra.mxu0 %v905
    %1602 = vmatmul.f32.gmra.mxu0 %v744
    %v1603 = vpop.f32.mrf.mxu0
    %v1604 = vadd.f32 %v1035, %v1603
    %1605 = vmatmul.f32.gmra.mxu0 %v748
    %v1606 = vpop.f32.mrf.mxu0
    %v1607 = vadd.f32 %v1035, %v1606
    %1608 = vmatmul.f32.gmra.mxu0 %v752
    %v1609 = vpop.f32.mrf.mxu0
    %v1610 = vadd.f32 %v1035, %v1609
    %1611 = vmatmul.f32.gmra.mxu0 %v756
    %v1612 = vpop.f32.mrf.mxu0
    %v1613 = vadd.f32 %v1035, %v1612
    %1614 = vmatmul.f32.gmra.mxu0 %v760
    %v1615 = vpop.f32.mrf.mxu0
    %v1616 = vadd.f32 %v1035, %v1615
    %1617 = vmatmul.f32.gmra.mxu0 %v764
    %v1618 = vpop.f32.mrf.mxu0
    %v1619 = vadd.f32 %v1035, %v1618
    %1620 = vmatmul.f32.gmra.mxu0 %v768
    %v1621 = vpop.f32.mrf.mxu0
    %v1622 = vadd.f32 %v1035, %v1621
    %1623 = vmatmul.f32.gmra.mxu0 %v772
    %v1624 = vpop.f32.mrf.mxu0
    %v1625 = vadd.f32 %v1035, %v1624
    %1626 = vmatmul.f32.gmra.mxu0 %v776
    %v1627 = vpop.f32.mrf.mxu0
    %v1628 = vadd.f32 %v1035, %v1627
    %1629 = vmatmul.f32.gmra.mxu0 %v780
    %v1630 = vpop.f32.mrf.mxu0
    %v1631 = vadd.f32 %v1035, %v1630
    %1632 = vmatmul.f32.gmra.mxu0 %v784
    %v1633 = vpop.f32.mrf.mxu0
    %v1634 = vadd.f32 %v1035, %v1633
    %1635 = vmatmul.f32.gmra.mxu0 %v788
    %v1636 = vpop.f32.mrf.mxu0
    %v1637 = vadd.f32 %v1035, %v1636
    %1638 = vmatmul.f32.gmra.mxu0 %v792
    %v1639 = vpop.f32.mrf.mxu0
    %v1640 = vadd.f32 %v1035, %v1639
    %1641 = vmatmul.f32.gmra.mxu0 %v796
    %v1642 = vpop.f32.mrf.mxu0
    %v1643 = vadd.f32 %v1035, %v1642
    %1644 = vmatmul.f32.gmra.mxu0 %v800
    %v1645 = vpop.f32.mrf.mxu0
    %v1646 = vadd.f32 %v1035, %v1645
    %1647 = vmatmul.f32.gmra.mxu0 %v804
    %v1648 = vpop.f32.mrf.mxu0
    %v1649 = vadd.f32 %v1035, %v1648
    %1650 = vmatmul.f32.gmra.mxu0 %v808
    %v1651 = vpop.f32.mrf.mxu0
    %v1652 = vadd.f32 %v1035, %v1651
    %1653 = vmatmul.f32.gmra.mxu0 %v812
    %v1654 = vpop.f32.mrf.mxu0
    %v1655 = vadd.f32 %v1035, %v1654
    %1656 = vmatmul.f32.gmra.mxu0 %v816
    %v1657 = vpop.f32.mrf.mxu0
    %v1658 = vadd.f32 %v1035, %v1657
    %1659 = vmatmul.f32.gmra.mxu0 %v820
    %v1660 = vpop.f32.mrf.mxu0
    %v1661 = vadd.f32 %v1035, %v1660
    %1662 = vmatmul.f32.gmra.mxu0 %v824
    %v1663 = vpop.f32.mrf.mxu0
    %v1664 = vadd.f32 %v1035, %v1663
    %1665 = vmatmul.f32.gmra.mxu0 %v828
    %v1666 = vpop.f32.mrf.mxu0
    %v1667 = vadd.f32 %v1035, %v1666
    %1668 = vmatmul.f32.gmra.mxu0 %v832
    %v1669 = vpop.f32.mrf.mxu0
    %v1670 = vadd.f32 %v1035, %v1669
    %1671 = vmatmul.f32.gmra.mxu0 %v836
    %v1672 = vpop.f32.mrf.mxu0
    %v1673 = vadd.f32 %v1035, %v1672
    %1674 = vmatmul.f32.gmra.mxu0 %v840
    %v1675 = vpop.f32.mrf.mxu0
    %v1676 = vadd.f32 %v1035, %v1675
    %1677 = vmatmul.f32.gmra.mxu0 %v844
    %v1678 = vpop.f32.mrf.mxu0
    %v1679 = vadd.f32 %v1035, %v1678
    %1680 = vmatmul.f32.gmra.mxu0 %v848
    %v1681 = vpop.f32.mrf.mxu0
    %v1682 = vadd.f32 %v1035, %v1681
    %1683 = vmatmul.f32.gmra.mxu0 %v852
    %v1684 = vpop.f32.mrf.mxu0
    %v1685 = vadd.f32 %v1035, %v1684
    %1686 = vmatmul.f32.gmra.mxu0 %v856
    %v1687 = vpop.f32.mrf.mxu0
    %v1688 = vadd.f32 %v1035, %v1687
    %1689 = vmatmul.f32.gmra.mxu0 %v860
    %v1690 = vpop.f32.mrf.mxu0
    %v1691 = vadd.f32 %v1035, %v1690
    %1692 = vmatmul.f32.gmra.mxu0 %v864
    %v1693 = vpop.f32.mrf.mxu0
    %v1694 = vadd.f32 %v1035, %v1693
    %1695 = vmatmul.f32.gmra.mxu0 %v868
    %v1696 = vpop.f32.mrf.mxu0
    %v1697 = vadd.f32 %v1035, %v1696
    %1698 = vmatmul.f32.gmra.mxu0 %v872
    %v1699 = vpop.f32.mrf.mxu0
    %v1700 = vadd.f32 %v1035, %v1699
    %1701 = vmatmul.f32.gmra.mxu0 %v876
    %v1702 = vpop.f32.mrf.mxu0
    %v1703 = vadd.f32 %v1035, %v1702
    %1704 = vmatmul.f32.gmra.mxu0 %v880
    %v1705 = vpop.f32.mrf.mxu0
    %v1706 = vadd.f32 %v1035, %v1705
    %1707 = vmatmul.f32.gmra.mxu0 %v884
    %v1708 = vpop.f32.mrf.mxu0
    %v1709 = vadd.f32 %v1035, %v1708
    %1710 = vmatmul.f32.gmra.mxu0 %v888
    %v1711 = vpop.f32.mrf.mxu0
    %v1712 = vadd.f32 %v1035, %v1711
    %1713 = vmatmul.f32.gmra.mxu0 %v892
    %v1714 = vpop.f32.mrf.mxu0
    %v1715 = vadd.f32 %v1035, %v1714
    %1716 = vmatmul.f32.gmra.mxu0 %v896
    %v1717 = vpop.f32.mrf.mxu0
    %v1718 = vadd.f32 %v1035, %v1717
    %1719 = vmatmul.f32.gmra.mxu0 %v900
    %v1720 = vpop.f32.mrf.mxu0
    %v1721 = vadd.f32 %v1035, %v1720
    %1722 = vdwg.mxu0
    %1723 = vmatpush.msra.mxu0 %v967
    %1724 = vmatpush.msra.mxu0 %v965
    %1725 = vmatpush.msra.mxu0 %v963
    %1726 = vmatpush.msra.mxu0 %v961
    %1727 = vmatpush.msra.mxu0 %v959
    %1728 = vmatpush.msra.mxu0 %v957
    %1729 = vmatpush.msra.mxu0 %v955
    %1730 = vmatpush.msra.mxu0 %v953
    %1731 = vmatpush.msra.mxu0 %v951
    %1732 = vmatpush.msra.mxu0 %v949
    %1733 = vmatpush.msra.mxu0 %v947
    %1734 = vmatpush.msra.mxu0 %v945
    %1735 = vmatpush.msra.mxu0 %v943
    %1736 = vmatpush.msra.mxu0 %v941
    %1737 = vmatpush.msra.mxu0 %v939
    %1738 = vmatpush.msra.mxu0 %v937
    %1739 = vmatmul.f32.gmra.mxu0 %v745
    %v1740 = vpop.f32.mrf.mxu0
    %v1741 = vadd.f32 %v1604, %v1740
    %1742 = vmatmul.f32.gmra.mxu0 %v749
    %v1743 = vpop.f32.mrf.mxu0
    %v1744 = vadd.f32 %v1607, %v1743
    %1745 = vmatmul.f32.gmra.mxu0 %v753
    %v1746 = vpop.f32.mrf.mxu0
    %v1747 = vadd.f32 %v1610, %v1746
    %1748 = vmatmul.f32.gmra.mxu0 %v757
    %v1749 = vpop.f32.mrf.mxu0
    %v1750 = vadd.f32 %v1613, %v1749
    %1751 = vmatmul.f32.gmra.mxu0 %v761
    %v1752 = vpop.f32.mrf.mxu0
    %v1753 = vadd.f32 %v1616, %v1752
    %1754 = vmatmul.f32.gmra.mxu0 %v765
    %v1755 = vpop.f32.mrf.mxu0
    %v1756 = vadd.f32 %v1619, %v1755
    %1757 = vmatmul.f32.gmra.mxu0 %v769
    %v1758 = vpop.f32.mrf.mxu0
    %v1759 = vadd.f32 %v1622, %v1758
    %1760 = vmatmul.f32.gmra.mxu0 %v773
    %v1761 = vpop.f32.mrf.mxu0
    %v1762 = vadd.f32 %v1625, %v1761
    %1763 = vmatmul.f32.gmra.mxu0 %v777
    %v1764 = vpop.f32.mrf.mxu0
    %v1765 = vadd.f32 %v1628, %v1764
    %1766 = vmatmul.f32.gmra.mxu0 %v781
    %v1767 = vpop.f32.mrf.mxu0
    %v1768 = vadd.f32 %v1631, %v1767
    %1769 = vmatmul.f32.gmra.mxu0 %v785
    %v1770 = vpop.f32.mrf.mxu0
    %v1771 = vadd.f32 %v1634, %v1770
    %1772 = vmatmul.f32.gmra.mxu0 %v789
    %v1773 = vpop.f32.mrf.mxu0
    %v1774 = vadd.f32 %v1637, %v1773
    %1775 = vmatmul.f32.gmra.mxu0 %v793
    %v1776 = vpop.f32.mrf.mxu0
    %v1777 = vadd.f32 %v1640, %v1776
    %1778 = vmatmul.f32.gmra.mxu0 %v797
    %v1779 = vpop.f32.mrf.mxu0
    %v1780 = vadd.f32 %v1643, %v1779
    %1781 = vmatmul.f32.gmra.mxu0 %v801
    %v1782 = vpop.f32.mrf.mxu0
    %v1783 = vadd.f32 %v1646, %v1782
    %1784 = vmatmul.f32.gmra.mxu0 %v805
    %v1785 = vpop.f32.mrf.mxu0
    %v1786 = vadd.f32 %v1649, %v1785
    %1787 = vmatmul.f32.gmra.mxu0 %v809
    %v1788 = vpop.f32.mrf.mxu0
    %v1789 = vadd.f32 %v1652, %v1788
    %1790 = vmatmul.f32.gmra.mxu0 %v813
    %v1791 = vpop.f32.mrf.mxu0
    %v1792 = vadd.f32 %v1655, %v1791
    %1793 = vmatmul.f32.gmra.mxu0 %v817
    %v1794 = vpop.f32.mrf.mxu0
    %v1795 = vadd.f32 %v1658, %v1794
    %1796 = vmatmul.f32.gmra.mxu0 %v821
    %v1797 = vpop.f32.mrf.mxu0
    %v1798 = vadd.f32 %v1661, %v1797
    %1799 = vmatmul.f32.gmra.mxu0 %v825
    %v1800 = vpop.f32.mrf.mxu0
    %v1801 = vadd.f32 %v1664, %v1800
    %1802 = vmatmul.f32.gmra.mxu0 %v829
    %v1803 = vpop.f32.mrf.mxu0
    %v1804 = vadd.f32 %v1667, %v1803
    %1805 = vmatmul.f32.gmra.mxu0 %v833
    %v1806 = vpop.f32.mrf.mxu0
    %v1807 = vadd.f32 %v1670, %v1806
    %1808 = vmatmul.f32.gmra.mxu0 %v837
    %v1809 = vpop.f32.mrf.mxu0
    %v1810 = vadd.f32 %v1673, %v1809
    %1811 = vmatmul.f32.gmra.mxu0 %v841
    %v1812 = vpop.f32.mrf.mxu0
    %v1813 = vadd.f32 %v1676, %v1812
    %1814 = vmatmul.f32.gmra.mxu0 %v845
    %v1815 = vpop.f32.mrf.mxu0
    %v1816 = vadd.f32 %v1679, %v1815
    %1817 = vmatmul.f32.gmra.mxu0 %v849
    %v1818 = vpop.f32.mrf.mxu0
    %v1819 = vadd.f32 %v1682, %v1818
    %1820 = vmatmul.f32.gmra.mxu0 %v853
    %v1821 = vpop.f32.mrf.mxu0
    %v1822 = vadd.f32 %v1685, %v1821
    %1823 = vmatmul.f32.gmra.mxu0 %v857
    %v1824 = vpop.f32.mrf.mxu0
    %v1825 = vadd.f32 %v1688, %v1824
    %1826 = vmatmul.f32.gmra.mxu0 %v861
    %v1827 = vpop.f32.mrf.mxu0
    %v1828 = vadd.f32 %v1691, %v1827
    %1829 = vmatmul.f32.gmra.mxu0 %v865
    %v1830 = vpop.f32.mrf.mxu0
    %v1831 = vadd.f32 %v1694, %v1830
    %1832 = vmatmul.f32.gmra.mxu0 %v869
    %v1833 = vpop.f32.mrf.mxu0
    %v1834 = vadd.f32 %v1697, %v1833
    %1835 = vmatmul.f32.gmra.mxu0 %v873
    %v1836 = vpop.f32.mrf.mxu0
    %v1837 = vadd.f32 %v1700, %v1836
    %1838 = vmatmul.f32.gmra.mxu0 %v877
    %v1839 = vpop.f32.mrf.mxu0
    %v1840 = vadd.f32 %v1703, %v1839
    %1841 = vmatmul.f32.gmra.mxu0 %v881
    %v1842 = vpop.f32.mrf.mxu0
    %v1843 = vadd.f32 %v1706, %v1842
    %1844 = vmatmul.f32.gmra.mxu0 %v885
    %v1845 = vpop.f32.mrf.mxu0
    %v1846 = vadd.f32 %v1709, %v1845
    %1847 = vmatmul.f32.gmra.mxu0 %v889
    %v1848 = vpop.f32.mrf.mxu0
    %v1849 = vadd.f32 %v1712, %v1848
    %1850 = vmatmul.f32.gmra.mxu0 %v893
    %v1851 = vpop.f32.mrf.mxu0
    %v1852 = vadd.f32 %v1715, %v1851
    %1853 = vmatmul.f32.gmra.mxu0 %v897
    %v1854 = vpop.f32.mrf.mxu0
    %v1855 = vadd.f32 %v1718, %v1854
    %1856 = vmatmul.f32.gmra.mxu0 %v901
    %v1857 = vpop.f32.mrf.mxu0
    %v1858 = vadd.f32 %v1721, %v1857
    %1859 = vdwg.mxu0
    %1860 = vmatpush.msra.mxu0 %v999
    %1861 = vmatpush.msra.mxu0 %v997
    %1862 = vmatpush.msra.mxu0 %v995
    %1863 = vmatpush.msra.mxu0 %v993
    %1864 = vmatpush.msra.mxu0 %v991
    %1865 = vmatpush.msra.mxu0 %v989
    %1866 = vmatpush.msra.mxu0 %v987
    %1867 = vmatpush.msra.mxu0 %v985
    %1868 = vmatpush.msra.mxu0 %v983
    %1869 = vmatpush.msra.mxu0 %v981
    %1870 = vmatpush.msra.mxu0 %v979
    %1871 = vmatpush.msra.mxu0 %v977
    %1872 = vmatpush.msra.mxu0 %v975
    %1873 = vmatpush.msra.mxu0 %v973
    %1874 = vmatpush.msra.mxu0 %v971
    %1875 = vmatpush.msra.mxu0 %v969
    %1876 = vmatmul.f32.gmra.mxu0 %v746
    %v1877 = vpop.f32.mrf.mxu0
    %v1878 = vadd.f32 %v1741, %v1877
    %1879 = vmatmul.f32.gmra.mxu0 %v750
    %v1880 = vpop.f32.mrf.mxu0
    %v1881 = vadd.f32 %v1744, %v1880
    %1882 = vmatmul.f32.gmra.mxu0 %v754
    %v1883 = vpop.f32.mrf.mxu0
    %v1884 = vadd.f32 %v1747, %v1883
    %1885 = vmatmul.f32.gmra.mxu0 %v758
    %v1886 = vpop.f32.mrf.mxu0
    %v1887 = vadd.f32 %v1750, %v1886
    %1888 = vmatmul.f32.gmra.mxu0 %v762
    %v1889 = vpop.f32.mrf.mxu0
    %v1890 = vadd.f32 %v1753, %v1889
    %1891 = vmatmul.f32.gmra.mxu0 %v766
    %v1892 = vpop.f32.mrf.mxu0
    %v1893 = vadd.f32 %v1756, %v1892
    %1894 = vmatmul.f32.gmra.mxu0 %v770
    %v1895 = vpop.f32.mrf.mxu0
    %v1896 = vadd.f32 %v1759, %v1895
    %1897 = vmatmul.f32.gmra.mxu0 %v774
    %v1898 = vpop.f32.mrf.mxu0
    %v1899 = vadd.f32 %v1762, %v1898
    %1900 = vmatmul.f32.gmra.mxu0 %v778
    %v1901 = vpop.f32.mrf.mxu0
    %v1902 = vadd.f32 %v1765, %v1901
    %1903 = vmatmul.f32.gmra.mxu0 %v782
    %v1904 = vpop.f32.mrf.mxu0
    %v1905 = vadd.f32 %v1768, %v1904
    %1906 = vmatmul.f32.gmra.mxu0 %v786
    %v1907 = vpop.f32.mrf.mxu0
    %v1908 = vadd.f32 %v1771, %v1907
    %1909 = vmatmul.f32.gmra.mxu0 %v790
    %v1910 = vpop.f32.mrf.mxu0
    %v1911 = vadd.f32 %v1774, %v1910
    %1912 = vmatmul.f32.gmra.mxu0 %v794
    %v1913 = vpop.f32.mrf.mxu0
    %v1914 = vadd.f32 %v1777, %v1913
    %1915 = vmatmul.f32.gmra.mxu0 %v798
    %v1916 = vpop.f32.mrf.mxu0
    %v1917 = vadd.f32 %v1780, %v1916
    %1918 = vmatmul.f32.gmra.mxu0 %v802
    %v1919 = vpop.f32.mrf.mxu0
    %v1920 = vadd.f32 %v1783, %v1919
    %1921 = vmatmul.f32.gmra.mxu0 %v806
    %v1922 = vpop.f32.mrf.mxu0
    %v1923 = vadd.f32 %v1786, %v1922
    %1924 = vmatmul.f32.gmra.mxu0 %v810
    %v1925 = vpop.f32.mrf.mxu0
    %v1926 = vadd.f32 %v1789, %v1925
    %1927 = vmatmul.f32.gmra.mxu0 %v814
    %v1928 = vpop.f32.mrf.mxu0
    %v1929 = vadd.f32 %v1792, %v1928
    %1930 = vmatmul.f32.gmra.mxu0 %v818
    %v1931 = vpop.f32.mrf.mxu0
    %v1932 = vadd.f32 %v1795, %v1931
    %1933 = vmatmul.f32.gmra.mxu0 %v822
    %v1934 = vpop.f32.mrf.mxu0
    %v1935 = vadd.f32 %v1798, %v1934
    %1936 = vmatmul.f32.gmra.mxu0 %v826
    %v1937 = vpop.f32.mrf.mxu0
    %v1938 = vadd.f32 %v1801, %v1937
    %1939 = vmatmul.f32.gmra.mxu0 %v830
    %v1940 = vpop.f32.mrf.mxu0
    %v1941 = vadd.f32 %v1804, %v1940
    %1942 = vmatmul.f32.gmra.mxu0 %v834
    %v1943 = vpop.f32.mrf.mxu0
    %v1944 = vadd.f32 %v1807, %v1943
    %1945 = vmatmul.f32.gmra.mxu0 %v838
    %v1946 = vpop.f32.mrf.mxu0
    %v1947 = vadd.f32 %v1810, %v1946
    %1948 = vmatmul.f32.gmra.mxu0 %v842
    %v1949 = vpop.f32.mrf.mxu0
    %v1950 = vadd.f32 %v1813, %v1949
    %1951 = vmatmul.f32.gmra.mxu0 %v846
    %v1952 = vpop.f32.mrf.mxu0
    %v1953 = vadd.f32 %v1816, %v1952
    %1954 = vmatmul.f32.gmra.mxu0 %v850
    %v1955 = vpop.f32.mrf.mxu0
    %v1956 = vadd.f32 %v1819, %v1955
    %1957 = vmatmul.f32.gmra.mxu0 %v854
    %v1958 = vpop.f32.mrf.mxu0
    %v1959 = vadd.f32 %v1822, %v1958
    %1960 = vmatmul.f32.gmra.mxu0 %v858
    %v1961 = vpop.f32.mrf.mxu0
    %v1962 = vadd.f32 %v1825, %v1961
    %1963 = vmatmul.f32.gmra.mxu0 %v862
    %v1964 = vpop.f32.mrf.mxu0
    %v1965 = vadd.f32 %v1828, %v1964
    %1966 = vmatmul.f32.gmra.mxu0 %v866
    %v1967 = vpop.f32.mrf.mxu0
    %v1968 = vadd.f32 %v1831, %v1967
    %1969 = vmatmul.f32.gmra.mxu0 %v870
    %v1970 = vpop.f32.mrf.mxu0
    %v1971 = vadd.f32 %v1834, %v1970
    %1972 = vmatmul.f32.gmra.mxu0 %v874
    %v1973 = vpop.f32.mrf.mxu0
    %v1974 = vadd.f32 %v1837, %v1973
    %1975 = vmatmul.f32.gmra.mxu0 %v878
    %v1976 = vpop.f32.mrf.mxu0
    %v1977 = vadd.f32 %v1840, %v1976
    %1978 = vmatmul.f32.gmra.mxu0 %v882
    %v1979 = vpop.f32.mrf.mxu0
    %v1980 = vadd.f32 %v1843, %v1979
    %1981 = vmatmul.f32.gmra.mxu0 %v886
    %v1982 = vpop.f32.mrf.mxu0
    %v1983 = vadd.f32 %v1846, %v1982
    %1984 = vmatmul.f32.gmra.mxu0 %v890
    %v1985 = vpop.f32.mrf.mxu0
    %v1986 = vadd.f32 %v1849, %v1985
    %1987 = vmatmul.f32.gmra.mxu0 %v894
    %v1988 = vpop.f32.mrf.mxu0
    %v1989 = vadd.f32 %v1852, %v1988
    %1990 = vmatmul.f32.gmra.mxu0 %v898
    %v1991 = vpop.f32.mrf.mxu0
    %v1992 = vadd.f32 %v1855, %v1991
    %1993 = vmatmul.f32.gmra.mxu0 %v902
    %v1994 = vpop.f32.mrf.mxu0
    %v1995 = vadd.f32 %v1858, %v1994
    %1996 = vdwg.mxu0
    %1997 = vmatpush.msra.mxu0 %v1031
    %1998 = vmatpush.msra.mxu0 %v1029
    %1999 = vmatpush.msra.mxu0 %v1027
    %2000 = vmatpush.msra.mxu0 %v1025
    %2001 = vmatpush.msra.mxu0 %v1023
    %2002 = vmatpush.msra.mxu0 %v1021
    %2003 = vmatpush.msra.mxu0 %v1019
    %2004 = vmatpush.msra.mxu0 %v1017
    %2005 = vmatpush.msra.mxu0 %v1015
    %2006 = vmatpush.msra.mxu0 %v1013
    %2007 = vmatpush.msra.mxu0 %v1011
    %2008 = vmatpush.msra.mxu0 %v1009
    %2009 = vmatpush.msra.mxu0 %v1007
    %2010 = vmatpush.msra.mxu0 %v1005
    %2011 = vmatpush.msra.mxu0 %v1003
    %2012 = vmatpush.msra.mxu0 %v1001
    %2013 = vmatmul.f32.gmra.mxu0 %v747
    %v2014 = vpop.f32.mrf.mxu0
    %v2015 = vadd.f32 %v1878, %v2014
    %2016 = vmatmul.f32.gmra.mxu0 %v751
    %v2017 = vpop.f32.mrf.mxu0
    %v2018 = vadd.f32 %v1881, %v2017
    %2019 = vmatmul.f32.gmra.mxu0 %v755
    %v2020 = vpop.f32.mrf.mxu0
    %v2021 = vadd.f32 %v1884, %v2020
    %2022 = vmatmul.f32.gmra.mxu0 %v759
    %v2023 = vpop.f32.mrf.mxu0
    %v2024 = vadd.f32 %v1887, %v2023
    %2025 = vmatmul.f32.gmra.mxu0 %v763
    %v2026 = vpop.f32.mrf.mxu0
    %v2027 = vadd.f32 %v1890, %v2026
    %2028 = vmatmul.f32.gmra.mxu0 %v767
    %v2029 = vpop.f32.mrf.mxu0
    %v2030 = vadd.f32 %v1893, %v2029
    %2031 = vmatmul.f32.gmra.mxu0 %v771
    %v2032 = vpop.f32.mrf.mxu0
    %v2033 = vadd.f32 %v1896, %v2032
    %2034 = vmatmul.f32.gmra.mxu0 %v775
    %v2035 = vpop.f32.mrf.mxu0
    %v2036 = vadd.f32 %v1899, %v2035
    %2037 = vmatmul.f32.gmra.mxu0 %v779
    %v2038 = vpop.f32.mrf.mxu0
    %v2039 = vadd.f32 %v1902, %v2038
    %2040 = vmatmul.f32.gmra.mxu0 %v783
    %v2041 = vpop.f32.mrf.mxu0
    %v2042 = vadd.f32 %v1905, %v2041
    %2043 = vmatmul.f32.gmra.mxu0 %v787
    %v2044 = vpop.f32.mrf.mxu0
    %v2045 = vadd.f32 %v1908, %v2044
    %2046 = vmatmul.f32.gmra.mxu0 %v791
    %v2047 = vpop.f32.mrf.mxu0
    %v2048 = vadd.f32 %v1911, %v2047
    %2049 = vmatmul.f32.gmra.mxu0 %v795
    %v2050 = vpop.f32.mrf.mxu0
    %v2051 = vadd.f32 %v1914, %v2050
    %2052 = vmatmul.f32.gmra.mxu0 %v799
    %v2053 = vpop.f32.mrf.mxu0
    %v2054 = vadd.f32 %v1917, %v2053
    %2055 = vmatmul.f32.gmra.mxu0 %v803
    %v2056 = vpop.f32.mrf.mxu0
    %v2057 = vadd.f32 %v1920, %v2056
    %2058 = vmatmul.f32.gmra.mxu0 %v807
    %v2059 = vpop.f32.mrf.mxu0
    %v2060 = vadd.f32 %v1923, %v2059
    %2061 = vmatmul.f32.gmra.mxu0 %v811
    %v2062 = vpop.f32.mrf.mxu0
    %v2063 = vadd.f32 %v1926, %v2062
    %2064 = vmatmul.f32.gmra.mxu0 %v815
    %v2065 = vpop.f32.mrf.mxu0
    %v2066 = vadd.f32 %v1929, %v2065
    %2067 = vmatmul.f32.gmra.mxu0 %v819
    %v2068 = vpop.f32.mrf.mxu0
    %v2069 = vadd.f32 %v1932, %v2068
    %2070 = vmatmul.f32.gmra.mxu0 %v823
    %v2071 = vpop.f32.mrf.mxu0
    %v2072 = vadd.f32 %v1935, %v2071
    %2073 = vmatmul.f32.gmra.mxu0 %v827
    %v2074 = vpop.f32.mrf.mxu0
    %v2075 = vadd.f32 %v1938, %v2074
    %2076 = vmatmul.f32.gmra.mxu0 %v831
    %v2077 = vpop.f32.mrf.mxu0
    %v2078 = vadd.f32 %v1941, %v2077
    %2079 = vmatmul.f32.gmra.mxu0 %v835
    %v2080 = vpop.f32.mrf.mxu0
    %v2081 = vadd.f32 %v1944, %v2080
    %2082 = vmatmul.f32.gmra.mxu0 %v839
    %v2083 = vpop.f32.mrf.mxu0
    %v2084 = vadd.f32 %v1947, %v2083
    %2085 = vmatmul.f32.gmra.mxu0 %v843
    %v2086 = vpop.f32.mrf.mxu0
    %v2087 = vadd.f32 %v1950, %v2086
    %2088 = vmatmul.f32.gmra.mxu0 %v847
    %v2089 = vpop.f32.mrf.mxu0
    %v2090 = vadd.f32 %v1953, %v2089
    %2091 = vmatmul.f32.gmra.mxu0 %v851
    %v2092 = vpop.f32.mrf.mxu0
    %v2093 = vadd.f32 %v1956, %v2092
    %2094 = vmatmul.f32.gmra.mxu0 %v855
    %v2095 = vpop.f32.mrf.mxu0
    %v2096 = vadd.f32 %v1959, %v2095
    %2097 = vmatmul.f32.gmra.mxu0 %v859
    %v2098 = vpop.f32.mrf.mxu0
    %v2099 = vadd.f32 %v1962, %v2098
    %2100 = vmatmul.f32.gmra.mxu0 %v863
    %v2101 = vpop.f32.mrf.mxu0
    %v2102 = vadd.f32 %v1965, %v2101
    %2103 = vmatmul.f32.gmra.mxu0 %v867
    %v2104 = vpop.f32.mrf.mxu0
    %v2105 = vadd.f32 %v1968, %v2104
    %2106 = vmatmul.f32.gmra.mxu0 %v871
    %v2107 = vpop.f32.mrf.mxu0
    %v2108 = vadd.f32 %v1971, %v2107
    %2109 = vmatmul.f32.gmra.mxu0 %v875
    %v2110 = vpop.f32.mrf.mxu0
    %v2111 = vadd.f32 %v1974, %v2110
    %2112 = vmatmul.f32.gmra.mxu0 %v879
    %v2113 = vpop.f32.mrf.mxu0
    %v2114 = vadd.f32 %v1977, %v2113
    %2115 = vmatmul.f32.gmra.mxu0 %v883
    %v2116 = vpop.f32.mrf.mxu0
    %v2117 = vadd.f32 %v1980, %v2116
    %2118 = vmatmul.f32.gmra.mxu0 %v887
    %v2119 = vpop.f32.mrf.mxu0
    %v2120 = vadd.f32 %v1983, %v2119
    %2121 = vmatmul.f32.gmra.mxu0 %v891
    %v2122 = vpop.f32.mrf.mxu0
    %v2123 = vadd.f32 %v1986, %v2122
    %2124 = vmatmul.f32.gmra.mxu0 %v895
    %v2125 = vpop.f32.mrf.mxu0
    %v2126 = vadd.f32 %v1989, %v2125
    %2127 = vmatmul.f32.gmra.mxu0 %v899
    %v2128 = vpop.f32.mrf.mxu0
    %v2129 = vadd.f32 %v1992, %v2128
    %2130 = vmatmul.f32.gmra.mxu0 %v903
    %v2131 = vpop.f32.mrf.mxu0
    %v2132 = vadd.f32 %v1995, %v2131
    %2133 = vdwg.mxu0
    %2134 = vst [vmem:[#allocation10] sm:$0xff] %v1467
    %2135 = vst [vmem:[#allocation10 + $0x8] sm:$0xff] %v2015
    %2136 = vst [vmem:[#allocation10 + $0x10] sm:$0xff] %v1470
    %2137 = vst [vmem:[#allocation10 + $0x18] sm:$0xff] %v2018
    %2138 = vst [vmem:[#allocation10 + $0x20] sm:$0xff] %v1473
    %2139 = vst [vmem:[#allocation10 + $0x28] sm:$0xff] %v2021
    %2140 = vst [vmem:[#allocation10 + $0x30] sm:$0xff] %v1476
    %2141 = vst [vmem:[#allocation10 + $0x38] sm:$0xff] %v2024
    %2142 = vst [vmem:[#allocation10 + $0x40] sm:$0xff] %v1479
    %2143 = vst [vmem:[#allocation10 + $0x48] sm:$0xff] %v2027
    %2144 = vst [vmem:[#allocation10 + $0x50] sm:$0xff] %v1482
    %2145 = vst [vmem:[#allocation10 + $0x58] sm:$0xff] %v2030
    %2146 = vst [vmem:[#allocation10 + $0x60] sm:$0xff] %v1485
    %2147 = vst [vmem:[#allocation10 + $0x68] sm:$0xff] %v2033
    %2148 = vst [vmem:[#allocation10 + $0x70] sm:$0xff] %v1488
    %2149 = vst [vmem:[#allocation10 + $0x78] sm:$0xff] %v2036
    %2150 = vst [vmem:[#allocation10 + $0x80] sm:$0xff] %v1491
    %2151 = vst [vmem:[#allocation10 + $0x88] sm:$0xff] %v2039
    %2152 = vst [vmem:[#allocation10 + $0x90] sm:$0xff] %v1494
    %2153 = vst [vmem:[#allocation10 + $0x98] sm:$0xff] %v2042
    %2154 = vst [vmem:[#allocation10 + $0xa0] sm:$0xff] %v1497
    %2155 = vst [vmem:[#allocation10 + $0xa8] sm:$0xff] %v2045
    %2156 = vst [vmem:[#allocation10 + $0xb0] sm:$0xff] %v1500
    %2157 = vst [vmem:[#allocation10 + $0xb8] sm:$0xff] %v2048
    %2158 = vst [vmem:[#allocation10 + $0xc0] sm:$0xff] %v1503
    %2159 = vst [vmem:[#allocation10 + $0xc8] sm:$0xff] %v2051
    %2160 = vst [vmem:[#allocation10 + $0xd0] sm:$0xff] %v1506
    %2161 = vst [vmem:[#allocation10 + $0xd8] sm:$0xff] %v2054
    %2162 = vst [vmem:[#allocation10 + $0xe0] sm:$0xff] %v1509
    %2163 = vst [vmem:[#allocation10 + $0xe8] sm:$0xff] %v2057
    %2164 = vst [vmem:[#allocation10 + $0xf0] sm:$0xff] %v1512
    %2165 = vst [vmem:[#allocation10 + $0xf8] sm:$0xff] %v2060
    %2166 = vst [vmem:[#allocation10 + $0x100] sm:$0xff] %v1515
    %2167 = vst [vmem:[#allocation10 + $0x108] sm:$0xff] %v2063
    %2168 = vst [vmem:[#allocation10 + $0x110] sm:$0xff] %v1518
    %2169 = vst [vmem:[#allocation10 + $0x118] sm:$0xff] %v2066
    %2170 = vst [vmem:[#allocation10 + $0x120] sm:$0xff] %v1521
    %2171 = vst [vmem:[#allocation10 + $0x128] sm:$0xff] %v2069
    %2172 = vst [vmem:[#allocation10 + $0x130] sm:$0xff] %v1524
    %2173 = vst [vmem:[#allocation10 + $0x138] sm:$0xff] %v2072
    %2174 = vst [vmem:[#allocation10 + $0x140] sm:$0xff] %v1527
    %2175 = vst [vmem:[#allocation10 + $0x148] sm:$0xff] %v2075
    %2176 = vst [vmem:[#allocation10 + $0x150] sm:$0xff] %v1530
    %2177 = vst [vmem:[#allocation10 + $0x158] sm:$0xff] %v2078
    %2178 = vst [vmem:[#allocation10 + $0x160] sm:$0xff] %v1533
    %2179 = vst [vmem:[#allocation10 + $0x168] sm:$0xff] %v2081
    %2180 = vst [vmem:[#allocation10 + $0x170] sm:$0xff] %v1536
    %2181 = vst [vmem:[#allocation10 + $0x178] sm:$0xff] %v2084
    %2182 = vst [vmem:[#allocation10 + $0x180] sm:$0xff] %v1539
    %2183 = vst [vmem:[#allocation10 + $0x188] sm:$0xff] %v2087
    %2184 = vst [vmem:[#allocation10 + $0x190] sm:$0xff] %v1542
    %2185 = vst [vmem:[#allocation10 + $0x198] sm:$0xff] %v2090
    %2186 = vst [vmem:[#allocation10 + $0x1a0] sm:$0xff] %v1545
    %2187 = vst [vmem:[#allocation10 + $0x1a8] sm:$0xff] %v2093
    %2188 = vst [vmem:[#allocation10 + $0x1b0] sm:$0xff] %v1548
    %2189 = vst [vmem:[#allocation10 + $0x1b8] sm:$0xff] %v2096
    %2190 = vst [vmem:[#allocation10 + $0x1c0] sm:$0xff] %v1551
    %2191 = vst [vmem:[#allocation10 + $0x1c8] sm:$0xff] %v2099
    %2192 = vst [vmem:[#allocation10 + $0x1d0] sm:$0xff] %v1554
    %2193 = vst [vmem:[#allocation10 + $0x1d8] sm:$0xff] %v2102
    %2194 = vst [vmem:[#allocation10 + $0x1e0] sm:$0xff] %v1557
    %2195 = vst [vmem:[#allocation10 + $0x1e8] sm:$0xff] %v2105
    %2196 = vst [vmem:[#allocation10 + $0x1f0] sm:$0xff] %v1560
    %2197 = vst [vmem:[#allocation10 + $0x1f8] sm:$0xff] %v2108
    %2198 = vst [vmem:[#allocation10 + $0x200] sm:$0xff] %v1563
    %2199 = vst [vmem:[#allocation10 + $0x208] sm:$0xff] %v2111
    %2200 = vst [vmem:[#allocation10 + $0x210] sm:$0xff] %v1566
    %2201 = vst [vmem:[#allocation10 + $0x218] sm:$0xff] %v2114
    %2202 = vst [vmem:[#allocation10 + $0x220] sm:$0xff] %v1569
    %2203 = vst [vmem:[#allocation10 + $0x228] sm:$0xff] %v2117
    %2204 = vst [vmem:[#allocation10 + $0x230] sm:$0xff] %v1572
    %2205 = vst [vmem:[#allocation10 + $0x238] sm:$0xff] %v2120
    %2206 = vst [vmem:[#allocation10 + $0x240] sm:$0xff] %v1575
    %2207 = vst [vmem:[#allocation10 + $0x248] sm:$0xff] %v2123
    %2208 = vst [vmem:[#allocation10 + $0x250] sm:$0xff] %v1578
    %2209 = vst [vmem:[#allocation10 + $0x258] sm:$0xff] %v2126
    %2210 = vst [vmem:[#allocation10 + $0x260] sm:$0xff] %v1581
    %2211 = vst [vmem:[#allocation10 + $0x268] sm:$0xff] %v2129
    %2212 = vst [vmem:[#allocation10 + $0x270] sm:$0x1] %v1584
    %2213 = vst [vmem:[#allocation10 + $0x278] sm:$0x1] %v2132
    // Predicated region
    $region38: #{tpu_custom_call.1} parent=1 // pred_check
      _
    $region39: #{tpu_custom_call.1} parent=1 // pred_check_branch
      %2215 = sbr.rel (0) target = $region41
    $region40: #{tpu_custom_call.1} parent=1 // pred_region
      %2217 = vsyncadd [#allocation4], 0
      %s2218 = sshll.u32 [#allocation10], 4
      %s2219 = int_to_ptr.vmem [resolvable:$true] %s2218
      %s2220 = sshll.u32 %s5, 4
      %s2221 = int_to_ptr.hbm [resolvable:$true] %s2220
      %2226 = dma.vmem_to_hbm [thread:$0]  %s2219, 10240, %s2221, [#allocation4], 256, 256, 16
    $region41: #{tpu_custom_call.1} parent=1 // pred_fallthru
      _
    // Predicated region
    $region42: #{tpu_custom_call.1} parent=1 // pred_check
      _
    $region43: #{tpu_custom_call.1} parent=1 // pred_check_branch
      %2228 = sbr.rel (0) target = $region45
    $region44: #{tpu_custom_call.1} parent=1 // pred_region
      %2230 = dma.done [#allocation4], 10240
    $region45: #{tpu_custom_call.1} parent=1 // pred_fallthru
      _
    %2231 = vsyncpa [#allocation3], 1
    %2232 = vsyncpa [#allocation6], 1
    %2233 = vsyncpa [#allocation9], 1
    %2234 = vsyncpa [#allocation4], 1

// kernel: tpu_custom_call.1
$region0: #{tpu_custom_call.1}
  #allocation0 [shape = 'u32[]', space=smem, size = 0x4, offset = 0x4, fixed_abs, tag = 'smem constant byte address 0x4 - core index']
  #allocation1 [shape = 'u32[72,128]{1,0:T(1,128)}', space=vmem, size = 0x9000, scoped, tag = 'internal scratch']
  %s0 = inlined_call_operand.hbm [shape: f32[313,128], index: 0, kind: input, shape index: {}]
  %s1 = inlined_call_operand.hbm [shape: f32[128,512], index: 1, kind: input, shape index: {}]
  %s2 = inlined_call_operand.hbm [shape: f32[1,512], index: 2, kind: input, shape index: {}]
  %s3 = inlined_call_operand.hbm [shape: f32[512,256], index: 3, kind: input, shape index: {}]
  %s4 = inlined_call_operand.vmem [shape: f32[1,256], index: 4, kind: input, shape index: {}]
  %s5 = inlined_call_operand.hbm [shape: f32[313,256], index: 5, kind: output, shape index: {}]
  %s6 = sld [smem:[#allocation0]]
  $region46: #{tpu_custom_call.1} parent=0
    _
  %s8 = ssub.s32 1, %s6
  %s9 = scalar_select 0, %s8, %s6
  $region1: #{tpu_custom_call.1} parent=0
    #allocation2 [shape = 'u8[163840]{0}', space=vmem, size = 0x28000, scoped, tag = 'input window, operand 0, single buffered']
    #allocation3 [shape = 's32[1]{0}', space=sflag, size = 0x4, scoped, tag = 'scoped memory for tpu_custom_call.1']
    #allocation4 [shape = 's32[1]{0}', space=sflag, size = 0x4, scoped, tag = 'scoped memory for tpu_custom_call.1']
    #allocation5 [shape = 'u8[262144]{0}', space=vmem, size = 0x40000, scoped, tag = 'input window, operand 1, single buffered']
    #allocation6 [shape = 's32[1]{0}', space=sflag, size = 0x4, scoped, tag = 'scoped memory for tpu_custom_call.1']
    #allocation7 [shape = 'u8[2048]{0}', space=vmem, size = 0x800, scoped, tag = 'input window, operand 2, single buffered']
    #allocation8 [shape = 'u8[524288]{0}', space=vmem, size = 0x80000, scoped, tag = 'input window, operand 3, single buffered']
    #allocation9 [shape = 's32[1]{0}', space=sflag, size = 0x4, scoped, tag = 'scoped memory for tpu_custom_call.1']
    #allocation10 [shape = 'u8[327680]{0}', space=vmem, size = 0x50000, scoped, tag = 'output window, operand 0, single buffered']
    %10 = vsyncpa [#allocation3], 0
    %11 = vsyncpa [#allocation6], 0
    %12 = vsyncpa [#allocation9], 0
    %13 = vsyncpa [#allocation4], 0
    // Predicated region
    $region2: #{tpu_custom_call.1} parent=1 // pred_check
      _
    $region3: #{tpu_custom_call.1} parent=1 // pred_check_branch
      %15 = sbr.rel (0) target = $region5
    $region4: #{tpu_custom_call.1} parent=1 // pred_region
      %17 = vsyncadd [#allocation3], 0
      %s18 = sshll.u32 %s0, 4
      %s19 = int_to_ptr.hbm [resolvable:$true] %s18
      %s20 = sshll.u32 [#allocation2], 4
      %s21 = int_to_ptr.vmem [resolvable:$true] %s20
      %26 = dma.hbm_to_vmem [thread:$0]  %s19, 5120, %s21, [#allocation3], 128, 128, 8
    $region5: #{tpu_custom_call.1} parent=1 // pred_fallthru
      _
    // Predicated region
    $region6: #{tpu_custom_call.1} parent=1 // pred_check
      _
    $region7: #{tpu_custom_call.1} parent=1 // pred_check_branch
      %28 = sbr.rel (0) target = $region9
    $region8: #{tpu_custom_call.1} parent=1 // pred_region
      %30 = vsyncadd [#allocation6], 0
      %s31 = sshll.u32 %s1, 4
      %s32 = int_to_ptr.hbm [resolvable:$true] %s31
      %s33 = sshll.u32 [#allocation5], 4
      %s34 = int_to_ptr.vmem [resolvable:$true] %s33
      %39 = dma.hbm_to_vmem [thread:$0]  %s32, 8192, %s34, [#allocation6], 512, 512, 32
    $region9: #{tpu_custom_call.1} parent=1 // pred_fallthru
      _
    // Predicated region
    $region10: #{tpu_custom_call.1} parent=1 // pred_check
      _
    $region11: #{tpu_custom_call.1} parent=1 // pred_check_branch
      %41 = sbr.rel (0) target = $region13
    $region12: #{tpu_custom_call.1} parent=1 // pred_region
      %43 = vsyncadd [#allocation6], 0
      %s45 = sshll.u32 %s2, 4
      %s46 = int_to_ptr.hbm [resolvable:$true] %s45
      %s47 = sshll.u32 [#allocation7], 4
      %s48 = int_to_ptr.vmem [resolvable:$true] %s47
      %50 = dma.hbm_to_vmem [thread:$0]  %s46, 64, %s48, [#allocation6]
    $region13: #{tpu_custom_call.1} parent=1 // pred_fallthru
      _
    // Predicated region
    $region14: #{tpu_custom_call.1} parent=1 // pred_check
      _
    $region15: #{tpu_custom_call.1} parent=1 // pred_check_branch
      %52 = sbr.rel (0) target = $region17
    $region16: #{tpu_custom_call.1} parent=1 // pred_region
      %54 = vsyncadd [#allocation9], 0
      %s55 = sshll.u32 %s3, 4
      %s56 = int_to_ptr.hbm [resolvable:$true] %s55
      %s57 = sshll.u32 [#allocation8], 4
      %s58 = int_to_ptr.vmem [resolvable:$true] %s57
      %63 = dma.hbm_to_vmem [thread:$0]  %s56, 16384, %s58, [#allocation9], 256, 256, 16
    $region17: #{tpu_custom_call.1} parent=1 // pred_fallthru
      _
    // Predicated region
    $region18: #{tpu_custom_call.1} parent=1 // pred_check
      _
    $region19: #{tpu_custom_call.1} parent=1 // pred_check_branch
      %65 = sbr.rel (0) target = $region21
    $region20: #{tpu_custom_call.1} parent=1 // pred_region
      _
    $region21: #{tpu_custom_call.1} parent=1 // pred_fallthru
      _
    // Predicated region
    $region22: #{tpu_custom_call.1} parent=1 // pred_check
      _
    $region23: #{tpu_custom_call.1} parent=1 // pred_check_branch
      %67 = sbr.rel (0) target = $region25
    $region24: #{tpu_custom_call.1} parent=1 // pred_region
      %69 = dma.done [#allocation3], 5120
    $region25: #{tpu_custom_call.1} parent=1 // pred_fallthru
      _
    // Predicated region
    $region26: #{tpu_custom_call.1} parent=1 // pred_check
      _
    $region27: #{tpu_custom_call.1} parent=1 // pred_check_branch
      %71 = sbr.rel (0) target = $region29
    $region28: #{tpu_custom_call.1} parent=1 // pred_region
      %73 = dma.done [#allocation6], 8192
    $region29: #{tpu_custom_call.1} parent=1 // pred_fallthru
      _
    // Predicated region
    $region30: #{tpu_custom_call.1} parent=1 // pred_check
      _
    $region31: #{tpu_custom_call.1} parent=1 // pred_check_branch
      %75 = sbr.rel (0) target = $region33
    $region32: #{tpu_custom_call.1} parent=1 // pred_region
      %77 = dma.done [#allocation6], 64
    $region33: #{tpu_custom_call.1} parent=1 // pred_fallthru
      _
    // Predicated region
    $region34: #{tpu_custom_call.1} parent=1 // pred_check
      _
    $region35: #{tpu_custom_call.1} parent=1 // pred_check_branch
      %79 = sbr.rel (0) target = $region37
    $region36: #{tpu_custom_call.1} parent=1 // pred_region
      %81 = dma.done [#allocation9], 16384
    $region37: #{tpu_custom_call.1} parent=1 // pred_fallthru
      _
    %v82 = vld [vmem:[#allocation2] sm:$0xff]
    %v83 = vld [vmem:[#allocation2 + $0x8] sm:$0xff]
    %v84 = vld [vmem:[#allocation2 + $0x10] sm:$0xff]
    %v85 = vld [vmem:[#allocation2 + $0x18] sm:$0xff]
    %v86 = vld [vmem:[#allocation2 + $0x20] sm:$0xff]
    %v87 = vld [vmem:[#allocation2 + $0x28] sm:$0xff]
    %v88 = vld [vmem:[#allocation2 + $0x30] sm:$0xff]
    %v89 = vld [vmem:[#allocation2 + $0x38] sm:$0xff]
    %v90 = vld [vmem:[#allocation2 + $0x40] sm:$0xff]
    %v91 = vld [vmem:[#allocation2 + $0x48] sm:$0xff]
    %v92 = vld [vmem:[#allocation2 + $0x50] sm:$0xff]
    %v93 = vld [vmem:[#allocation2 + $0x58] sm:$0xff]
    %v94 = vld [vmem:[#allocation2 + $0x60] sm:$0xff]
    %v95 = vld [vmem:[#allocation2 + $0x68] sm:$0xff]
    %v96 = vld [vmem:[#allocation2 + $0x70] sm:$0xff]
    %v97 = vld [vmem:[#allocation2 + $0x78] sm:$0xff]
    %v98 = vld [vmem:[#allocation2 + $0x80] sm:$0xff]
    %v99 = vld [vmem:[#allocation2 + $0x88] sm:$0xff]
    %v100 = vld [vmem:[#allocation2 + $0x90] sm:$0xff]
    %v101 = vld [vmem:[#allocation2 + $0x98] sm:$0xff]
    %v102 = vld [vmem:[#allocation2 + $0xa0] sm:$0xff]
    %v103 = vld [vmem:[#allocation2 + $0xa8] sm:$0xff]
    %v104 = vld [vmem:[#allocation2 + $0xb0] sm:$0xff]
    %v105 = vld [vmem:[#allocation2 + $0xb8] sm:$0xff]
    %v106 = vld [vmem:[#allocation2 + $0xc0] sm:$0xff]
    %v107 = vld [vmem:[#allocation2 + $0xc8] sm:$0xff]
    %v108 = vld [vmem:[#allocation2 + $0xd0] sm:$0xff]
    %v109 = vld [vmem:[#allocation2 + $0xd8] sm:$0xff]
    %v110 = vld [vmem:[#allocation2 + $0xe0] sm:$0xff]
    %v111 = vld [vmem:[#allocation2 + $0xe8] sm:$0xff]
    %v112 = vld [vmem:[#allocation2 + $0xf0] sm:$0xff]
    %v113 = vld [vmem:[#allocation2 + $0xf8] sm:$0xff]
    %v114 = vld [vmem:[#allocation2 + $0x100] sm:$0xff]
    %v115 = vld [vmem:[#allocation2 + $0x108] sm:$0xff]
    %v116 = vld [vmem:[#allocation2 + $0x110] sm:$0xff]
    %v117 = vld [vmem:[#allocation2 + $0x118] sm:$0xff]
    %v118 = vld [vmem:[#allocation2 + $0x120] sm:$0xff]
    %v119 = vld [vmem:[#allocation2 + $0x128] sm:$0xff]
    %v120 = vld [vmem:[#allocation2 + $0x130] sm:$0xff]
    %v121 = vld [vmem:[#allocation2 + $0x138] sm:$0x1]
    %v122 = vld [vmem:[#allocation5] sm:$0xff]
    %v123 = vld [vmem:[#allocation5 + $0x8] sm:$0xff]
    %v124 = vld [vmem:[#allocation5 + $0x10] sm:$0xff]
    %v125 = vld [vmem:[#allocation5 + $0x18] sm:$0xff]
    %v126 = vld [vmem:[#allocation5 + $0x20] sm:$0xff]
    %v127 = vld [vmem:[#allocation5 + $0x28] sm:$0xff]
    %v128 = vld [vmem:[#allocation5 + $0x30] sm:$0xff]
    %v129 = vld [vmem:[#allocation5 + $0x38] sm:$0xff]
    %v130 = vld [vmem:[#allocation5 + $0x40] sm:$0xff]
    %v131 = vld [vmem:[#allocation5 + $0x48] sm:$0xff]
    %v132 = vld [vmem:[#allocation5 + $0x50] sm:$0xff]
    %v133 = vld [vmem:[#allocation5 + $0x58] sm:$0xff]
    %v134 = vld [vmem:[#allocation5 + $0x60] sm:$0xff]
    %v135 = vld [vmem:[#allocation5 + $0x68] sm:$0xff]
    %v136 = vld [vmem:[#allocation5 + $0x70] sm:$0xff]
    %v137 = vld [vmem:[#allocation5 + $0x78] sm:$0xff]
    %v138 = vld [vmem:[#allocation5 + $0x80] sm:$0xff]
    %v139 = vld [vmem:[#allocation5 + $0x88] sm:$0xff]
    %v140 = vld [vmem:[#allocation5 + $0x90] sm:$0xff]
    %v141 = vld [vmem:[#allocation5 + $0x98] sm:$0xff]
    %v142 = vld [vmem:[#allocation5 + $0xa0] sm:$0xff]
    %v143 = vld [vmem:[#allocation5 + $0xa8] sm:$0xff]
    %v144 = vld [vmem:[#allocation5 + $0xb0] sm:$0xff]
    %v145 = vld [vmem:[#allocation5 + $0xb8] sm:$0xff]
    %v146 = vld [vmem:[#allocation5 + $0xc0] sm:$0xff]
    %v147 = vld [vmem:[#allocation5 + $0xc8] sm:$0xff]
    %v148 = vld [vmem:[#allocation5 + $0xd0] sm:$0xff]
    %v149 = vld [vmem:[#allocation5 + $0xd8] sm:$0xff]
    %v150 = vld [vmem:[#allocation5 + $0xe0] sm:$0xff]
    %v151 = vld [vmem:[#allocation5 + $0xe8] sm:$0xff]
    %v152 = vld [vmem:[#allocation5 + $0xf0] sm:$0xff]
    %v153 = vld [vmem:[#allocation5 + $0xf8] sm:$0xff]
    %v154 = vld [vmem:[#allocation5 + $0x100] sm:$0xff]
    %v155 = vld [vmem:[#allocation5 + $0x108] sm:$0xff]
    %v156 = vld [vmem:[#allocation5 + $0x110] sm:$0xff]
    %v157 = vld [vmem:[#allocation5 + $0x118] sm:$0xff]
    %v158 = vld [vmem:[#allocation5 + $0x120] sm:$0xff]
    %v159 = vld [vmem:[#allocation5 + $0x128] sm:$0xff]
    %v160 = vld [vmem:[#allocation5 + $0x130] sm:$0xff]
    %v161 = vld [vmem:[#allocation5 + $0x138] sm:$0xff]
    %v162 = vld [vmem:[#allocation5 + $0x140] sm:$0xff]
    %v163 = vld [vmem:[#allocation5 + $0x148] sm:$0xff]
    %v164 = vld [vmem:[#allocation5 + $0x150] sm:$0xff]
    %v165 = vld [vmem:[#allocation5 + $0x158] sm:$0xff]
    %v166 = vld [vmem:[#allocation5 + $0x160] sm:$0xff]
    %v167 = vld [vmem:[#allocation5 + $0x168] sm:$0xff]
    %v168 = vld [vmem:[#allocation5 + $0x170] sm:$0xff]
    %v169 = vld [vmem:[#allocation5 + $0x178] sm:$0xff]
    %v170 = vld [vmem:[#allocation5 + $0x180] sm:$0xff]
    %v171 = vld [vmem:[#allocation5 + $0x188] sm:$0xff]
    %v172 = vld [vmem:[#allocation5 + $0x190] sm:$0xff]
    %v173 = vld [vmem:[#allocation5 + $0x198] sm:$0xff]
    %v174 = vld [vmem:[#allocation5 + $0x1a0] sm:$0xff]
    %v175 = vld [vmem:[#allocation5 + $0x1a8] sm:$0xff]
    %v176 = vld [vmem:[#allocation5 + $0x1b0] sm:$0xff]
    %v177 = vld [vmem:[#allocation5 + $0x1b8] sm:$0xff]
    %v178 = vld [vmem:[#allocation5 + $0x1c0] sm:$0xff]
    %v179 = vld [vmem:[#allocation5 + $0x1c8] sm:$0xff]
    %v180 = vld [vmem:[#allocation5 + $0x1d0] sm:$0xff]
    %v181 = vld [vmem:[#allocation5 + $0x1d8] sm:$0xff]
    %v182 = vld [vmem:[#allocation5 + $0x1e0] sm:$0xff]
    %v183 = vld [vmem:[#allocation5 + $0x1e8] sm:$0xff]
    %v184 = vld [vmem:[#allocation5 + $0x1f0] sm:$0xff]
    %v185 = vld [vmem:[#allocation5 + $0x1f8] sm:$0xff]
    %v186 = vld [vmem:[#allocation7] sm:$0xf]
    %v188 = vperm.slane %v186, 0
    %v189 = vperm.slane %v186, 1
    %v190 = vperm.slane %v186, 2
    %v191 = vperm.slane %v186, 3
    %196 = vmatpush.msra.mxu0 %v182
    %197 = vmatpush.msra.mxu0 %v178
    %198 = vmatpush.msra.mxu0 %v174
    %199 = vmatpush.msra.mxu0 %v170
    %200 = vmatpush.msra.mxu0 %v166
    %201 = vmatpush.msra.mxu0 %v162
    %202 = vmatpush.msra.mxu0 %v158
    %203 = vmatpush.msra.mxu0 %v154
    %204 = vmatpush.msra.mxu0 %v150
    %205 = vmatpush.msra.mxu0 %v146
    %206 = vmatpush.msra.mxu0 %v142
    %207 = vmatpush.msra.mxu0 %v138
    %208 = vmatpush.msra.mxu0 %v134
    %209 = vmatpush.msra.mxu0 %v130
    %210 = vmatpush.msra.mxu0 %v126
    %211 = vmatpush.msra.mxu0 %v122
    %212 = vmatmul.f32.gmra.mxu0 %v82
    %v213 = vpop.f32.mrf.mxu0
    %v214 = vadd.f32 %v188, %v213
    %215 = vmatmul.f32.gmra.mxu0 %v83
    %v216 = vpop.f32.mrf.mxu0
    %v217 = vadd.f32 %v188, %v216
    %218 = vmatmul.f32.gmra.mxu0 %v84
    %v219 = vpop.f32.mrf.mxu0
    %v220 = vadd.f32 %v188, %v219
    %221 = vmatmul.f32.gmra.mxu0 %v85
    %v222 = vpop.f32.mrf.mxu0
    %v223 = vadd.f32 %v188, %v222
    %224 = vmatmul.f32.gmra.mxu0 %v86
    %v225 = vpop.f32.mrf.mxu0
    %v226 = vadd.f32 %v188, %v225
    %227 = vmatmul.f32.gmra.mxu0 %v87
    %v228 = vpop.f32.mrf.mxu0
    %v229 = vadd.f32 %v188, %v228
    %230 = vmatmul.f32.gmra.mxu0 %v88
    %v231 = vpop.f32.mrf.mxu0
    %v232 = vadd.f32 %v188, %v231
    %233 = vmatmul.f32.gmra.mxu0 %v89
    %v234 = vpop.f32.mrf.mxu0
    %v235 = vadd.f32 %v188, %v234
    %236 = vmatmul.f32.gmra.mxu0 %v90
    %v237 = vpop.f32.mrf.mxu0
    %v238 = vadd.f32 %v188, %v237
    %239 = vmatmul.f32.gmra.mxu0 %v91
    %v240 = vpop.f32.mrf.mxu0
    %v241 = vadd.f32 %v188, %v240
    %242 = vmatmul.f32.gmra.mxu0 %v92
    %v243 = vpop.f32.mrf.mxu0
    %v244 = vadd.f32 %v188, %v243
    %245 = vmatmul.f32.gmra.mxu0 %v93
    %v246 = vpop.f32.mrf.mxu0
    %v247 = vadd.f32 %v188, %v246
    %248 = vmatmul.f32.gmra.mxu0 %v94
    %v249 = vpop.f32.mrf.mxu0
    %v250 = vadd.f32 %v188, %v249
    %251 = vmatmul.f32.gmra.mxu0 %v95
    %v252 = vpop.f32.mrf.mxu0
    %v253 = vadd.f32 %v188, %v252
    %254 = vmatmul.f32.gmra.mxu0 %v96
    %v255 = vpop.f32.mrf.mxu0
    %v256 = vadd.f32 %v188, %v255
    %257 = vmatmul.f32.gmra.mxu0 %v97
    %v258 = vpop.f32.mrf.mxu0
    %v259 = vadd.f32 %v188, %v258
    %260 = vmatmul.f32.gmra.mxu0 %v98
    %v261 = vpop.f32.mrf.mxu0
    %v262 = vadd.f32 %v188, %v261
    %263 = vmatmul.f32.gmra.mxu0 %v99
    %v264 = vpop.f32.mrf.mxu0
    %v265 = vadd.f32 %v188, %v264
    %266 = vmatmul.f32.gmra.mxu0 %v100
    %v267 = vpop.f32.mrf.mxu0
    %v268 = vadd.f32 %v188, %v267
    %269 = vmatmul.f32.gmra.mxu0 %v101
    %v270 = vpop.f32.mrf.mxu0
    %v271 = vadd.f32 %v188, %v270
    %272 = vmatmul.f32.gmra.mxu0 %v102
    %v273 = vpop.f32.mrf.mxu0
    %v274 = vadd.f32 %v188, %v273
    %275 = vmatmul.f32.gmra.mxu0 %v103
    %v276 = vpop.f32.mrf.mxu0
    %v277 = vadd.f32 %v188, %v276
    %278 = vmatmul.f32.gmra.mxu0 %v104
    %v279 = vpop.f32.mrf.mxu0
    %v280 = vadd.f32 %v188, %v279
    %281 = vmatmul.f32.gmra.mxu0 %v105
    %v282 = vpop.f32.mrf.mxu0
    %v283 = vadd.f32 %v188, %v282
    %284 = vmatmul.f32.gmra.mxu0 %v106
    %v285 = vpop.f32.mrf.mxu0
    %v286 = vadd.f32 %v188, %v285
    %287 = vmatmul.f32.gmra.mxu0 %v107
    %v288 = vpop.f32.mrf.mxu0
    %v289 = vadd.f32 %v188, %v288
    %290 = vmatmul.f32.gmra.mxu0 %v108
    %v291 = vpop.f32.mrf.mxu0
    %v292 = vadd.f32 %v188, %v291
    %293 = vmatmul.f32.gmra.mxu0 %v109
    %v294 = vpop.f32.mrf.mxu0
    %v295 = vadd.f32 %v188, %v294
    %296 = vmatmul.f32.gmra.mxu0 %v110
    %v297 = vpop.f32.mrf.mxu0
    %v298 = vadd.f32 %v188, %v297
    %299 = vmatmul.f32.gmra.mxu0 %v111
    %v300 = vpop.f32.mrf.mxu0
    %v301 = vadd.f32 %v188, %v300
    %302 = vmatmul.f32.gmra.mxu0 %v112
    %v303 = vpop.f32.mrf.mxu0
    %v304 = vadd.f32 %v188, %v303
    %305 = vmatmul.f32.gmra.mxu0 %v113
    %v306 = vpop.f32.mrf.mxu0
    %v307 = vadd.f32 %v188, %v306
    %308 = vmatmul.f32.gmra.mxu0 %v114
    %v309 = vpop.f32.mrf.mxu0
    %v310 = vadd.f32 %v188, %v309
    %311 = vmatmul.f32.gmra.mxu0 %v115
    %v312 = vpop.f32.mrf.mxu0
    %v313 = vadd.f32 %v188, %v312
    %314 = vmatmul.f32.gmra.mxu0 %v116
    %v315 = vpop.f32.mrf.mxu0
    %v316 = vadd.f32 %v188, %v315
    %317 = vmatmul.f32.gmra.mxu0 %v117
    %v318 = vpop.f32.mrf.mxu0
    %v319 = vadd.f32 %v188, %v318
    %320 = vmatmul.f32.gmra.mxu0 %v118
    %v321 = vpop.f32.mrf.mxu0
    %v322 = vadd.f32 %v188, %v321
    %323 = vmatmul.f32.gmra.mxu0 %v119
    %v324 = vpop.f32.mrf.mxu0
    %v325 = vadd.f32 %v188, %v324
    %326 = vmatmul.f32.gmra.mxu0 %v120
    %v327 = vpop.f32.mrf.mxu0
    %v328 = vadd.f32 %v188, %v327
    %329 = vmatmul.f32.gmra.mxu0 %v121
    %v330 = vpop.f32.mrf.mxu0
    %v331 = vadd.f32 %v188, %v330
    %332 = vdwg.mxu0
    %333 = vmatpush.msra.mxu0 %v183
    %334 = vmatpush.msra.mxu0 %v179
    %335 = vmatpush.msra.mxu0 %v175
    %336 = vmatpush.msra.mxu0 %v171
    %337 = vmatpush.msra.mxu0 %v167
    %338 = vmatpush.msra.mxu0 %v163
    %339 = vmatpush.msra.mxu0 %v159
    %340 = vmatpush.msra.mxu0 %v155
    %341 = vmatpush.msra.mxu0 %v151
    %342 = vmatpush.msra.mxu0 %v147
    %343 = vmatpush.msra.mxu0 %v143
    %344 = vmatpush.msra.mxu0 %v139
    %345 = vmatpush.msra.mxu0 %v135
    %346 = vmatpush.msra.mxu0 %v131
    %347 = vmatpush.msra.mxu0 %v127
    %348 = vmatpush.msra.mxu0 %v123
    %349 = vmatmul.f32.gmra.mxu0 %v82
    %v350 = vpop.f32.mrf.mxu0
    %v351 = vadd.f32 %v189, %v350
    %352 = vmatmul.f32.gmra.mxu0 %v83
    %v353 = vpop.f32.mrf.mxu0
    %v354 = vadd.f32 %v189, %v353
    %355 = vmatmul.f32.gmra.mxu0 %v84
    %v356 = vpop.f32.mrf.mxu0
    %v357 = vadd.f32 %v189, %v356
    %358 = vmatmul.f32.gmra.mxu0 %v85
    %v359 = vpop.f32.mrf.mxu0
    %v360 = vadd.f32 %v189, %v359
    %361 = vmatmul.f32.gmra.mxu0 %v86
    %v362 = vpop.f32.mrf.mxu0
    %v363 = vadd.f32 %v189, %v362
    %364 = vmatmul.f32.gmra.mxu0 %v87
    %v365 = vpop.f32.mrf.mxu0
    %v366 = vadd.f32 %v189, %v365
    %367 = vmatmul.f32.gmra.mxu0 %v88
    %v368 = vpop.f32.mrf.mxu0
    %v369 = vadd.f32 %v189, %v368
    %370 = vmatmul.f32.gmra.mxu0 %v89
    %v371 = vpop.f32.mrf.mxu0
    %v372 = vadd.f32 %v189, %v371
    %373 = vmatmul.f32.gmra.mxu0 %v90
    %v374 = vpop.f32.mrf.mxu0
    %v375 = vadd.f32 %v189, %v374
    %376 = vmatmul.f32.gmra.mxu0 %v91
    %v377 = vpop.f32.mrf.mxu0
    %v378 = vadd.f32 %v189, %v377
    %379 = vmatmul.f32.gmra.mxu0 %v92
    %v380 = vpop.f32.mrf.mxu0
    %v381 = vadd.f32 %v189, %v380
    %382 = vmatmul.f32.gmra.mxu0 %v93
    %v383 = vpop.f32.mrf.mxu0
    %v384 = vadd.f32 %v189, %v383
    %385 = vmatmul.f32.gmra.mxu0 %v94
    %v386 = vpop.f32.mrf.mxu0
    %v387 = vadd.f32 %v189, %v386
    %388 = vmatmul.f32.gmra.mxu0 %v95
    %v389 = vpop.f32.mrf.mxu0
    %v390 = vadd.f32 %v189, %v389
    %391 = vmatmul.f32.gmra.mxu0 %v96
    %v392 = vpop.f32.mrf.mxu0
    %v393 = vadd.f32 %v189, %v392
    %394 = vmatmul.f32.gmra.mxu0 %v97
    %v395 = vpop.f32.mrf.mxu0
    %v396 = vadd.f32 %v189, %v395
    %397 = vmatmul.f32.gmra.mxu0 %v98
    %v398 = vpop.f32.mrf.mxu0
    %v399 = vadd.f32 %v189, %v398
    %400 = vmatmul.f32.gmra.mxu0 %v99
    %v401 = vpop.f32.mrf.mxu0
    %v402 = vadd.f32 %v189, %v401
    %403 = vmatmul.f32.gmra.mxu0 %v100
    %v404 = vpop.f32.mrf.mxu0
    %v405 = vadd.f32 %v189, %v404
    %406 = vmatmul.f32.gmra.mxu0 %v101
    %v407 = vpop.f32.mrf.mxu0
    %v408 = vadd.f32 %v189, %v407
    %409 = vmatmul.f32.gmra.mxu0 %v102
    %v410 = vpop.f32.mrf.mxu0
    %v411 = vadd.f32 %v189, %v410
    %412 = vmatmul.f32.gmra.mxu0 %v103
    %v413 = vpop.f32.mrf.mxu0
    %v414 = vadd.f32 %v189, %v413
    %415 = vmatmul.f32.gmra.mxu0 %v104
    %v416 = vpop.f32.mrf.mxu0
    %v417 = vadd.f32 %v189, %v416
    %418 = vmatmul.f32.gmra.mxu0 %v105
    %v419 = vpop.f32.mrf.mxu0
    %v420 = vadd.f32 %v189, %v419
    %421 = vmatmul.f32.gmra.mxu0 %v106
    %v422 = vpop.f32.mrf.mxu0
    %v423 = vadd.f32 %v189, %v422
    %424 = vmatmul.f32.gmra.mxu0 %v107
    %v425 = vpop.f32.mrf.mxu0
    %v426 = vadd.f32 %v189, %v425
    %427 = vmatmul.f32.gmra.mxu0 %v108
    %v428 = vpop.f32.mrf.mxu0
    %v429 = vadd.f32 %v189, %v428
    %430 = vmatmul.f32.gmra.mxu0 %v109
    %v431 = vpop.f32.mrf.mxu0
    %v432 = vadd.f32 %v189, %v431
    %433 = vmatmul.f32.gmra.mxu0 %v110
    %v434 = vpop.f32.mrf.mxu0
    %v435 = vadd.f32 %v189, %v434
    %436 = vmatmul.f32.gmra.mxu0 %v111
    %v437 = vpop.f32.mrf.mxu0
    %v438 = vadd.f32 %v189, %v437
    %439 = vmatmul.f32.gmra.mxu0 %v112
    %v440 = vpop.f32.mrf.mxu0
    %v441 = vadd.f32 %v189, %v440
    %442 = vmatmul.f32.gmra.mxu0 %v113
    %v443 = vpop.f32.mrf.mxu0
    %v444 = vadd.f32 %v189, %v443
    %445 = vmatmul.f32.gmra.mxu0 %v114
    %v446 = vpop.f32.mrf.mxu0
    %v447 = vadd.f32 %v189, %v446
    %448 = vmatmul.f32.gmra.mxu0 %v115
    %v449 = vpop.f32.mrf.mxu0
    %v450 = vadd.f32 %v189, %v449
    %451 = vmatmul.f32.gmra.mxu0 %v116
    %v452 = vpop.f32.mrf.mxu0
    %v453 = vadd.f32 %v189, %v452
    %454 = vmatmul.f32.gmra.mxu0 %v117
    %v455 = vpop.f32.mrf.mxu0
    %v456 = vadd.f32 %v189, %v455
    %457 = vmatmul.f32.gmra.mxu0 %v118
    %v458 = vpop.f32.mrf.mxu0
    %v459 = vadd.f32 %v189, %v458
    %460 = vmatmul.f32.gmra.mxu0 %v119
    %v461 = vpop.f32.mrf.mxu0
    %v462 = vadd.f32 %v189, %v461
    %463 = vmatmul.f32.gmra.mxu0 %v120
    %v464 = vpop.f32.mrf.mxu0
    %v465 = vadd.f32 %v189, %v464
    %466 = vmatmul.f32.gmra.mxu0 %v121
    %v467 = vpop.f32.mrf.mxu0
    %v468 = vadd.f32 %v189, %v467
    %469 = vdwg.mxu0
    %470 = vmatpush.msra.mxu0 %v184
    %471 = vmatpush.msra.mxu0 %v180
    %472 = vmatpush.msra.mxu0 %v176
    %473 = vmatpush.msra.mxu0 %v172
    %474 = vmatpush.msra.mxu0 %v168
    %475 = vmatpush.msra.mxu0 %v164
    %476 = vmatpush.msra.mxu0 %v160
    %477 = vmatpush.msra.mxu0 %v156
    %478 = vmatpush.msra.mxu0 %v152
    %479 = vmatpush.msra.mxu0 %v148
    %480 = vmatpush.msra.mxu0 %v144
    %481 = vmatpush.msra.mxu0 %v140
    %482 = vmatpush.msra.mxu0 %v136
    %483 = vmatpush.msra.mxu0 %v132
    %484 = vmatpush.msra.mxu0 %v128
    %485 = vmatpush.msra.mxu0 %v124
    %486 = vmatmul.f32.gmra.mxu0 %v82
    %v487 = vpop.f32.mrf.mxu0
    %v488 = vadd.f32 %v190, %v487
    %489 = vmatmul.f32.gmra.mxu0 %v83
    %v490 = vpop.f32.mrf.mxu0
    %v491 = vadd.f32 %v190, %v490
    %492 = vmatmul.f32.gmra.mxu0 %v84
    %v493 = vpop.f32.mrf.mxu0
    %v494 = vadd.f32 %v190, %v493
    %495 = vmatmul.f32.gmra.mxu0 %v85
    %v496 = vpop.f32.mrf.mxu0
    %v497 = vadd.f32 %v190, %v496
    %498 = vmatmul.f32.gmra.mxu0 %v86
    %v499 = vpop.f32.mrf.mxu0
    %v500 = vadd.f32 %v190, %v499
    %501 = vmatmul.f32.gmra.mxu0 %v87
    %v502 = vpop.f32.mrf.mxu0
    %v503 = vadd.f32 %v190, %v502
    %504 = vmatmul.f32.gmra.mxu0 %v88
    %v505 = vpop.f32.mrf.mxu0
    %v506 = vadd.f32 %v190, %v505
    %507 = vmatmul.f32.gmra.mxu0 %v89
    %v508 = vpop.f32.mrf.mxu0
    %v509 = vadd.f32 %v190, %v508
    %510 = vmatmul.f32.gmra.mxu0 %v90
    %v511 = vpop.f32.mrf.mxu0
    %v512 = vadd.f32 %v190, %v511
    %513 = vmatmul.f32.gmra.mxu0 %v91
    %v514 = vpop.f32.mrf.mxu0
    %v515 = vadd.f32 %v190, %v514
    %516 = vmatmul.f32.gmra.mxu0 %v92
    %v517 = vpop.f32.mrf.mxu0
    %v518 = vadd.f32 %v190, %v517
    %519 = vmatmul.f32.gmra.mxu0 %v93
    %v520 = vpop.f32.mrf.mxu0
    %v521 = vadd.f32 %v190, %v520
    %522 = vmatmul.f32.gmra.mxu0 %v94
    %v523 = vpop.f32.mrf.mxu0
    %v524 = vadd.f32 %v190, %v523
    %525 = vmatmul.f32.gmra.mxu0 %v95
    %v526 = vpop.f32.mrf.mxu0
    %v527 = vadd.f32 %v190, %v526
    %528 = vmatmul.f32.gmra.mxu0 %v96
    %v529 = vpop.f32.mrf.mxu0
    %v530 = vadd.f32 %v190, %v529
    %531 = vmatmul.f32.gmra.mxu0 %v97
    %v532 = vpop.f32.mrf.mxu0
    %v533 = vadd.f32 %v190, %v532
    %534 = vmatmul.f32.gmra.mxu0 %v98
    %v535 = vpop.f32.mrf.mxu0
    %v536 = vadd.f32 %v190, %v535
    %537 = vmatmul.f32.gmra.mxu0 %v99
    %v538 = vpop.f32.mrf.mxu0
    %v539 = vadd.f32 %v190, %v538
    %540 = vmatmul.f32.gmra.mxu0 %v100
    %v541 = vpop.f32.mrf.mxu0
    %v542 = vadd.f32 %v190, %v541
    %543 = vmatmul.f32.gmra.mxu0 %v101
    %v544 = vpop.f32.mrf.mxu0
    %v545 = vadd.f32 %v190, %v544
    %546 = vmatmul.f32.gmra.mxu0 %v102
    %v547 = vpop.f32.mrf.mxu0
    %v548 = vadd.f32 %v190, %v547
    %549 = vmatmul.f32.gmra.mxu0 %v103
    %v550 = vpop.f32.mrf.mxu0
    %v551 = vadd.f32 %v190, %v550
    %552 = vmatmul.f32.gmra.mxu0 %v104
    %v553 = vpop.f32.mrf.mxu0
    %v554 = vadd.f32 %v190, %v553
    %555 = vmatmul.f32.gmra.mxu0 %v105
    %v556 = vpop.f32.mrf.mxu0
    %v557 = vadd.f32 %v190, %v556
    %558 = vmatmul.f32.gmra.mxu0 %v106
    %v559 = vpop.f32.mrf.mxu0
    %v560 = vadd.f32 %v190, %v559
    %561 = vmatmul.f32.gmra.mxu0 %v107
    %v562 = vpop.f32.mrf.mxu0
    %v563 = vadd.f32 %v190, %v562
    %564 = vmatmul.f32.gmra.mxu0 %v108
    %v565 = vpop.f32.mrf.mxu0
    %v566 = vadd.f32 %v190, %v565
    %567 = vmatmul.f32.gmra.mxu0 %v109
    %v568 = vpop.f32.mrf.mxu0
    %v569 = vadd.f32 %v190, %v568
    %570 = vmatmul.f32.gmra.mxu0 %v110
    %v571 = vpop.f32.mrf.mxu0
    %v572 = vadd.f32 %v190, %v571
    %573 = vmatmul.f32.gmra.mxu0 %v111
    %v574 = vpop.f32.mrf.mxu0
    %v575 = vadd.f32 %v190, %v574
    %576 = vmatmul.f32.gmra.mxu0 %v112
    %v577 = vpop.f32.mrf.mxu0
    %v578 = vadd.f32 %v190, %v577
    %579 = vmatmul.f32.gmra.mxu0 %v113
    %v580 = vpop.f32.mrf.mxu0
    %v581 = vadd.f32 %v190, %v580
    %582 = vmatmul.f32.gmra.mxu0 %v114
    %v583 = vpop.f32.mrf.mxu0
    %v584 = vadd.f32 %v190, %v583
    %585 = vmatmul.f32.gmra.mxu0 %v115
    %v586 = vpop.f32.mrf.mxu0
    %v587 = vadd.f32 %v190, %v586
    %588 = vmatmul.f32.gmra.mxu0 %v116
    %v589 = vpop.f32.mrf.mxu0
    %v590 = vadd.f32 %v190, %v589
    %591 = vmatmul.f32.gmra.mxu0 %v117
    %v592 = vpop.f32.mrf.mxu0
    %v593 = vadd.f32 %v190, %v592
    %594 = vmatmul.f32.gmra.mxu0 %v118
    %v595 = vpop.f32.mrf.mxu0
    %v596 = vadd.f32 %v190, %v595
    %597 = vmatmul.f32.gmra.mxu0 %v119
    %v598 = vpop.f32.mrf.mxu0
    %v599 = vadd.f32 %v190, %v598
    %600 = vmatmul.f32.gmra.mxu0 %v120
    %v601 = vpop.f32.mrf.mxu0
    %v602 = vadd.f32 %v190, %v601
    %603 = vmatmul.f32.gmra.mxu0 %v121
    %v604 = vpop.f32.mrf.mxu0
    %v605 = vadd.f32 %v190, %v604
    %606 = vdwg.mxu0
    %607 = vmatpush.msra.mxu0 %v185
    %608 = vmatpush.msra.mxu0 %v181
    %609 = vmatpush.msra.mxu0 %v177
    %610 = vmatpush.msra.mxu0 %v173
    %611 = vmatpush.msra.mxu0 %v169
    %612 = vmatpush.msra.mxu0 %v165
    %613 = vmatpush.msra.mxu0 %v161
    %614 = vmatpush.msra.mxu0 %v157
    %615 = vmatpush.msra.mxu0 %v153
    %616 = vmatpush.msra.mxu0 %v149
    %617 = vmatpush.msra.mxu0 %v145
    %618 = vmatpush.msra.mxu0 %v141
    %619 = vmatpush.msra.mxu0 %v137
    %620 = vmatpush.msra.mxu0 %v133
    %621 = vmatpush.msra.mxu0 %v129
    %622 = vmatpush.msra.mxu0 %v125
    %623 = vmatmul.f32.gmra.mxu0 %v82
    %v624 = vpop.f32.mrf.mxu0
    %v625 = vadd.f32 %v191, %v624
    %626 = vmatmul.f32.gmra.mxu0 %v83
    %v627 = vpop.f32.mrf.mxu0
    %v628 = vadd.f32 %v191, %v627
    %629 = vmatmul.f32.gmra.mxu0 %v84
    %v630 = vpop.f32.mrf.mxu0
    %v631 = vadd.f32 %v191, %v630
    %632 = vmatmul.f32.gmra.mxu0 %v85
    %v633 = vpop.f32.mrf.mxu0
    %v634 = vadd.f32 %v191, %v633
    %635 = vmatmul.f32.gmra.mxu0 %v86
    %v636 = vpop.f32.mrf.mxu0
    %v637 = vadd.f32 %v191, %v636
    %638 = vmatmul.f32.gmra.mxu0 %v87
    %v639 = vpop.f32.mrf.mxu0
    %v640 = vadd.f32 %v191, %v639
    %641 = vmatmul.f32.gmra.mxu0 %v88
    %v642 = vpop.f32.mrf.mxu0
    %v643 = vadd.f32 %v191, %v642
    %644 = vmatmul.f32.gmra.mxu0 %v89
    %v645 = vpop.f32.mrf.mxu0
    %v646 = vadd.f32 %v191, %v645
    %647 = vmatmul.f32.gmra.mxu0 %v90
    %v648 = vpop.f32.mrf.mxu0
    %v649 = vadd.f32 %v191, %v648
    %650 = vmatmul.f32.gmra.mxu0 %v91
    %v651 = vpop.f32.mrf.mxu0
    %v652 = vadd.f32 %v191, %v651
    %653 = vmatmul.f32.gmra.mxu0 %v92
    %v654 = vpop.f32.mrf.mxu0
    %v655 = vadd.f32 %v191, %v654
    %656 = vmatmul.f32.gmra.mxu0 %v93
    %v657 = vpop.f32.mrf.mxu0
    %v658 = vadd.f32 %v191, %v657
    %659 = vmatmul.f32.gmra.mxu0 %v94
    %v660 = vpop.f32.mrf.mxu0
    %v661 = vadd.f32 %v191, %v660
    %662 = vmatmul.f32.gmra.mxu0 %v95
    %v663 = vpop.f32.mrf.mxu0
    %v664 = vadd.f32 %v191, %v663
    %665 = vmatmul.f32.gmra.mxu0 %v96
    %v666 = vpop.f32.mrf.mxu0
    %v667 = vadd.f32 %v191, %v666
    %668 = vmatmul.f32.gmra.mxu0 %v97
    %v669 = vpop.f32.mrf.mxu0
    %v670 = vadd.f32 %v191, %v669
    %671 = vmatmul.f32.gmra.mxu0 %v98
    %v672 = vpop.f32.mrf.mxu0
    %v673 = vadd.f32 %v191, %v672
    %674 = vmatmul.f32.gmra.mxu0 %v99
    %v675 = vpop.f32.mrf.mxu0
    %v676 = vadd.f32 %v191, %v675
    %677 = vmatmul.f32.gmra.mxu0 %v100
    %v678 = vpop.f32.mrf.mxu0
    %v679 = vadd.f32 %v191, %v678
    %680 = vmatmul.f32.gmra.mxu0 %v101
    %v681 = vpop.f32.mrf.mxu0
    %v682 = vadd.f32 %v191, %v681
    %683 = vmatmul.f32.gmra.mxu0 %v102
    %v684 = vpop.f32.mrf.mxu0
    %v685 = vadd.f32 %v191, %v684
    %686 = vmatmul.f32.gmra.mxu0 %v103
    %v687 = vpop.f32.mrf.mxu0
    %v688 = vadd.f32 %v191, %v687
    %689 = vmatmul.f32.gmra.mxu0 %v104
    %v690 = vpop.f32.mrf.mxu0
    %v691 = vadd.f32 %v191, %v690
    %692 = vmatmul.f32.gmra.mxu0 %v105
    %v693 = vpop.f32.mrf.mxu0
    %v694 = vadd.f32 %v191, %v693
    %695 = vmatmul.f32.gmra.mxu0 %v106
    %v696 = vpop.f32.mrf.mxu0
    %v697 = vadd.f32 %v191, %v696
    %698 = vmatmul.f32.gmra.mxu0 %v107
    %v699 = vpop.f32.mrf.mxu0
    %v700 = vadd.f32 %v191, %v699
    %701 = vmatmul.f32.gmra.mxu0 %v108
    %v702 = vpop.f32.mrf.mxu0
    %v703 = vadd.f32 %v191, %v702
    %704 = vmatmul.f32.gmra.mxu0 %v109
    %v705 = vpop.f32.mrf.mxu0
    %v706 = vadd.f32 %v191, %v705
    %707 = vmatmul.f32.gmra.mxu0 %v110
    %v708 = vpop.f32.mrf.mxu0
    %v709 = vadd.f32 %v191, %v708
    %710 = vmatmul.f32.gmra.mxu0 %v111
    %v711 = vpop.f32.mrf.mxu0
    %v712 = vadd.f32 %v191, %v711
    %713 = vmatmul.f32.gmra.mxu0 %v112
    %v714 = vpop.f32.mrf.mxu0
    %v715 = vadd.f32 %v191, %v714
    %716 = vmatmul.f32.gmra.mxu0 %v113
    %v717 = vpop.f32.mrf.mxu0
    %v718 = vadd.f32 %v191, %v717
    %719 = vmatmul.f32.gmra.mxu0 %v114
    %v720 = vpop.f32.mrf.mxu0
    %v721 = vadd.f32 %v191, %v720
    %722 = vmatmul.f32.gmra.mxu0 %v115
    %v723 = vpop.f32.mrf.mxu0
    %v724 = vadd.f32 %v191, %v723
    %725 = vmatmul.f32.gmra.mxu0 %v116
    %v726 = vpop.f32.mrf.mxu0
    %v727 = vadd.f32 %v191, %v726
    %728 = vmatmul.f32.gmra.mxu0 %v117
    %v729 = vpop.f32.mrf.mxu0
    %v730 = vadd.f32 %v191, %v729
    %731 = vmatmul.f32.gmra.mxu0 %v118
    %v732 = vpop.f32.mrf.mxu0
    %v733 = vadd.f32 %v191, %v732
    %734 = vmatmul.f32.gmra.mxu0 %v119
    %v735 = vpop.f32.mrf.mxu0
    %v736 = vadd.f32 %v191, %v735
    %737 = vmatmul.f32.gmra.mxu0 %v120
    %v738 = vpop.f32.mrf.mxu0
    %v739 = vadd.f32 %v191, %v738
    %740 = vmatmul.f32.gmra.mxu0 %v121
    %v741 = vpop.f32.mrf.mxu0
    %v742 = vadd.f32 %v191, %v741
    %743 = vdwg.mxu0
    %v744 = vmax.f32 %v214, 0.0
    %v745 = vmax.f32 %v351, 0.0
    %v746 = vmax.f32 %v488, 0.0
    %v747 = vmax.f32 %v625, 0.0
    %v748 = vmax.f32 %v217, 0.0
    %v749 = vmax.f32 %v354, 0.0
    %v750 = vmax.f32 %v491, 0.0
    %v751 = vmax.f32 %v628, 0.0
    %v752 = vmax.f32 %v220, 0.0
    %v753 = vmax.f32 %v357, 0.0
    %v754 = vmax.f32 %v494, 0.0
    %v755 = vmax.f32 %v631, 0.0
    %v756 = vmax.f32 %v223, 0.0
    %v757 = vmax.f32 %v360, 0.0
    %v758 = vmax.f32 %v497, 0.0
    %v759 = vmax.f32 %v634, 0.0
    %v760 = vmax.f32 %v226, 0.0
    %v761 = vmax.f32 %v363, 0.0
    %v762 = vmax.f32 %v500, 0.0
    %v763 = vmax.f32 %v637, 0.0
    %v764 = vmax.f32 %v229, 0.0
    %v765 = vmax.f32 %v366, 0.0
    %v766 = vmax.f32 %v503, 0.0
    %v767 = vmax.f32 %v640, 0.0
    %v768 = vmax.f32 %v232, 0.0
    %v769 = vmax.f32 %v369, 0.0
    %v770 = vmax.f32 %v506, 0.0
    %v771 = vmax.f32 %v643, 0.0
    %v772 = vmax.f32 %v235, 0.0
    %v773 = vmax.f32 %v372, 0.0
    %v774 = vmax.f32 %v509, 0.0
    %v775 = vmax.f32 %v646, 0.0
    %v776 = vmax.f32 %v238, 0.0
    %v777 = vmax.f32 %v375, 0.0
    %v778 = vmax.f32 %v512, 0.0
    %v779 = vmax.f32 %v649, 0.0
    %v780 = vmax.f32 %v241, 0.0
    %v781 = vmax.f32 %v378, 0.0
    %v782 = vmax.f32 %v515, 0.0
    %v783 = vmax.f32 %v652, 0.0
    %v784 = vmax.f32 %v244, 0.0
    %v785 = vmax.f32 %v381, 0.0
    %v786 = vmax.f32 %v518, 0.0
    %v787 = vmax.f32 %v655, 0.0
    %v788 = vmax.f32 %v247, 0.0
    %v789 = vmax.f32 %v384, 0.0
    %v790 = vmax.f32 %v521, 0.0
    %v791 = vmax.f32 %v658, 0.0
    %v792 = vmax.f32 %v250, 0.0
    %v793 = vmax.f32 %v387, 0.0
    %v794 = vmax.f32 %v524, 0.0
    %v795 = vmax.f32 %v661, 0.0
    %v796 = vmax.f32 %v253, 0.0
    %v797 = vmax.f32 %v390, 0.0
    %v798 = vmax.f32 %v527, 0.0
    %v799 = vmax.f32 %v664, 0.0
    %v800 = vmax.f32 %v256, 0.0
    %v801 = vmax.f32 %v393, 0.0
    %v802 = vmax.f32 %v530, 0.0
    %v803 = vmax.f32 %v667, 0.0
    %v804 = vmax.f32 %v259, 0.0
    %v805 = vmax.f32 %v396, 0.0
    %v806 = vmax.f32 %v533, 0.0
    %v807 = vmax.f32 %v670, 0.0
    %v808 = vmax.f32 %v262, 0.0
    %v809 = vmax.f32 %v399, 0.0
    %v810 = vmax.f32 %v536, 0.0
    %v811 = vmax.f32 %v673, 0.0
    %v812 = vmax.f32 %v265, 0.0
    %v813 = vmax.f32 %v402, 0.0
    %v814 = vmax.f32 %v539, 0.0
    %v815 = vmax.f32 %v676, 0.0
    %v816 = vmax.f32 %v268, 0.0
    %v817 = vmax.f32 %v405, 0.0
    %v818 = vmax.f32 %v542, 0.0
    %v819 = vmax.f32 %v679, 0.0
    %v820 = vmax.f32 %v271, 0.0
    %v821 = vmax.f32 %v408, 0.0
    %v822 = vmax.f32 %v545, 0.0
    %v823 = vmax.f32 %v682, 0.0
    %v824 = vmax.f32 %v274, 0.0
    %v825 = vmax.f32 %v411, 0.0
    %v826 = vmax.f32 %v548, 0.0
    %v827 = vmax.f32 %v685, 0.0
    %v828 = vmax.f32 %v277, 0.0
    %v829 = vmax.f32 %v414, 0.0
    %v830 = vmax.f32 %v551, 0.0
    %v831 = vmax.f32 %v688, 0.0
    %v832 = vmax.f32 %v280, 0.0
    %v833 = vmax.f32 %v417, 0.0
    %v834 = vmax.f32 %v554, 0.0
    %v835 = vmax.f32 %v691, 0.0
    %v836 = vmax.f32 %v283, 0.0
    %v837 = vmax.f32 %v420, 0.0
    %v838 = vmax.f32 %v557, 0.0
    %v839 = vmax.f32 %v694, 0.0
    %v840 = vmax.f32 %v286, 0.0
    %v841 = vmax.f32 %v423, 0.0
    %v842 = vmax.f32 %v560, 0.0
    %v843 = vmax.f32 %v697, 0.0
    %v844 = vmax.f32 %v289, 0.0
    %v845 = vmax.f32 %v426, 0.0
    %v846 = vmax.f32 %v563, 0.0
    %v847 = vmax.f32 %v700, 0.0
    %v848 = vmax.f32 %v292, 0.0
    %v849 = vmax.f32 %v429, 0.0
    %v850 = vmax.f32 %v566, 0.0
    %v851 = vmax.f32 %v703, 0.0
    %v852 = vmax.f32 %v295, 0.0
    %v853 = vmax.f32 %v432, 0.0
    %v854 = vmax.f32 %v569, 0.0
    %v855 = vmax.f32 %v706, 0.0
    %v856 = vmax.f32 %v298, 0.0
    %v857 = vmax.f32 %v435, 0.0
    %v858 = vmax.f32 %v572, 0.0
    %v859 = vmax.f32 %v709, 0.0
    %v860 = vmax.f32 %v301, 0.0
    %v861 = vmax.f32 %v438, 0.0
    %v862 = vmax.f32 %v575, 0.0
    %v863 = vmax.f32 %v712, 0.0
    %v864 = vmax.f32 %v304, 0.0
    %v865 = vmax.f32 %v441, 0.0
    %v866 = vmax.f32 %v578, 0.0
    %v867 = vmax.f32 %v715, 0.0
    %v868 = vmax.f32 %v307, 0.0
    %v869 = vmax.f32 %v444, 0.0
    %v870 = vmax.f32 %v581, 0.0
    %v871 = vmax.f32 %v718, 0.0
    %v872 = vmax.f32 %v310, 0.0
    %v873 = vmax.f32 %v447, 0.0
    %v874 = vmax.f32 %v584, 0.0
    %v875 = vmax.f32 %v721, 0.0
    %v876 = vmax.f32 %v313, 0.0
    %v877 = vmax.f32 %v450, 0.0
    %v878 = vmax.f32 %v587, 0.0
    %v879 = vmax.f32 %v724, 0.0
    %v880 = vmax.f32 %v316, 0.0
    %v881 = vmax.f32 %v453, 0.0
    %v882 = vmax.f32 %v590, 0.0
    %v883 = vmax.f32 %v727, 0.0
    %v884 = vmax.f32 %v319, 0.0
    %v885 = vmax.f32 %v456, 0.0
    %v886 = vmax.f32 %v593, 0.0
    %v887 = vmax.f32 %v730, 0.0
    %v888 = vmax.f32 %v322, 0.0
    %v889 = vmax.f32 %v459, 0.0
    %v890 = vmax.f32 %v596, 0.0
    %v891 = vmax.f32 %v733, 0.0
    %v892 = vmax.f32 %v325, 0.0
    %v893 = vmax.f32 %v462, 0.0
    %v894 = vmax.f32 %v599, 0.0
    %v895 = vmax.f32 %v736, 0.0
    %v896 = vmax.f32 %v328, 0.0
    %v897 = vmax.f32 %v465, 0.0
    %v898 = vmax.f32 %v602, 0.0
    %v899 = vmax.f32 %v739, 0.0
    %v900 = vmax.f32 %v331, 0.0
    %v901 = vmax.f32 %v468, 0.0
    %v902 = vmax.f32 %v605, 0.0
    %v903 = vmax.f32 %v742, 0.0
    %v904 = vld [vmem:[#allocation8] sm:$0xff]
    %v905 = vld [vmem:[#allocation8 + $0x8] sm:$0xff]
    %v906 = vld [vmem:[#allocation8 + $0x10] sm:$0xff]
    %v907 = vld [vmem:[#allocation8 + $0x18] sm:$0xff]
    %v908 = vld [vmem:[#allocation8 + $0x20] sm:$0xff]
    %v909 = vld [vmem:[#allocation8 + $0x28] sm:$0xff]
    %v910 = vld [vmem:[#allocation8 + $0x30] sm:$0xff]
    %v911 = vld [vmem:[#allocation8 + $0x38] sm:$0xff]
    %v912 = vld [vmem:[#allocation8 + $0x40] sm:$0xff]
    %v913 = vld [vmem:[#allocation8 + $0x48] sm:$0xff]
    %v914 = vld [vmem:[#allocation8 + $0x50] sm:$0xff]
    %v915 = vld [vmem:[#allocation8 + $0x58] sm:$0xff]
    %v916 = vld [vmem:[#allocation8 + $0x60] sm:$0xff]
    %v917 = vld [vmem:[#allocation8 + $0x68] sm:$0xff]
    %v918 = vld [vmem:[#allocation8 + $0x70] sm:$0xff]
    %v919 = vld [vmem:[#allocation8 + $0x78] sm:$0xff]
    %v920 = vld [vmem:[#allocation8 + $0x80] sm:$0xff]
    %v921 = vld [vmem:[#allocation8 + $0x88] sm:$0xff]
    %v922 = vld [vmem:[#allocation8 + $0x90] sm:$0xff]
    %v923 = vld [vmem:[#allocation8 + $0x98] sm:$0xff]
    %v924 = vld [vmem:[#allocation8 + $0xa0] sm:$0xff]
    %v925 = vld [vmem:[#allocation8 + $0xa8] sm:$0xff]
    %v926 = vld [vmem:[#allocation8 + $0xb0] sm:$0xff]
    %v927 = vld [vmem:[#allocation8 + $0xb8] sm:$0xff]
    %v928 = vld [vmem:[#allocation8 + $0xc0] sm:$0xff]
    %v929 = vld [vmem:[#allocation8 + $0xc8] sm:$0xff]
    %v930 = vld [vmem:[#allocation8 + $0xd0] sm:$0xff]
    %v931 = vld [vmem:[#allocation8 + $0xd8] sm:$0xff]
    %v932 = vld [vmem:[#allocation8 + $0xe0] sm:$0xff]
    %v933 = vld [vmem:[#allocation8 + $0xe8] sm:$0xff]
    %v934 = vld [vmem:[#allocation8 + $0xf0] sm:$0xff]
    %v935 = vld [vmem:[#allocation8 + $0xf8] sm:$0xff]
    %v936 = vld [vmem:[#allocation8 + $0x100] sm:$0xff]
    %v937 = vld [vmem:[#allocation8 + $0x108] sm:$0xff]
    %v938 = vld [vmem:[#allocation8 + $0x110] sm:$0xff]
    %v939 = vld [vmem:[#allocation8 + $0x118] sm:$0xff]
    %v940 = vld [vmem:[#allocation8 + $0x120] sm:$0xff]
    %v941 = vld [vmem:[#allocation8 + $0x128] sm:$0xff]
    %v942 = vld [vmem:[#allocation8 + $0x130] sm:$0xff]
    %v943 = vld [vmem:[#allocation8 + $0x138] sm:$0xff]
    %v944 = vld [vmem:[#allocation8 + $0x140] sm:$0xff]
    %v945 = vld [vmem:[#allocation8 + $0x148] sm:$0xff]
    %v946 = vld [vmem:[#allocation8 + $0x150] sm:$0xff]
    %v947 = vld [vmem:[#allocation8 + $0x158] sm:$0xff]
    %v948 = vld [vmem:[#allocation8 + $0x160] sm:$0xff]
    %v949 = vld [vmem:[#allocation8 + $0x168] sm:$0xff]
    %v950 = vld [vmem:[#allocation8 + $0x170] sm:$0xff]
    %v951 = vld [vmem:[#allocation8 + $0x178] sm:$0xff]
    %v952 = vld [vmem:[#allocation8 + $0x180] sm:$0xff]
    %v953 = vld [vmem:[#allocation8 + $0x188] sm:$0xff]
    %v954 = vld [vmem:[#allocation8 + $0x190] sm:$0xff]
    %v955 = vld [vmem:[#allocation8 + $0x198] sm:$0xff]
    %v956 = vld [vmem:[#allocation8 + $0x1a0] sm:$0xff]
    %v957 = vld [vmem:[#allocation8 + $0x1a8] sm:$0xff]
    %v958 = vld [vmem:[#allocation8 + $0x1b0] sm:$0xff]
    %v959 = vld [vmem:[#allocation8 + $0x1b8] sm:$0xff]
    %v960 = vld [vmem:[#allocation8 + $0x1c0] sm:$0xff]
    %v961 = vld [vmem:[#allocation8 + $0x1c8] sm:$0xff]
    %v962 = vld [vmem:[#allocation8 + $0x1d0] sm:$0xff]
    %v963 = vld [vmem:[#allocation8 + $0x1d8] sm:$0xff]
    %v964 = vld [vmem:[#allocation8 + $0x1e0] sm:$0xff]
    %v965 = vld [vmem:[#allocation8 + $0x1e8] sm:$0xff]
    %v966 = vld [vmem:[#allocation8 + $0x1f0] sm:$0xff]
    %v967 = vld [vmem:[#allocation8 + $0x1f8] sm:$0xff]
    %v968 = vld [vmem:[#allocation8 + $0x200] sm:$0xff]
    %v969 = vld [vmem:[#allocation8 + $0x208] sm:$0xff]
    %v970 = vld [vmem:[#allocation8 + $0x210] sm:$0xff]
    %v971 = vld [vmem:[#allocation8 + $0x218] sm:$0xff]
    %v972 = vld [vmem:[#allocation8 + $0x220] sm:$0xff]
    %v973 = vld [vmem:[#allocation8 + $0x228] sm:$0xff]
    %v974 = vld [vmem:[#allocation8 + $0x230] sm:$0xff]
    %v975 = vld [vmem:[#allocation8 + $0x238] sm:$0xff]
    %v976 = vld [vmem:[#allocation8 + $0x240] sm:$0xff]
    %v977 = vld [vmem:[#allocation8 + $0x248] sm:$0xff]
    %v978 = vld [vmem:[#allocation8 + $0x250] sm:$0xff]
    %v979 = vld [vmem:[#allocation8 + $0x258] sm:$0xff]
    %v980 = vld [vmem:[#allocation8 + $0x260] sm:$0xff]
    %v981 = vld [vmem:[#allocation8 + $0x268] sm:$0xff]
    %v982 = vld [vmem:[#allocation8 + $0x270] sm:$0xff]
    %v983 = vld [vmem:[#allocation8 + $0x278] sm:$0xff]
    %v984 = vld [vmem:[#allocation8 + $0x280] sm:$0xff]
    %v985 = vld [vmem:[#allocation8 + $0x288] sm:$0xff]
    %v986 = vld [vmem:[#allocation8 + $0x290] sm:$0xff]
    %v987 = vld [vmem:[#allocation8 + $0x298] sm:$0xff]
    %v988 = vld [vmem:[#allocation8 + $0x2a0] sm:$0xff]
    %v989 = vld [vmem:[#allocation8 + $0x2a8] sm:$0xff]
    %v990 = vld [vmem:[#allocation8 + $0x2b0] sm:$0xff]
    %v991 = vld [vmem:[#allocation8 + $0x2b8] sm:$0xff]
    %v992 = vld [vmem:[#allocation8 + $0x2c0] sm:$0xff]
    %v993 = vld [vmem:[#allocation8 + $0x2c8] sm:$0xff]
    %v994 = vld [vmem:[#allocation8 + $0x2d0] sm:$0xff]
    %v995 = vld [vmem:[#allocation8 + $0x2d8] sm:$0xff]
    %v996 = vld [vmem:[#allocation8 + $0x2e0] sm:$0xff]
    %v997 = vld [vmem:[#allocation8 + $0x2e8] sm:$0xff]
    %v998 = vld [vmem:[#allocation8 + $0x2f0] sm:$0xff]
    %v999 = vld [vmem:[#allocation8 + $0x2f8] sm:$0xff]
    %v1000 = vld [vmem:[#allocation8 + $0x300] sm:$0xff]
    %v1001 = vld [vmem:[#allocation8 + $0x308] sm:$0xff]
    %v1002 = vld [vmem:[#allocation8 + $0x310] sm:$0xff]
    %v1003 = vld [vmem:[#allocation8 + $0x318] sm:$0xff]
    %v1004 = vld [vmem:[#allocation8 + $0x320] sm:$0xff]
    %v1005 = vld [vmem:[#allocation8 + $0x328] sm:$0xff]
    %v1006 = vld [vmem:[#allocation8 + $0x330] sm:$0xff]
    %v1007 = vld [vmem:[#allocation8 + $0x338] sm:$0xff]
    %v1008 = vld [vmem:[#allocation8 + $0x340] sm:$0xff]
    %v1009 = vld [vmem:[#allocation8 + $0x348] sm:$0xff]
    %v1010 = vld [vmem:[#allocation8 + $0x350] sm:$0xff]
    %v1011 = vld [vmem:[#allocation8 + $0x358] sm:$0xff]
    %v1012 = vld [vmem:[#allocation8 + $0x360] sm:$0xff]
    %v1013 = vld [vmem:[#allocation8 + $0x368] sm:$0xff]
    %v1014 = vld [vmem:[#allocation8 + $0x370] sm:$0xff]
    %v1015 = vld [vmem:[#allocation8 + $0x378] sm:$0xff]
    %v1016 = vld [vmem:[#allocation8 + $0x380] sm:$0xff]
    %v1017 = vld [vmem:[#allocation8 + $0x388] sm:$0xff]
    %v1018 = vld [vmem:[#allocation8 + $0x390] sm:$0xff]
    %v1019 = vld [vmem:[#allocation8 + $0x398] sm:$0xff]
    %v1020 = vld [vmem:[#allocation8 + $0x3a0] sm:$0xff]
    %v1021 = vld [vmem:[#allocation8 + $0x3a8] sm:$0xff]
    %v1022 = vld [vmem:[#allocation8 + $0x3b0] sm:$0xff]
    %v1023 = vld [vmem:[#allocation8 + $0x3b8] sm:$0xff]
    %v1024 = vld [vmem:[#allocation8 + $0x3c0] sm:$0xff]
    %v1025 = vld [vmem:[#allocation8 + $0x3c8] sm:$0xff]
    %v1026 = vld [vmem:[#allocation8 + $0x3d0] sm:$0xff]
    %v1027 = vld [vmem:[#allocation8 + $0x3d8] sm:$0xff]
    %v1028 = vld [vmem:[#allocation8 + $0x3e0] sm:$0xff]
    %v1029 = vld [vmem:[#allocation8 + $0x3e8] sm:$0xff]
    %v1030 = vld [vmem:[#allocation8 + $0x3f0] sm:$0xff]
    %v1031 = vld [vmem:[#allocation8 + $0x3f8] sm:$0xff]
    %v1032 = vld [vmem:[%s4] sm:$0x3]
    %v1034 = vperm.slane %v1032, 0
    %v1035 = vperm.slane %v1032, 1
    %1038 = vmatpush.msra.mxu0 %v934
    %1039 = vmatpush.msra.mxu0 %v932
    %1040 = vmatpush.msra.mxu0 %v930
    %1041 = vmatpush.msra.mxu0 %v928
    %1042 = vmatpush.msra.mxu0 %v926
    %1043 = vmatpush.msra.mxu0 %v924
    %1044 = vmatpush.msra.mxu0 %v922
    %1045 = vmatpush.msra.mxu0 %v920
    %1046 = vmatpush.msra.mxu0 %v918
    %1047 = vmatpush.msra.mxu0 %v916
    %1048 = vmatpush.msra.mxu0 %v914
    %1049 = vmatpush.msra.mxu0 %v912
    %1050 = vmatpush.msra.mxu0 %v910
    %1051 = vmatpush.msra.mxu0 %v908
    %1052 = vmatpush.msra.mxu0 %v906
    %1053 = vmatpush.msra.mxu0 %v904
    %1054 = vmatmul.f32.gmra.mxu0 %v744
    %v1055 = vpop.f32.mrf.mxu0
    %v1056 = vadd.f32 %v1034, %v1055
    %1057 = vmatmul.f32.gmra.mxu0 %v748
    %v1058 = vpop.f32.mrf.mxu0
    %v1059 = vadd.f32 %v1034, %v1058
    %1060 = vmatmul.f32.gmra.mxu0 %v752
    %v1061 = vpop.f32.mrf.mxu0
    %v1062 = vadd.f32 %v1034, %v1061
    %1063 = vmatmul.f32.gmra.mxu0 %v756
    %v1064 = vpop.f32.mrf.mxu0
    %v1065 = vadd.f32 %v1034, %v1064
    %1066 = vmatmul.f32.gmra.mxu0 %v760
    %v1067 = vpop.f32.mrf.mxu0
    %v1068 = vadd.f32 %v1034, %v1067
    %1069 = vmatmul.f32.gmra.mxu0 %v764
    %v1070 = vpop.f32.mrf.mxu0
    %v1071 = vadd.f32 %v1034, %v1070
    %1072 = vmatmul.f32.gmra.mxu0 %v768
    %v1073 = vpop.f32.mrf.mxu0
    %v1074 = vadd.f32 %v1034, %v1073
    %1075 = vmatmul.f32.gmra.mxu0 %v772
    %v1076 = vpop.f32.mrf.mxu0
    %v1077 = vadd.f32 %v1034, %v1076
    %1078 = vmatmul.f32.gmra.mxu0 %v776
    %v1079 = vpop.f32.mrf.mxu0
    %v1080 = vadd.f32 %v1034, %v1079
    %1081 = vmatmul.f32.gmra.mxu0 %v780
    %v1082 = vpop.f32.mrf.mxu0
    %v1083 = vadd.f32 %v1034, %v1082
    %1084 = vmatmul.f32.gmra.mxu0 %v784
    %v1085 = vpop.f32.mrf.mxu0
    %v1086 = vadd.f32 %v1034, %v1085
    %1087 = vmatmul.f32.gmra.mxu0 %v788
    %v1088 = vpop.f32.mrf.mxu0
    %v1089 = vadd.f32 %v1034, %v1088
    %1090 = vmatmul.f32.gmra.mxu0 %v792
    %v1091 = vpop.f32.mrf.mxu0
    %v1092 = vadd.f32 %v1034, %v1091
    %1093 = vmatmul.f32.gmra.mxu0 %v796
    %v1094 = vpop.f32.mrf.mxu0
    %v1095 = vadd.f32 %v1034, %v1094
    %1096 = vmatmul.f32.gmra.mxu0 %v800
    %v1097 = vpop.f32.mrf.mxu0
    %v1098 = vadd.f32 %v1034, %v1097
    %1099 = vmatmul.f32.gmra.mxu0 %v804
    %v1100 = vpop.f32.mrf.mxu0
    %v1101 = vadd.f32 %v1034, %v1100
    %1102 = vmatmul.f32.gmra.mxu0 %v808
    %v1103 = vpop.f32.mrf.mxu0
    %v1104 = vadd.f32 %v1034, %v1103
    %1105 = vmatmul.f32.gmra.mxu0 %v812
    %v1106 = vpop.f32.mrf.mxu0
    %v1107 = vadd.f32 %v1034, %v1106
    %1108 = vmatmul.f32.gmra.mxu0 %v816
    %v1109 = vpop.f32.mrf.mxu0
    %v1110 = vadd.f32 %v1034, %v1109
    %1111 = vmatmul.f32.gmra.mxu0 %v820
    %v1112 = vpop.f32.mrf.mxu0
    %v1113 = vadd.f32 %v1034, %v1112
    %1114 = vmatmul.f32.gmra.mxu0 %v824
    %v1115 = vpop.f32.mrf.mxu0
    %v1116 = vadd.f32 %v1034, %v1115
    %1117 = vmatmul.f32.gmra.mxu0 %v828
    %v1118 = vpop.f32.mrf.mxu0
    %v1119 = vadd.f32 %v1034, %v1118
    %1120 = vmatmul.f32.gmra.mxu0 %v832
    %v1121 = vpop.f32.mrf.mxu0
    %v1122 = vadd.f32 %v1034, %v1121
    %1123 = vmatmul.f32.gmra.mxu0 %v836
    %v1124 = vpop.f32.mrf.mxu0
    %v1125 = vadd.f32 %v1034, %v1124
    %1126 = vmatmul.f32.gmra.mxu0 %v840
    %v1127 = vpop.f32.mrf.mxu0
    %v1128 = vadd.f32 %v1034, %v1127
    %1129 = vmatmul.f32.gmra.mxu0 %v844
    %v1130 = vpop.f32.mrf.mxu0
    %v1131 = vadd.f32 %v1034, %v1130
    %1132 = vmatmul.f32.gmra.mxu0 %v848
    %v1133 = vpop.f32.mrf.mxu0
    %v1134 = vadd.f32 %v1034, %v1133
    %1135 = vmatmul.f32.gmra.mxu0 %v852
    %v1136 = vpop.f32.mrf.mxu0
    %v1137 = vadd.f32 %v1034, %v1136
    %1138 = vmatmul.f32.gmra.mxu0 %v856
    %v1139 = vpop.f32.mrf.mxu0
    %v1140 = vadd.f32 %v1034, %v1139
    %1141 = vmatmul.f32.gmra.mxu0 %v860
    %v1142 = vpop.f32.mrf.mxu0
    %v1143 = vadd.f32 %v1034, %v1142
    %1144 = vmatmul.f32.gmra.mxu0 %v864
    %v1145 = vpop.f32.mrf.mxu0
    %v1146 = vadd.f32 %v1034, %v1145
    %1147 = vmatmul.f32.gmra.mxu0 %v868
    %v1148 = vpop.f32.mrf.mxu0
    %v1149 = vadd.f32 %v1034, %v1148
    %1150 = vmatmul.f32.gmra.mxu0 %v872
    %v1151 = vpop.f32.mrf.mxu0
    %v1152 = vadd.f32 %v1034, %v1151
    %1153 = vmatmul.f32.gmra.mxu0 %v876
    %v1154 = vpop.f32.mrf.mxu0
    %v1155 = vadd.f32 %v1034, %v1154
    %1156 = vmatmul.f32.gmra.mxu0 %v880
    %v1157 = vpop.f32.mrf.mxu0
    %v1158 = vadd.f32 %v1034, %v1157
    %1159 = vmatmul.f32.gmra.mxu0 %v884
    %v1160 = vpop.f32.mrf.mxu0
    %v1161 = vadd.f32 %v1034, %v1160
    %1162 = vmatmul.f32.gmra.mxu0 %v888
    %v1163 = vpop.f32.mrf.mxu0
    %v1164 = vadd.f32 %v1034, %v1163
    %1165 = vmatmul.f32.gmra.mxu0 %v892
    %v1166 = vpop.f32.mrf.mxu0
    %v1167 = vadd.f32 %v1034, %v1166
    %1168 = vmatmul.f32.gmra.mxu0 %v896
    %v1169 = vpop.f32.mrf.mxu0
    %v1170 = vadd.f32 %v1034, %v1169
    %1171 = vmatmul.f32.gmra.mxu0 %v900
    %v1172 = vpop.f32.mrf.mxu0
    %v1173 = vadd.f32 %v1034, %v1172
    %1174 = vdwg.mxu0
    %1175 = vmatpush.msra.mxu0 %v966
    %1176 = vmatpush.msra.mxu0 %v964
    %1177 = vmatpush.msra.mxu0 %v962
    %1178 = vmatpush.msra.mxu0 %v960
    %1179 = vmatpush.msra.mxu0 %v958
    %1180 = vmatpush.msra.mxu0 %v956
    %1181 = vmatpush.msra.mxu0 %v954
    %1182 = vmatpush.msra.mxu0 %v952
    %1183 = vmatpush.msra.mxu0 %v950
    %1184 = vmatpush.msra.mxu0 %v948
    %1185 = vmatpush.msra.mxu0 %v946
    %1186 = vmatpush.msra.mxu0 %v944
    %1187 = vmatpush.msra.mxu0 %v942
    %1188 = vmatpush.msra.mxu0 %v940
    %1189 = vmatpush.msra.mxu0 %v938
    %1190 = vmatpush.msra.mxu0 %v936
    %1191 = vmatmul.f32.gmra.mxu0 %v745
    %v1192 = vpop.f32.mrf.mxu0
    %v1193 = vadd.f32 %v1056, %v1192
    %1194 = vmatmul.f32.gmra.mxu0 %v749
    %v1195 = vpop.f32.mrf.mxu0
    %v1196 = vadd.f32 %v1059, %v1195
    %1197 = vmatmul.f32.gmra.mxu0 %v753
    %v1198 = vpop.f32.mrf.mxu0
    %v1199 = vadd.f32 %v1062, %v1198
    %1200 = vmatmul.f32.gmra.mxu0 %v757
    %v1201 = vpop.f32.mrf.mxu0
    %v1202 = vadd.f32 %v1065, %v1201
    %1203 = vmatmul.f32.gmra.mxu0 %v761
    %v1204 = vpop.f32.mrf.mxu0
    %v1205 = vadd.f32 %v1068, %v1204
    %1206 = vmatmul.f32.gmra.mxu0 %v765
    %v1207 = vpop.f32.mrf.mxu0
    %v1208 = vadd.f32 %v1071, %v1207
    %1209 = vmatmul.f32.gmra.mxu0 %v769
    %v1210 = vpop.f32.mrf.mxu0
    %v1211 = vadd.f32 %v1074, %v1210
    %1212 = vmatmul.f32.gmra.mxu0 %v773
    %v1213 = vpop.f32.mrf.mxu0
    %v1214 = vadd.f32 %v1077, %v1213
    %1215 = vmatmul.f32.gmra.mxu0 %v777
    %v1216 = vpop.f32.mrf.mxu0
    %v1217 = vadd.f32 %v1080, %v1216
    %1218 = vmatmul.f32.gmra.mxu0 %v781
    %v1219 = vpop.f32.mrf.mxu0
    %v1220 = vadd.f32 %v1083, %v1219
    %1221 = vmatmul.f32.gmra.mxu0 %v785
    %v1222 = vpop.f32.mrf.mxu0
    %v1223 = vadd.f32 %v1086, %v1222
    %1224 = vmatmul.f32.gmra.mxu0 %v789
    %v1225 = vpop.f32.mrf.mxu0
    %v1226 = vadd.f32 %v1089, %v1225
    %1227 = vmatmul.f32.gmra.mxu0 %v793
    %v1228 = vpop.f32.mrf.mxu0
    %v1229 = vadd.f32 %v1092, %v1228
    %1230 = vmatmul.f32.gmra.mxu0 %v797
    %v1231 = vpop.f32.mrf.mxu0
    %v1232 = vadd.f32 %v1095, %v1231
    %1233 = vmatmul.f32.gmra.mxu0 %v801
    %v1234 = vpop.f32.mrf.mxu0
    %v1235 = vadd.f32 %v1098, %v1234
    %1236 = vmatmul.f32.gmra.mxu0 %v805
    %v1237 = vpop.f32.mrf.mxu0
    %v1238 = vadd.f32 %v1101, %v1237
    %1239 = vmatmul.f32.gmra.mxu0 %v809
    %v1240 = vpop.f32.mrf.mxu0
    %v1241 = vadd.f32 %v1104, %v1240
    %1242 = vmatmul.f32.gmra.mxu0 %v813
    %v1243 = vpop.f32.mrf.mxu0
    %v1244 = vadd.f32 %v1107, %v1243
    %1245 = vmatmul.f32.gmra.mxu0 %v817
    %v1246 = vpop.f32.mrf.mxu0
    %v1247 = vadd.f32 %v1110, %v1246
    %1248 = vmatmul.f32.gmra.mxu0 %v821
    %v1249 = vpop.f32.mrf.mxu0
    %v1250 = vadd.f32 %v1113, %v1249
    %1251 = vmatmul.f32.gmra.mxu0 %v825
    %v1252 = vpop.f32.mrf.mxu0
    %v1253 = vadd.f32 %v1116, %v1252
    %1254 = vmatmul.f32.gmra.mxu0 %v829
    %v1255 = vpop.f32.mrf.mxu0
    %v1256 = vadd.f32 %v1119, %v1255
    %1257 = vmatmul.f32.gmra.mxu0 %v833
    %v1258 = vpop.f32.mrf.mxu0
    %v1259 = vadd.f32 %v1122, %v1258
    %1260 = vmatmul.f32.gmra.mxu0 %v837
    %v1261 = vpop.f32.mrf.mxu0
    %v1262 = vadd.f32 %v1125, %v1261
    %1263 = vmatmul.f32.gmra.mxu0 %v841
    %v1264 = vpop.f32.mrf.mxu0
    %v1265 = vadd.f32 %v1128, %v1264
    %1266 = vmatmul.f32.gmra.mxu0 %v845
    %v1267 = vpop.f32.mrf.mxu0
    %v1268 = vadd.f32 %v1131, %v1267
    %1269 = vmatmul.f32.gmra.mxu0 %v849
    %v1270 = vpop.f32.mrf.mxu0
    %v1271 = vadd.f32 %v1134, %v1270
    %1272 = vmatmul.f32.gmra.mxu0 %v853
    %v1273 = vpop.f32.mrf.mxu0
    %v1274 = vadd.f32 %v1137, %v1273
    %1275 = vmatmul.f32.gmra.mxu0 %v857
    %v1276 = vpop.f32.mrf.mxu0
    %v1277 = vadd.f32 %v1140, %v1276
    %1278 = vmatmul.f32.gmra.mxu0 %v861
    %v1279 = vpop.f32.mrf.mxu0
    %v1280 = vadd.f32 %v1143, %v1279
    %1281 = vmatmul.f32.gmra.mxu0 %v865
    %v1282 = vpop.f32.mrf.mxu0
    %v1283 = vadd.f32 %v1146, %v1282
    %1284 = vmatmul.f32.gmra.mxu0 %v869
    %v1285 = vpop.f32.mrf.mxu0
    %v1286 = vadd.f32 %v1149, %v1285
    %1287 = vmatmul.f32.gmra.mxu0 %v873
    %v1288 = vpop.f32.mrf.mxu0
    %v1289 = vadd.f32 %v1152, %v1288
    %1290 = vmatmul.f32.gmra.mxu0 %v877
    %v1291 = vpop.f32.mrf.mxu0
    %v1292 = vadd.f32 %v1155, %v1291
    %1293 = vmatmul.f32.gmra.mxu0 %v881
    %v1294 = vpop.f32.mrf.mxu0
    %v1295 = vadd.f32 %v1158, %v1294
    %1296 = vmatmul.f32.gmra.mxu0 %v885
    %v1297 = vpop.f32.mrf.mxu0
    %v1298 = vadd.f32 %v1161, %v1297
    %1299 = vmatmul.f32.gmra.mxu0 %v889
    %v1300 = vpop.f32.mrf.mxu0
    %v1301 = vadd.f32 %v1164, %v1300
    %1302 = vmatmul.f32.gmra.mxu0 %v893
    %v1303 = vpop.f32.mrf.mxu0
    %v1304 = vadd.f32 %v1167, %v1303
    %1305 = vmatmul.f32.gmra.mxu0 %v897
    %v1306 = vpop.f32.mrf.mxu0
    %v1307 = vadd.f32 %v1170, %v1306
    %1308 = vmatmul.f32.gmra.mxu0 %v901
    %v1309 = vpop.f32.mrf.mxu0
    %v1310 = vadd.f32 %v1173, %v1309
    %1311 = vdwg.mxu0
    %1312 = vmatpush.msra.mxu0 %v998
    %1313 = vmatpush.msra.mxu0 %v996
    %1314 = vmatpush.msra.mxu0 %v994
    %1315 = vmatpush.msra.mxu0 %v992
    %1316 = vmatpush.msra.mxu0 %v990
    %1317 = vmatpush.msra.mxu0 %v988
    %1318 = vmatpush.msra.mxu0 %v986
    %1319 = vmatpush.msra.mxu0 %v984
    %1320 = vmatpush.msra.mxu0 %v982
    %1321 = vmatpush.msra.mxu0 %v980
    %1322 = vmatpush.msra.mxu0 %v978
    %1323 = vmatpush.msra.mxu0 %v976
    %1324 = vmatpush.msra.mxu0 %v974
    %1325 = vmatpush.msra.mxu0 %v972
    %1326 = vmatpush.msra.mxu0 %v970
    %1327 = vmatpush.msra.mxu0 %v968
    %1328 = vmatmul.f32.gmra.mxu0 %v746
    %v1329 = vpop.f32.mrf.mxu0
    %v1330 = vadd.f32 %v1193, %v1329
    %1331 = vmatmul.f32.gmra.mxu0 %v750
    %v1332 = vpop.f32.mrf.mxu0
    %v1333 = vadd.f32 %v1196, %v1332
    %1334 = vmatmul.f32.gmra.mxu0 %v754
    %v1335 = vpop.f32.mrf.mxu0
    %v1336 = vadd.f32 %v1199, %v1335
    %1337 = vmatmul.f32.gmra.mxu0 %v758
    %v1338 = vpop.f32.mrf.mxu0
    %v1339 = vadd.f32 %v1202, %v1338
    %1340 = vmatmul.f32.gmra.mxu0 %v762
    %v1341 = vpop.f32.mrf.mxu0
    %v1342 = vadd.f32 %v1205, %v1341
    %1343 = vmatmul.f32.gmra.mxu0 %v766
    %v1344 = vpop.f32.mrf.mxu0
    %v1345 = vadd.f32 %v1208, %v1344
    %1346 = vmatmul.f32.gmra.mxu0 %v770
    %v1347 = vpop.f32.mrf.mxu0
    %v1348 = vadd.f32 %v1211, %v1347
    %1349 = vmatmul.f32.gmra.mxu0 %v774
    %v1350 = vpop.f32.mrf.mxu0
    %v1351 = vadd.f32 %v1214, %v1350
    %1352 = vmatmul.f32.gmra.mxu0 %v778
    %v1353 = vpop.f32.mrf.mxu0
    %v1354 = vadd.f32 %v1217, %v1353
    %1355 = vmatmul.f32.gmra.mxu0 %v782
    %v1356 = vpop.f32.mrf.mxu0
    %v1357 = vadd.f32 %v1220, %v1356
    %1358 = vmatmul.f32.gmra.mxu0 %v786
    %v1359 = vpop.f32.mrf.mxu0
    %v1360 = vadd.f32 %v1223, %v1359
    %1361 = vmatmul.f32.gmra.mxu0 %v790
    %v1362 = vpop.f32.mrf.mxu0
    %v1363 = vadd.f32 %v1226, %v1362
    %1364 = vmatmul.f32.gmra.mxu0 %v794
    %v1365 = vpop.f32.mrf.mxu0
    %v1366 = vadd.f32 %v1229, %v1365
    %1367 = vmatmul.f32.gmra.mxu0 %v798
    %v1368 = vpop.f32.mrf.mxu0
    %v1369 = vadd.f32 %v1232, %v1368
    %1370 = vmatmul.f32.gmra.mxu0 %v802
    %v1371 = vpop.f32.mrf.mxu0
    %v1372 = vadd.f32 %v1235, %v1371
    %1373 = vmatmul.f32.gmra.mxu0 %v806
    %v1374 = vpop.f32.mrf.mxu0
    %v1375 = vadd.f32 %v1238, %v1374
    %1376 = vmatmul.f32.gmra.mxu0 %v810
    %v1377 = vpop.f32.mrf.mxu0
    %v1378 = vadd.f32 %v1241, %v1377
    %1379 = vmatmul.f32.gmra.mxu0 %v814
    %v1380 = vpop.f32.mrf.mxu0
    %v1381 = vadd.f32 %v1244, %v1380
    %1382 = vmatmul.f32.gmra.mxu0 %v818
    %v1383 = vpop.f32.mrf.mxu0
    %v1384 = vadd.f32 %v1247, %v1383
    %1385 = vmatmul.f32.gmra.mxu0 %v822
    %v1386 = vpop.f32.mrf.mxu0
    %v1387 = vadd.f32 %v1250, %v1386
    %1388 = vmatmul.f32.gmra.mxu0 %v826
    %v1389 = vpop.f32.mrf.mxu0
    %v1390 = vadd.f32 %v1253, %v1389
    %1391 = vmatmul.f32.gmra.mxu0 %v830
    %v1392 = vpop.f32.mrf.mxu0
    %v1393 = vadd.f32 %v1256, %v1392
    %1394 = vmatmul.f32.gmra.mxu0 %v834
    %v1395 = vpop.f32.mrf.mxu0
    %v1396 = vadd.f32 %v1259, %v1395
    %1397 = vmatmul.f32.gmra.mxu0 %v838
    %v1398 = vpop.f32.mrf.mxu0
    %v1399 = vadd.f32 %v1262, %v1398
    %1400 = vmatmul.f32.gmra.mxu0 %v842
    %v1401 = vpop.f32.mrf.mxu0
    %v1402 = vadd.f32 %v1265, %v1401
    %1403 = vmatmul.f32.gmra.mxu0 %v846
    %v1404 = vpop.f32.mrf.mxu0
    %v1405 = vadd.f32 %v1268, %v1404
    %1406 = vmatmul.f32.gmra.mxu0 %v850
    %v1407 = vpop.f32.mrf.mxu0
    %v1408 = vadd.f32 %v1271, %v1407
    %1409 = vmatmul.f32.gmra.mxu0 %v854
    %v1410 = vpop.f32.mrf.mxu0
    %v1411 = vadd.f32 %v1274, %v1410
    %1412 = vmatmul.f32.gmra.mxu0 %v858
    %v1413 = vpop.f32.mrf.mxu0
    %v1414 = vadd.f32 %v1277, %v1413
    %1415 = vmatmul.f32.gmra.mxu0 %v862
    %v1416 = vpop.f32.mrf.mxu0
    %v1417 = vadd.f32 %v1280, %v1416
    %1418 = vmatmul.f32.gmra.mxu0 %v866
    %v1419 = vpop.f32.mrf.mxu0
    %v1420 = vadd.f32 %v1283, %v1419
    %1421 = vmatmul.f32.gmra.mxu0 %v870
    %v1422 = vpop.f32.mrf.mxu0
    %v1423 = vadd.f32 %v1286, %v1422
    %1424 = vmatmul.f32.gmra.mxu0 %v874
    %v1425 = vpop.f32.mrf.mxu0
    %v1426 = vadd.f32 %v1289, %v1425
    %1427 = vmatmul.f32.gmra.mxu0 %v878
    %v1428 = vpop.f32.mrf.mxu0
    %v1429 = vadd.f32 %v1292, %v1428
    %1430 = vmatmul.f32.gmra.mxu0 %v882
    %v1431 = vpop.f32.mrf.mxu0
    %v1432 = vadd.f32 %v1295, %v1431
    %1433 = vmatmul.f32.gmra.mxu0 %v886
    %v1434 = vpop.f32.mrf.mxu0
    %v1435 = vadd.f32 %v1298, %v1434
    %1436 = vmatmul.f32.gmra.mxu0 %v890
    %v1437 = vpop.f32.mrf.mxu0
    %v1438 = vadd.f32 %v1301, %v1437
    %1439 = vmatmul.f32.gmra.mxu0 %v894
    %v1440 = vpop.f32.mrf.mxu0
    %v1441 = vadd.f32 %v1304, %v1440
    %1442 = vmatmul.f32.gmra.mxu0 %v898
    %v1443 = vpop.f32.mrf.mxu0
    %v1444 = vadd.f32 %v1307, %v1443
    %1445 = vmatmul.f32.gmra.mxu0 %v902
    %v1446 = vpop.f32.mrf.mxu0
    %v1447 = vadd.f32 %v1310, %v1446
    %1448 = vdwg.mxu0
    %1449 = vmatpush.msra.mxu0 %v1030
    %1450 = vmatpush.msra.mxu0 %v1028
    %1451 = vmatpush.msra.mxu0 %v1026
    %1452 = vmatpush.msra.mxu0 %v1024
    %1453 = vmatpush.msra.mxu0 %v1022
    %1454 = vmatpush.msra.mxu0 %v1020
    %1455 = vmatpush.msra.mxu0 %v1018
    %1456 = vmatpush.msra.mxu0 %v1016
    %1457 = vmatpush.msra.mxu0 %v1014
    %1458 = vmatpush.msra.mxu0 %v1012
    %1459 = vmatpush.msra.mxu0 %v1010
    %1460 = vmatpush.msra.mxu0 %v1008
    %1461 = vmatpush.msra.mxu0 %v1006
    %1462 = vmatpush.msra.mxu0 %v1004
    %1463 = vmatpush.msra.mxu0 %v1002
    %1464 = vmatpush.msra.mxu0 %v1000
    %1465 = vmatmul.f32.gmra.mxu0 %v747
    %v1466 = vpop.f32.mrf.mxu0
    %v1467 = vadd.f32 %v1330, %v1466
    %1468 = vmatmul.f32.gmra.mxu0 %v751
    %v1469 = vpop.f32.mrf.mxu0
    %v1470 = vadd.f32 %v1333, %v1469
    %1471 = vmatmul.f32.gmra.mxu0 %v755
    %v1472 = vpop.f32.mrf.mxu0
    %v1473 = vadd.f32 %v1336, %v1472
    %1474 = vmatmul.f32.gmra.mxu0 %v759
    %v1475 = vpop.f32.mrf.mxu0
    %v1476 = vadd.f32 %v1339, %v1475
    %1477 = vmatmul.f32.gmra.mxu0 %v763
    %v1478 = vpop.f32.mrf.mxu0
    %v1479 = vadd.f32 %v1342, %v1478
    %1480 = vmatmul.f32.gmra.mxu0 %v767
    %v1481 = vpop.f32.mrf.mxu0
    %v1482 = vadd.f32 %v1345, %v1481
    %1483 = vmatmul.f32.gmra.mxu0 %v771
    %v1484 = vpop.f32.mrf.mxu0
    %v1485 = vadd.f32 %v1348, %v1484
    %1486 = vmatmul.f32.gmra.mxu0 %v775
    %v1487 = vpop.f32.mrf.mxu0
    %v1488 = vadd.f32 %v1351, %v1487
    %1489 = vmatmul.f32.gmra.mxu0 %v779
    %v1490 = vpop.f32.mrf.mxu0
    %v1491 = vadd.f32 %v1354, %v1490
    %1492 = vmatmul.f32.gmra.mxu0 %v783
    %v1493 = vpop.f32.mrf.mxu0
    %v1494 = vadd.f32 %v1357, %v1493
    %1495 = vmatmul.f32.gmra.mxu0 %v787
    %v1496 = vpop.f32.mrf.mxu0
    %v1497 = vadd.f32 %v1360, %v1496
    %1498 = vmatmul.f32.gmra.mxu0 %v791
    %v1499 = vpop.f32.mrf.mxu0
    %v1500 = vadd.f32 %v1363, %v1499
    %1501 = vmatmul.f32.gmra.mxu0 %v795
    %v1502 = vpop.f32.mrf.mxu0
    %v1503 = vadd.f32 %v1366, %v1502
    %1504 = vmatmul.f32.gmra.mxu0 %v799
    %v1505 = vpop.f32.mrf.mxu0
    %v1506 = vadd.f32 %v1369, %v1505
    %1507 = vmatmul.f32.gmra.mxu0 %v803
    %v1508 = vpop.f32.mrf.mxu0
    %v1509 = vadd.f32 %v1372, %v1508
    %1510 = vmatmul.f32.gmra.mxu0 %v807
    %v1511 = vpop.f32.mrf.mxu0
    %v1512 = vadd.f32 %v1375, %v1511
    %1513 = vmatmul.f32.gmra.mxu0 %v811
    %v1514 = vpop.f32.mrf.mxu0
    %v1515 = vadd.f32 %v1378, %v1514
    %1516 = vmatmul.f32.gmra.mxu0 %v815
    %v1517 = vpop.f32.mrf.mxu0
    %v1518 = vadd.f32 %v1381, %v1517
    %1519 = vmatmul.f32.gmra.mxu0 %v819
    %v1520 = vpop.f32.mrf.mxu0
    %v1521 = vadd.f32 %v1384, %v1520
    %1522 = vmatmul.f32.gmra.mxu0 %v823
    %v1523 = vpop.f32.mrf.mxu0
    %v1524 = vadd.f32 %v1387, %v1523
    %1525 = vmatmul.f32.gmra.mxu0 %v827
    %v1526 = vpop.f32.mrf.mxu0
    %v1527 = vadd.f32 %v1390, %v1526
    %1528 = vmatmul.f32.gmra.mxu0 %v831
    %v1529 = vpop.f32.mrf.mxu0
    %v1530 = vadd.f32 %v1393, %v1529
    %1531 = vmatmul.f32.gmra.mxu0 %v835
    %v1532 = vpop.f32.mrf.mxu0
    %v1533 = vadd.f32 %v1396, %v1532
    %1534 = vmatmul.f32.gmra.mxu0 %v839
    %v1535 = vpop.f32.mrf.mxu0
    %v1536 = vadd.f32 %v1399, %v1535
    %1537 = vmatmul.f32.gmra.mxu0 %v843
    %v1538 = vpop.f32.mrf.mxu0
    %v1539 = vadd.f32 %v1402, %v1538
    %1540 = vmatmul.f32.gmra.mxu0 %v847
    %v1541 = vpop.f32.mrf.mxu0
    %v1542 = vadd.f32 %v1405, %v1541
    %1543 = vmatmul.f32.gmra.mxu0 %v851
    %v1544 = vpop.f32.mrf.mxu0
    %v1545 = vadd.f32 %v1408, %v1544
    %1546 = vmatmul.f32.gmra.mxu0 %v855
    %v1547 = vpop.f32.mrf.mxu0
    %v1548 = vadd.f32 %v1411, %v1547
    %1549 = vmatmul.f32.gmra.mxu0 %v859
    %v1550 = vpop.f32.mrf.mxu0
    %v1551 = vadd.f32 %v1414, %v1550
    %1552 = vmatmul.f32.gmra.mxu0 %v863
    %v1553 = vpop.f32.mrf.mxu0
    %v1554 = vadd.f32 %v1417, %v1553
    %1555 = vmatmul.f32.gmra.mxu0 %v867
    %v1556 = vpop.f32.mrf.mxu0
    %v1557 = vadd.f32 %v1420, %v1556
    %1558 = vmatmul.f32.gmra.mxu0 %v871
    %v1559 = vpop.f32.mrf.mxu0
    %v1560 = vadd.f32 %v1423, %v1559
    %1561 = vmatmul.f32.gmra.mxu0 %v875
    %v1562 = vpop.f32.mrf.mxu0
    %v1563 = vadd.f32 %v1426, %v1562
    %1564 = vmatmul.f32.gmra.mxu0 %v879
    %v1565 = vpop.f32.mrf.mxu0
    %v1566 = vadd.f32 %v1429, %v1565
    %1567 = vmatmul.f32.gmra.mxu0 %v883
    %v1568 = vpop.f32.mrf.mxu0
    %v1569 = vadd.f32 %v1432, %v1568
    %1570 = vmatmul.f32.gmra.mxu0 %v887
    %v1571 = vpop.f32.mrf.mxu0
    %v1572 = vadd.f32 %v1435, %v1571
    %1573 = vmatmul.f32.gmra.mxu0 %v891
    %v1574 = vpop.f32.mrf.mxu0
    %v1575 = vadd.f32 %v1438, %v1574
    %1576 = vmatmul.f32.gmra.mxu0 %v895
    %v1577 = vpop.f32.mrf.mxu0
    %v1578 = vadd.f32 %v1441, %v1577
    %1579 = vmatmul.f32.gmra.mxu0 %v899
    %v1580 = vpop.f32.mrf.mxu0
    %v1581 = vadd.f32 %v1444, %v1580
    %1582 = vmatmul.f32.gmra.mxu0 %v903
    %v1583 = vpop.f32.mrf.mxu0
    %v1584 = vadd.f32 %v1447, %v1583
    %1585 = vdwg.mxu0
    %1586 = vmatpush.msra.mxu0 %v935
    %1587 = vmatpush.msra.mxu0 %v933
    %1588 = vmatpush.msra.mxu0 %v931
    %1589 = vmatpush.msra.mxu0 %v929
    %1590 = vmatpush.msra.mxu0 %v927
    %1591 = vmatpush.msra.mxu0 %v925
    %1592 = vmatpush.msra.mxu0 %v923
    %1593 = vmatpush.msra.mxu0 %v921
    %1594 = vmatpush.msra.mxu0 %v919
    %1595 = vmatpush.msra.mxu0 %v917
    %1596 = vmatpush.msra.mxu0 %v915
    %1597 = vmatpush.msra.mxu0 %v913
    %1598 = vmatpush.msra.mxu0 %v911
    %1599 = vmatpush.msra.mxu0 %v909
    %1600 = vmatpush.msra.mxu0 %v907
    %1601 = vmatpush.msra.mxu0 %v905
    %1602 = vmatmul.f32.gmra.mxu0 %v744
    %v1603 = vpop.f32.mrf.mxu0
    %v1604 = vadd.f32 %v1035, %v1603
    %1605 = vmatmul.f32.gmra.mxu0 %v748
    %v1606 = vpop.f32.mrf.mxu0
    %v1607 = vadd.f32 %v1035, %v1606
    %1608 = vmatmul.f32.gmra.mxu0 %v752
    %v1609 = vpop.f32.mrf.mxu0
    %v1610 = vadd.f32 %v1035, %v1609
    %1611 = vmatmul.f32.gmra.mxu0 %v756
    %v1612 = vpop.f32.mrf.mxu0
    %v1613 = vadd.f32 %v1035, %v1612
    %1614 = vmatmul.f32.gmra.mxu0 %v760
    %v1615 = vpop.f32.mrf.mxu0
    %v1616 = vadd.f32 %v1035, %v1615
    %1617 = vmatmul.f32.gmra.mxu0 %v764
    %v1618 = vpop.f32.mrf.mxu0
    %v1619 = vadd.f32 %v1035, %v1618
    %1620 = vmatmul.f32.gmra.mxu0 %v768
    %v1621 = vpop.f32.mrf.mxu0
    %v1622 = vadd.f32 %v1035, %v1621
    %1623 = vmatmul.f32.gmra.mxu0 %v772
    %v1624 = vpop.f32.mrf.mxu0
    %v1625 = vadd.f32 %v1035, %v1624
    %1626 = vmatmul.f32.gmra.mxu0 %v776
    %v1627 = vpop.f32.mrf.mxu0
    %v1628 = vadd.f32 %v1035, %v1627
    %1629 = vmatmul.f32.gmra.mxu0 %v780
    %v1630 = vpop.f32.mrf.mxu0
    %v1631 = vadd.f32 %v1035, %v1630
    %1632 = vmatmul.f32.gmra.mxu0 %v784
    %v1633 = vpop.f32.mrf.mxu0
    %v1634 = vadd.f32 %v1035, %v1633
    %1635 = vmatmul.f32.gmra.mxu0 %v788
    %v1636 = vpop.f32.mrf.mxu0
    %v1637 = vadd.f32 %v1035, %v1636
    %1638 = vmatmul.f32.gmra.mxu0 %v792
    %v1639 = vpop.f32.mrf.mxu0
    %v1640 = vadd.f32 %v1035, %v1639
    %1641 = vmatmul.f32.gmra.mxu0 %v796
    %v1642 = vpop.f32.mrf.mxu0
    %v1643 = vadd.f32 %v1035, %v1642
    %1644 = vmatmul.f32.gmra.mxu0 %v800
    %v1645 = vpop.f32.mrf.mxu0
    %v1646 = vadd.f32 %v1035, %v1645
    %1647 = vmatmul.f32.gmra.mxu0 %v804
    %v1648 = vpop.f32.mrf.mxu0
    %v1649 = vadd.f32 %v1035, %v1648
    %1650 = vmatmul.f32.gmra.mxu0 %v808
    %v1651 = vpop.f32.mrf.mxu0
    %v1652 = vadd.f32 %v1035, %v1651
    %1653 = vmatmul.f32.gmra.mxu0 %v812
    %v1654 = vpop.f32.mrf.mxu0
    %v1655 = vadd.f32 %v1035, %v1654
    %1656 = vmatmul.f32.gmra.mxu0 %v816
    %v1657 = vpop.f32.mrf.mxu0
    %v1658 = vadd.f32 %v1035, %v1657
    %1659 = vmatmul.f32.gmra.mxu0 %v820
    %v1660 = vpop.f32.mrf.mxu0
    %v1661 = vadd.f32 %v1035, %v1660
    %1662 = vmatmul.f32.gmra.mxu0 %v824
    %v1663 = vpop.f32.mrf.mxu0
    %v1664 = vadd.f32 %v1035, %v1663
    %1665 = vmatmul.f32.gmra.mxu0 %v828
    %v1666 = vpop.f32.mrf.mxu0
    %v1667 = vadd.f32 %v1035, %v1666
    %1668 = vmatmul.f32.gmra.mxu0 %v832
    %v1669 = vpop.f32.mrf.mxu0
    %v1670 = vadd.f32 %v1035, %v1669
    %1671 = vmatmul.f32.gmra.mxu0 %v836
    %v1672 = vpop.f32.mrf.mxu0
    %v1673 = vadd.f32 %v1035, %v1672
    %1674 = vmatmul.f32.gmra.mxu0 %v840
    %v1675 = vpop.f32.mrf.mxu0
    %v1676 = vadd.f32 %v1035, %v1675
    %1677 = vmatmul.f32.gmra.mxu0 %v844
    %v1678 = vpop.f32.mrf.mxu0
    %v1679 = vadd.f32 %v1035, %v1678
    %1680 = vmatmul.f32.gmra.mxu0 %v848
    %v1681 = vpop.f32.mrf.mxu0
    %v1682 = vadd.f32 %v1035, %v1681
    %1683 = vmatmul.f32.gmra.mxu0 %v852
    %v1684 = vpop.f32.mrf.mxu0
    %v1685 = vadd.f32 %v1035, %v1684
    %1686 = vmatmul.f32.gmra.mxu0 %v856
    %v1687 = vpop.f32.mrf.mxu0
    %v1688 = vadd.f32 %v1035, %v1687
    %1689 = vmatmul.f32.gmra.mxu0 %v860
    %v1690 = vpop.f32.mrf.mxu0
    %v1691 = vadd.f32 %v1035, %v1690
    %1692 = vmatmul.f32.gmra.mxu0 %v864
    %v1693 = vpop.f32.mrf.mxu0
    %v1694 = vadd.f32 %v1035, %v1693
    %1695 = vmatmul.f32.gmra.mxu0 %v868
    %v1696 = vpop.f32.mrf.mxu0
    %v1697 = vadd.f32 %v1035, %v1696
    %1698 = vmatmul.f32.gmra.mxu0 %v872
    %v1699 = vpop.f32.mrf.mxu0
    %v1700 = vadd.f32 %v1035, %v1699
    %1701 = vmatmul.f32.gmra.mxu0 %v876
    %v1702 = vpop.f32.mrf.mxu0
    %v1703 = vadd.f32 %v1035, %v1702
    %1704 = vmatmul.f32.gmra.mxu0 %v880
    %v1705 = vpop.f32.mrf.mxu0
    %v1706 = vadd.f32 %v1035, %v1705
    %1707 = vmatmul.f32.gmra.mxu0 %v884
    %v1708 = vpop.f32.mrf.mxu0
    %v1709 = vadd.f32 %v1035, %v1708
    %1710 = vmatmul.f32.gmra.mxu0 %v888
    %v1711 = vpop.f32.mrf.mxu0
    %v1712 = vadd.f32 %v1035, %v1711
    %1713 = vmatmul.f32.gmra.mxu0 %v892
    %v1714 = vpop.f32.mrf.mxu0
    %v1715 = vadd.f32 %v1035, %v1714
    %1716 = vmatmul.f32.gmra.mxu0 %v896
    %v1717 = vpop.f32.mrf.mxu0
    %v1718 = vadd.f32 %v1035, %v1717
    %1719 = vmatmul.f32.gmra.mxu0 %v900
    %v1720 = vpop.f32.mrf.mxu0
    %v1721 = vadd.f32 %v1035, %v1720
    %1722 = vdwg.mxu0
    %1723 = vmatpush.msra.mxu0 %v967
    %1724 = vmatpush.msra.mxu0 %v965
    %1725 = vmatpush.msra.mxu0 %v963
    %1726 = vmatpush.msra.mxu0 %v961
    %1727 = vmatpush.msra.mxu0 %v959
    %1728 = vmatpush.msra.mxu0 %v957
    %1729 = vmatpush.msra.mxu0 %v955
    %1730 = vmatpush.msra.mxu0 %v953
    %1731 = vmatpush.msra.mxu0 %v951
    %1732 = vmatpush.msra.mxu0 %v949
    %1733 = vmatpush.msra.mxu0 %v947
    %1734 = vmatpush.msra.mxu0 %v945
    %1735 = vmatpush.msra.mxu0 %v943
    %1736 = vmatpush.msra.mxu0 %v941
    %1737 = vmatpush.msra.mxu0 %v939
    %1738 = vmatpush.msra.mxu0 %v937
    %1739 = vmatmul.f32.gmra.mxu0 %v745
    %v1740 = vpop.f32.mrf.mxu0
    %v1741 = vadd.f32 %v1604, %v1740
    %1742 = vmatmul.f32.gmra.mxu0 %v749
    %v1743 = vpop.f32.mrf.mxu0
    %v1744 = vadd.f32 %v1607, %v1743
    %1745 = vmatmul.f32.gmra.mxu0 %v753
    %v1746 = vpop.f32.mrf.mxu0
    %v1747 = vadd.f32 %v1610, %v1746
    %1748 = vmatmul.f32.gmra.mxu0 %v757
    %v1749 = vpop.f32.mrf.mxu0
    %v1750 = vadd.f32 %v1613, %v1749
    %1751 = vmatmul.f32.gmra.mxu0 %v761
    %v1752 = vpop.f32.mrf.mxu0
    %v1753 = vadd.f32 %v1616, %v1752
    %1754 = vmatmul.f32.gmra.mxu0 %v765
    %v1755 = vpop.f32.mrf.mxu0
    %v1756 = vadd.f32 %v1619, %v1755
    %1757 = vmatmul.f32.gmra.mxu0 %v769
    %v1758 = vpop.f32.mrf.mxu0
    %v1759 = vadd.f32 %v1622, %v1758
    %1760 = vmatmul.f32.gmra.mxu0 %v773
    %v1761 = vpop.f32.mrf.mxu0
    %v1762 = vadd.f32 %v1625, %v1761
    %1763 = vmatmul.f32.gmra.mxu0 %v777
    %v1764 = vpop.f32.mrf.mxu0
    %v1765 = vadd.f32 %v1628, %v1764
    %1766 = vmatmul.f32.gmra.mxu0 %v781
    %v1767 = vpop.f32.mrf.mxu0
    %v1768 = vadd.f32 %v1631, %v1767
    %1769 = vmatmul.f32.gmra.mxu0 %v785
    %v1770 = vpop.f32.mrf.mxu0
    %v1771 = vadd.f32 %v1634, %v1770
    %1772 = vmatmul.f32.gmra.mxu0 %v789
    %v1773 = vpop.f32.mrf.mxu0
    %v1774 = vadd.f32 %v1637, %v1773
    %1775 = vmatmul.f32.gmra.mxu0 %v793
    %v1776 = vpop.f32.mrf.mxu0
    %v1777 = vadd.f32 %v1640, %v1776
    %1778 = vmatmul.f32.gmra.mxu0 %v797
    %v1779 = vpop.f32.mrf.mxu0
    %v1780 = vadd.f32 %v1643, %v1779
    %1781 = vmatmul.f32.gmra.mxu0 %v801
    %v1782 = vpop.f32.mrf.mxu0
    %v1783 = vadd.f32 %v1646, %v1782
    %1784 = vmatmul.f32.gmra.mxu0 %v805
    %v1785 = vpop.f32.mrf.mxu0
    %v1786 = vadd.f32 %v1649, %v1785
    %1787 = vmatmul.f32.gmra.mxu0 %v809
    %v1788 = vpop.f32.mrf.mxu0
    %v1789 = vadd.f32 %v1652, %v1788
    %1790 = vmatmul.f32.gmra.mxu0 %v813
    %v1791 = vpop.f32.mrf.mxu0
    %v1792 = vadd.f32 %v1655, %v1791
    %1793 = vmatmul.f32.gmra.mxu0 %v817
    %v1794 = vpop.f32.mrf.mxu0
    %v1795 = vadd.f32 %v1658, %v1794
    %1796 = vmatmul.f32.gmra.mxu0 %v821
    %v1797 = vpop.f32.mrf.mxu0
    %v1798 = vadd.f32 %v1661, %v1797
    %1799 = vmatmul.f32.gmra.mxu0 %v825
    %v1800 = vpop.f32.mrf.mxu0
    %v1801 = vadd.f32 %v1664, %v1800
    %1802 = vmatmul.f32.gmra.mxu0 %v829
    %v1803 = vpop.f32.mrf.mxu0
    %v1804 = vadd.f32 %v1667, %v1803
    %1805 = vmatmul.f32.gmra.mxu0 %v833
    %v1806 = vpop.f32.mrf.mxu0
    %v1807 = vadd.f32 %v1670, %v1806
    %1808 = vmatmul.f32.gmra.mxu0 %v837
    %v1809 = vpop.f32.mrf.mxu0
    %v1810 = vadd.f32 %v1673, %v1809
    %1811 = vmatmul.f32.gmra.mxu0 %v841
    %v1812 = vpop.f32.mrf.mxu0
    %v1813 = vadd.f32 %v1676, %v1812
    %1814 = vmatmul.f32.gmra.mxu0 %v845
    %v1815 = vpop.f32.mrf.mxu0
    %v1816 = vadd.f32 %v1679, %v1815
    %1817 = vmatmul.f32.gmra.mxu0 %v849
    %v1818 = vpop.f32.mrf.mxu0
    %v1819 = vadd.f32 %v1682, %v1818
    %1820 = vmatmul.f32.gmra.mxu0 %v853
    %v1821 = vpop.f32.mrf.mxu0
    %v1822 = vadd.f32 %v1685, %v1821
    %1823 = vmatmul.f32.gmra.mxu0 %v857
    %v1824 = vpop.f32.mrf.mxu0
    %v1825 = vadd.f32 %v1688, %v1824
    %1826 = vmatmul.f32.gmra.mxu0 %v861
    %v1827 = vpop.f32.mrf.mxu0
    %v1828 = vadd.f32 %v1691, %v1827
    %1829 = vmatmul.f32.gmra.mxu0 %v865
    %v1830 = vpop.f32.mrf.mxu0
    %v1831 = vadd.f32 %v1694, %v1830
    %1832 = vmatmul.f32.gmra.mxu0 %v869
    %v1833 = vpop.f32.mrf.mxu0
    %v1834 = vadd.f32 %v1697, %v1833
    %1835 = vmatmul.f32.gmra.mxu0 %v873
    %v1836 = vpop.f32.mrf.mxu0
    %v1837 = vadd.f32 %v1700, %v1836
    %1838 = vmatmul.f32.gmra.mxu0 %v877
    %v1839 = vpop.f32.mrf.mxu0
    %v1840 = vadd.f32 %v1703, %v1839
    %1841 = vmatmul.f32.gmra.mxu0 %v881
    %v1842 = vpop.f32.mrf.mxu0
    %v1843 = vadd.f32 %v1706, %v1842
    %1844 = vmatmul.f32.gmra.mxu0 %v885
    %v1845 = vpop.f32.mrf.mxu0
    %v1846 = vadd.f32 %v1709, %v1845
    %1847 = vmatmul.f32.gmra.mxu0 %v889
    %v1848 = vpop.f32.mrf.mxu0
    %v1849 = vadd.f32 %v1712, %v1848
    %1850 = vmatmul.f32.gmra.mxu0 %v893
    %v1851 = vpop.f32.mrf.mxu0
    %v1852 = vadd.f32 %v1715, %v1851
    %1853 = vmatmul.f32.gmra.mxu0 %v897
    %v1854 = vpop.f32.mrf.mxu0
    %v1855 = vadd.f32 %v1718, %v1854
    %1856 = vmatmul.f32.gmra.mxu0 %v901
    %v1857 = vpop.f32.mrf.mxu0
    %v1858 = vadd.f32 %v1721, %v1857
    %1859 = vdwg.mxu0
    %1860 = vmatpush.msra.mxu0 %v999
    %1861 = vmatpush.msra.mxu0 %v997
    %1862 = vmatpush.msra.mxu0 %v995
    %1863 = vmatpush.msra.mxu0 %v993
    %1864 = vmatpush.msra.mxu0 %v991
    %1865 = vmatpush.msra.mxu0 %v989
    %1866 = vmatpush.msra.mxu0 %v987
    %1867 = vmatpush.msra.mxu0 %v985
    %1868 = vmatpush.msra.mxu0 %v983
    %1869 = vmatpush.msra.mxu0 %v981
    %1870 = vmatpush.msra.mxu0 %v979
    %1871 = vmatpush.msra.mxu0 %v977
    %1872 = vmatpush.msra.mxu0 %v975
    %1873 = vmatpush.msra.mxu0 %v973
    %1874 = vmatpush.msra.mxu0 %v971
    %1875 = vmatpush.msra.mxu0 %v969
    %1876 = vmatmul.f32.gmra.mxu0 %v746
    %v1877 = vpop.f32.mrf.mxu0
    %v1878 = vadd.f32 %v1741, %v1877
    %1879 = vmatmul.f32.gmra.mxu0 %v750
    %v1880 = vpop.f32.mrf.mxu0
    %v1881 = vadd.f32 %v1744, %v1880
    %1882 = vmatmul.f32.gmra.mxu0 %v754
    %v1883 = vpop.f32.mrf.mxu0
    %v1884 = vadd.f32 %v1747, %v1883
    %1885 = vmatmul.f32.gmra.mxu0 %v758
    %v1886 = vpop.f32.mrf.mxu0
    %v1887 = vadd.f32 %v1750, %v1886
    %1888 = vmatmul.f32.gmra.mxu0 %v762
    %v1889 = vpop.f32.mrf.mxu0
    %v1890 = vadd.f32 %v1753, %v1889
    %1891 = vmatmul.f32.gmra.mxu0 %v766
    %v1892 = vpop.f32.mrf.mxu0
    %v1893 = vadd.f32 %v1756, %v1892
    %1894 = vmatmul.f32.gmra.mxu0 %v770
    %v1895 = vpop.f32.mrf.mxu0
    %v1896 = vadd.f32 %v1759, %v1895
    %1897 = vmatmul.f32.gmra.mxu0 %v774
    %v1898 = vpop.f32.mrf.mxu0
    %v1899 = vadd.f32 %v1762, %v1898
    %1900 = vmatmul.f32.gmra.mxu0 %v778
    %v1901 = vpop.f32.mrf.mxu0
    %v1902 = vadd.f32 %v1765, %v1901
    %1903 = vmatmul.f32.gmra.mxu0 %v782
    %v1904 = vpop.f32.mrf.mxu0
    %v1905 = vadd.f32 %v1768, %v1904
    %1906 = vmatmul.f32.gmra.mxu0 %v786
    %v1907 = vpop.f32.mrf.mxu0
    %v1908 = vadd.f32 %v1771, %v1907
    %1909 = vmatmul.f32.gmra.mxu0 %v790
    %v1910 = vpop.f32.mrf.mxu0
    %v1911 = vadd.f32 %v1774, %v1910
    %1912 = vmatmul.f32.gmra.mxu0 %v794
    %v1913 = vpop.f32.mrf.mxu0
    %v1914 = vadd.f32 %v1777, %v1913
    %1915 = vmatmul.f32.gmra.mxu0 %v798
    %v1916 = vpop.f32.mrf.mxu0
    %v1917 = vadd.f32 %v1780, %v1916
    %1918 = vmatmul.f32.gmra.mxu0 %v802
    %v1919 = vpop.f32.mrf.mxu0
    %v1920 = vadd.f32 %v1783, %v1919
    %1921 = vmatmul.f32.gmra.mxu0 %v806
    %v1922 = vpop.f32.mrf.mxu0
    %v1923 = vadd.f32 %v1786, %v1922
    %1924 = vmatmul.f32.gmra.mxu0 %v810
    %v1925 = vpop.f32.mrf.mxu0
    %v1926 = vadd.f32 %v1789, %v1925
    %1927 = vmatmul.f32.gmra.mxu0 %v814
    %v1928 = vpop.f32.mrf.mxu0
    %v1929 = vadd.f32 %v1792, %v1928
    %1930 = vmatmul.f32.gmra.mxu0 %v818
    %v1931 = vpop.f32.mrf.mxu0
    %v1932 = vadd.f32 %v1795, %v1931
    %1933 = vmatmul.f32.gmra.mxu0 %v822
    %v1934 = vpop.f32.mrf.mxu0
    %v1935 = vadd.f32 %v1798, %v1934
    %1936 = vmatmul.f32.gmra.mxu0 %v826
    %v1937 = vpop.f32.mrf.mxu0
    %v1938 = vadd.f32 %v1801, %v1937
    %1939 = vmatmul.f32.gmra.mxu0 %v830
    %v1940 = vpop.f32.mrf.mxu0
    %v1941 = vadd.f32 %v1804, %v1940
    %1942 = vmatmul.f32.gmra.mxu0 %v834
    %v1943 = vpop.f32.mrf.mxu0
    %v1944 = vadd.f32 %v1807, %v1943
    %1945 = vmatmul.f32.gmra.mxu0 %v838
    %v1946 = vpop.f32.mrf.mxu0
    %v1947 = vadd.f32 %v1810, %v1946
    %1948 = vmatmul.f32.gmra.mxu0 %v842
    %v1949 = vpop.f32.mrf.mxu0
    %v1950 = vadd.f32 %v1813, %v1949
    %1951 = vmatmul.f32.gmra.mxu0 %v846
    %v1952 = vpop.f32.mrf.mxu0
    %v1953 = vadd.f32 %v1816, %v1952
    %1954 = vmatmul.f32.gmra.mxu0 %v850
    %v1955 = vpop.f32.mrf.mxu0
    %v1956 = vadd.f32 %v1819, %v1955
    %1957 = vmatmul.f32.gmra.mxu0 %v854
    %v1958 = vpop.f32.mrf.mxu0
    %v1959 = vadd.f32 %v1822, %v1958
    %1960 = vmatmul.f32.gmra.mxu0 %v858
    %v1961 = vpop.f32.mrf.mxu0
    %v1962 = vadd.f32 %v1825, %v1961
    %1963 = vmatmul.f32.gmra.mxu0 %v862
    %v1964 = vpop.f32.mrf.mxu0
    %v1965 = vadd.f32 %v1828, %v1964
    %1966 = vmatmul.f32.gmra.mxu0 %v866
    %v1967 = vpop.f32.mrf.mxu0
    %v1968 = vadd.f32 %v1831, %v1967
    %1969 = vmatmul.f32.gmra.mxu0 %v870
    %v1970 = vpop.f32.mrf.mxu0
    %v1971 = vadd.f32 %v1834, %v1970
    %1972 = vmatmul.f32.gmra.mxu0 %v874
    %v1973 = vpop.f32.mrf.mxu0
    %v1974 = vadd.f32 %v1837, %v1973
    %1975 = vmatmul.f32.gmra.mxu0 %v878
    %v1976 = vpop.f32.mrf.mxu0
    %v1977 = vadd.f32 %v1840, %v1976
    %1978 = vmatmul.f32.gmra.mxu0 %v882
    %v1979 = vpop.f32.mrf.mxu0
    %v1980 = vadd.f32 %v1843, %v1979
    %1981 = vmatmul.f32.gmra.mxu0 %v886
    %v1982 = vpop.f32.mrf.mxu0
    %v1983 = vadd.f32 %v1846, %v1982
    %1984 = vmatmul.f32.gmra.mxu0 %v890
    %v1985 = vpop.f32.mrf.mxu0
    %v1986 = vadd.f32 %v1849, %v1985
    %1987 = vmatmul.f32.gmra.mxu0 %v894
    %v1988 = vpop.f32.mrf.mxu0
    %v1989 = vadd.f32 %v1852, %v1988
    %1990 = vmatmul.f32.gmra.mxu0 %v898
    %v1991 = vpop.f32.mrf.mxu0
    %v1992 = vadd.f32 %v1855, %v1991
    %1993 = vmatmul.f32.gmra.mxu0 %v902
    %v1994 = vpop.f32.mrf.mxu0
    %v1995 = vadd.f32 %v1858, %v1994
    %1996 = vdwg.mxu0
    %1997 = vmatpush.msra.mxu0 %v1031
    %1998 = vmatpush.msra.mxu0 %v1029
    %1999 = vmatpush.msra.mxu0 %v1027
    %2000 = vmatpush.msra.mxu0 %v1025
    %2001 = vmatpush.msra.mxu0 %v1023
    %2002 = vmatpush.msra.mxu0 %v1021
    %2003 = vmatpush.msra.mxu0 %v1019
    %2004 = vmatpush.msra.mxu0 %v1017
    %2005 = vmatpush.msra.mxu0 %v1015
    %2006 = vmatpush.msra.mxu0 %v1013
    %2007 = vmatpush.msra.mxu0 %v1011
    %2008 = vmatpush.msra.mxu0 %v1009
    %2009 = vmatpush.msra.mxu0 %v1007
    %2010 = vmatpush.msra.mxu0 %v1005
    %2011 = vmatpush.msra.mxu0 %v1003
    %2012 = vmatpush.msra.mxu0 %v1001
    %2013 = vmatmul.f32.gmra.mxu0 %v747
    %v2014 = vpop.f32.mrf.mxu0
    %v2015 = vadd.f32 %v1878, %v2014
    %2016 = vmatmul.f32.gmra.mxu0 %v751
    %v2017 = vpop.f32.mrf.mxu0
    %v2018 = vadd.f32 %v1881, %v2017
    %2019 = vmatmul.f32.gmra.mxu0 %v755
    %v2020 = vpop.f32.mrf.mxu0
    %v2021 = vadd.f32 %v1884, %v2020
    %2022 = vmatmul.f32.gmra.mxu0 %v759
    %v2023 = vpop.f32.mrf.mxu0
    %v2024 = vadd.f32 %v1887, %v2023
    %2025 = vmatmul.f32.gmra.mxu0 %v763
    %v2026 = vpop.f32.mrf.mxu0
    %v2027 = vadd.f32 %v1890, %v2026
    %2028 = vmatmul.f32.gmra.mxu0 %v767
    %v2029 = vpop.f32.mrf.mxu0
    %v2030 = vadd.f32 %v1893, %v2029
    %2031 = vmatmul.f32.gmra.mxu0 %v771
    %v2032 = vpop.f32.mrf.mxu0
    %v2033 = vadd.f32 %v1896, %v2032
    %2034 = vmatmul.f32.gmra.mxu0 %v775
    %v2035 = vpop.f32.mrf.mxu0
    %v2036 = vadd.f32 %v1899, %v2035
    %2037 = vmatmul.f32.gmra.mxu0 %v779
    %v2038 = vpop.f32.mrf.mxu0
    %v2039 = vadd.f32 %v1902, %v2038
    %2040 = vmatmul.f32.gmra.mxu0 %v783
    %v2041 = vpop.f32.mrf.mxu0
    %v2042 = vadd.f32 %v1905, %v2041
    %2043 = vmatmul.f32.gmra.mxu0 %v787
    %v2044 = vpop.f32.mrf.mxu0
    %v2045 = vadd.f32 %v1908, %v2044
    %2046 = vmatmul.f32.gmra.mxu0 %v791
    %v2047 = vpop.f32.mrf.mxu0
    %v2048 = vadd.f32 %v1911, %v2047
    %2049 = vmatmul.f32.gmra.mxu0 %v795
    %v2050 = vpop.f32.mrf.mxu0
    %v2051 = vadd.f32 %v1914, %v2050
    %2052 = vmatmul.f32.gmra.mxu0 %v799
    %v2053 = vpop.f32.mrf.mxu0
    %v2054 = vadd.f32 %v1917, %v2053
    %2055 = vmatmul.f32.gmra.mxu0 %v803
    %v2056 = vpop.f32.mrf.mxu0
    %v2057 = vadd.f32 %v1920, %v2056
    %2058 = vmatmul.f32.gmra.mxu0 %v807
    %v2059 = vpop.f32.mrf.mxu0
    %v2060 = vadd.f32 %v1923, %v2059
    %2061 = vmatmul.f32.gmra.mxu0 %v811
    %v2062 = vpop.f32.mrf.mxu0
    %v2063 = vadd.f32 %v1926, %v2062
    %2064 = vmatmul.f32.gmra.mxu0 %v815
    %v2065 = vpop.f32.mrf.mxu0
    %v2066 = vadd.f32 %v1929, %v2065
    %2067 = vmatmul.f32.gmra.mxu0 %v819
    %v2068 = vpop.f32.mrf.mxu0
    %v2069 = vadd.f32 %v1932, %v2068
    %2070 = vmatmul.f32.gmra.mxu0 %v823
    %v2071 = vpop.f32.mrf.mxu0
    %v2072 = vadd.f32 %v1935, %v2071
    %2073 = vmatmul.f32.gmra.mxu0 %v827
    %v2074 = vpop.f32.mrf.mxu0
    %v2075 = vadd.f32 %v1938, %v2074
    %2076 = vmatmul.f32.gmra.mxu0 %v831
    %v2077 = vpop.f32.mrf.mxu0
    %v2078 = vadd.f32 %v1941, %v2077
    %2079 = vmatmul.f32.gmra.mxu0 %v835
    %v2080 = vpop.f32.mrf.mxu0
    %v2081 = vadd.f32 %v1944, %v2080
    %2082 = vmatmul.f32.gmra.mxu0 %v839
    %v2083 = vpop.f32.mrf.mxu0
    %v2084 = vadd.f32 %v1947, %v2083
    %2085 = vmatmul.f32.gmra.mxu0 %v843
    %v2086 = vpop.f32.mrf.mxu0
    %v2087 = vadd.f32 %v1950, %v2086
    %2088 = vmatmul.f32.gmra.mxu0 %v847
    %v2089 = vpop.f32.mrf.mxu0
    %v2090 = vadd.f32 %v1953, %v2089
    %2091 = vmatmul.f32.gmra.mxu0 %v851
    %v2092 = vpop.f32.mrf.mxu0
    %v2093 = vadd.f32 %v1956, %v2092
    %2094 = vmatmul.f32.gmra.mxu0 %v855
    %v2095 = vpop.f32.mrf.mxu0
    %v2096 = vadd.f32 %v1959, %v2095
    %2097 = vmatmul.f32.gmra.mxu0 %v859
    %v2098 = vpop.f32.mrf.mxu0
    %v2099 = vadd.f32 %v1962, %v2098
    %2100 = vmatmul.f32.gmra.mxu0 %v863
    %v2101 = vpop.f32.mrf.mxu0
    %v2102 = vadd.f32 %v1965, %v2101
    %2103 = vmatmul.f32.gmra.mxu0 %v867
    %v2104 = vpop.f32.mrf.mxu0
    %v2105 = vadd.f32 %v1968, %v2104
    %2106 = vmatmul.f32.gmra.mxu0 %v871
    %v2107 = vpop.f32.mrf.mxu0
    %v2108 = vadd.f32 %v1971, %v2107
    %2109 = vmatmul.f32.gmra.mxu0 %v875
    %v2110 = vpop.f32.mrf.mxu0
    %v2111 = vadd.f32 %v1974, %v2110
    %2112 = vmatmul.f32.gmra.mxu0 %v879
    %v2113 = vpop.f32.mrf.mxu0
    %v2114 = vadd.f32 %v1977, %v2113
    %2115 = vmatmul.f32.gmra.mxu0 %v883
    %v2116 = vpop.f32.mrf.mxu0
    %v2117 = vadd.f32 %v1980, %v2116
    %2118 = vmatmul.f32.gmra.mxu0 %v887
    %v2119 = vpop.f32.mrf.mxu0
    %v2120 = vadd.f32 %v1983, %v2119
    %2121 = vmatmul.f32.gmra.mxu0 %v891
    %v2122 = vpop.f32.mrf.mxu0
    %v2123 = vadd.f32 %v1986, %v2122
    %2124 = vmatmul.f32.gmra.mxu0 %v895
    %v2125 = vpop.f32.mrf.mxu0
    %v2126 = vadd.f32 %v1989, %v2125
    %2127 = vmatmul.f32.gmra.mxu0 %v899
    %v2128 = vpop.f32.mrf.mxu0
    %v2129 = vadd.f32 %v1992, %v2128
    %2130 = vmatmul.f32.gmra.mxu0 %v903
    %v2131 = vpop.f32.mrf.mxu0
    %v2132 = vadd.f32 %v1995, %v2131
    %2133 = vdwg.mxu0
    %2134 = vst [vmem:[#allocation10] sm:$0xff] %v1467
    %2135 = vst [vmem:[#allocation10 + $0x8] sm:$0xff] %v2015
    %2136 = vst [vmem:[#allocation10 + $0x10] sm:$0xff] %v1470
    %2137 = vst [vmem:[#allocation10 + $0x18] sm:$0xff] %v2018
    %2138 = vst [vmem:[#allocation10 + $0x20] sm:$0xff] %v1473
    %2139 = vst [vmem:[#allocation10 + $0x28] sm:$0xff] %v2021
    %2140 = vst [vmem:[#allocation10 + $0x30] sm:$0xff] %v1476
    %2141 = vst [vmem:[#allocation10 + $0x38] sm:$0xff] %v2024
    %2142 = vst [vmem:[#allocation10 + $0x40] sm:$0xff] %v1479
    %2143 = vst [vmem:[#allocation10 + $0x48] sm:$0xff] %v2027
    %2144 = vst [vmem:[#allocation10 + $0x50] sm:$0xff] %v1482
    %2145 = vst [vmem:[#allocation10 + $0x58] sm:$0xff] %v2030
    %2146 = vst [vmem:[#allocation10 + $0x60] sm:$0xff] %v1485
    %2147 = vst [vmem:[#allocation10 + $0x68] sm:$0xff] %v2033
    %2148 = vst [vmem:[#allocation10 + $0x70] sm:$0xff] %v1488
    %2149 = vst [vmem:[#allocation10 + $0x78] sm:$0xff] %v2036
    %2150 = vst [vmem:[#allocation10 + $0x80] sm:$0xff] %v1491
    %2151 = vst [vmem:[#allocation10 + $0x88] sm:$0xff] %v2039
    %2152 = vst [vmem:[#allocation10 + $0x90] sm:$0xff] %v1494
    %2153 = vst [vmem:[#allocation10 + $0x98] sm:$0xff] %v2042
    %2154 = vst [vmem:[#allocation10 + $0xa0] sm:$0xff] %v1497
    %2155 = vst [vmem:[#allocation10 + $0xa8] sm:$0xff] %v2045
    %2156 = vst [vmem:[#allocation10 + $0xb0] sm:$0xff] %v1500
    %2157 = vst [vmem:[#allocation10 + $0xb8] sm:$0xff] %v2048
    %2158 = vst [vmem:[#allocation10 + $0xc0] sm:$0xff] %v1503
    %2159 = vst [vmem:[#allocation10 + $0xc8] sm:$0xff] %v2051
    %2160 = vst [vmem:[#allocation10 + $0xd0] sm:$0xff] %v1506
    %2161 = vst [vmem:[#allocation10 + $0xd8] sm:$0xff] %v2054
    %2162 = vst [vmem:[#allocation10 + $0xe0] sm:$0xff] %v1509
    %2163 = vst [vmem:[#allocation10 + $0xe8] sm:$0xff] %v2057
    %2164 = vst [vmem:[#allocation10 + $0xf0] sm:$0xff] %v1512
    %2165 = vst [vmem:[#allocation10 + $0xf8] sm:$0xff] %v2060
    %2166 = vst [vmem:[#allocation10 + $0x100] sm:$0xff] %v1515
    %2167 = vst [vmem:[#allocation10 + $0x108] sm:$0xff] %v2063
    %2168 = vst [vmem:[#allocation10 + $0x110] sm:$0xff] %v1518
    %2169 = vst [vmem:[#allocation10 + $0x118] sm:$0xff] %v2066
    %2170 = vst [vmem:[#allocation10 + $0x120] sm:$0xff] %v1521
    %2171 = vst [vmem:[#allocation10 + $0x128] sm:$0xff] %v2069
    %2172 = vst [vmem:[#allocation10 + $0x130] sm:$0xff] %v1524
    %2173 = vst [vmem:[#allocation10 + $0x138] sm:$0xff] %v2072
    %2174 = vst [vmem:[#allocation10 + $0x140] sm:$0xff] %v1527
    %2175 = vst [vmem:[#allocation10 + $0x148] sm:$0xff] %v2075
    %2176 = vst [vmem:[#allocation10 + $0x150] sm:$0xff] %v1530
    %2177 = vst [vmem:[#allocation10 + $0x158] sm:$0xff] %v2078
    %2178 = vst [vmem:[#allocation10 + $0x160] sm:$0xff] %v1533
    %2179 = vst [vmem:[#allocation10 + $0x168] sm:$0xff] %v2081
    %2180 = vst [vmem:[#allocation10 + $0x170] sm:$0xff] %v1536
    %2181 = vst [vmem:[#allocation10 + $0x178] sm:$0xff] %v2084
    %2182 = vst [vmem:[#allocation10 + $0x180] sm:$0xff] %v1539
    %2183 = vst [vmem:[#allocation10 + $0x188] sm:$0xff] %v2087
    %2184 = vst [vmem:[#allocation10 + $0x190] sm:$0xff] %v1542
    %2185 = vst [vmem:[#allocation10 + $0x198] sm:$0xff] %v2090
    %2186 = vst [vmem:[#allocation10 + $0x1a0] sm:$0xff] %v1545
    %2187 = vst [vmem:[#allocation10 + $0x1a8] sm:$0xff] %v2093
    %2188 = vst [vmem:[#allocation10 + $0x1b0] sm:$0xff] %v1548
    %2189 = vst [vmem:[#allocation10 + $0x1b8] sm:$0xff] %v2096
    %2190 = vst [vmem:[#allocation10 + $0x1c0] sm:$0xff] %v1551
    %2191 = vst [vmem:[#allocation10 + $0x1c8] sm:$0xff] %v2099
    %2192 = vst [vmem:[#allocation10 + $0x1d0] sm:$0xff] %v1554
    %2193 = vst [vmem:[#allocation10 + $0x1d8] sm:$0xff] %v2102
    %2194 = vst [vmem:[#allocation10 + $0x1e0] sm:$0xff] %v1557
    %2195 = vst [vmem:[#allocation10 + $0x1e8] sm:$0xff] %v2105
    %2196 = vst [vmem:[#allocation10 + $0x1f0] sm:$0xff] %v1560
    %2197 = vst [vmem:[#allocation10 + $0x1f8] sm:$0xff] %v2108
    %2198 = vst [vmem:[#allocation10 + $0x200] sm:$0xff] %v1563
    %2199 = vst [vmem:[#allocation10 + $0x208] sm:$0xff] %v2111
    %2200 = vst [vmem:[#allocation10 + $0x210] sm:$0xff] %v1566
    %2201 = vst [vmem:[#allocation10 + $0x218] sm:$0xff] %v2114
    %2202 = vst [vmem:[#allocation10 + $0x220] sm:$0xff] %v1569
    %2203 = vst [vmem:[#allocation10 + $0x228] sm:$0xff] %v2117
    %2204 = vst [vmem:[#allocation10 + $0x230] sm:$0xff] %v1572
    %2205 = vst [vmem:[#allocation10 + $0x238] sm:$0xff] %v2120
    %2206 = vst [vmem:[#allocation10 + $0x240] sm:$0xff] %v1575
    %2207 = vst [vmem:[#allocation10 + $0x248] sm:$0xff] %v2123
    %2208 = vst [vmem:[#allocation10 + $0x250] sm:$0xff] %v1578
    %2209 = vst [vmem:[#allocation10 + $0x258] sm:$0xff] %v2126
    %2210 = vst [vmem:[#allocation10 + $0x260] sm:$0xff] %v1581
    %2211 = vst [vmem:[#allocation10 + $0x268] sm:$0xff] %v2129
    %2212 = vst [vmem:[#allocation10 + $0x270] sm:$0x1] %v1584
    %2213 = vst [vmem:[#allocation10 + $0x278] sm:$0x1] %v2132
    // Predicated region
    $region38: #{tpu_custom_call.1} parent=1 // pred_check
      _
    $region39: #{tpu_custom_call.1} parent=1 // pred_check_branch
      %2215 = sbr.rel (0) target = $region41
    $region40: #{tpu_custom_call.1} parent=1 // pred_region
      %2217 = vsyncadd [#allocation4], 0
      %s2218 = sshll.u32 [#allocation10], 4
      %s2219 = int_to_ptr.vmem [resolvable:$true] %s2218
      %s2220 = sshll.u32 %s5, 4
      %s2221 = int_to_ptr.hbm [resolvable:$true] %s2220
      %2226 = dma.vmem_to_hbm [thread:$0]  %s2219, 10240, %s2221, [#allocation4], 256, 256, 16
    $region41: #{tpu_custom_call.1} parent=1 // pred_fallthru
      _
    // Predicated region
    $region42: #{tpu_custom_call.1} parent=1 // pred_check
      _
    $region43: #{tpu_custom_call.1} parent=1 // pred_check_branch
      %2228 = sbr.rel (0) target = $region45
    $region44: #{tpu_custom_call.1} parent=1 // pred_region
      %2230 = dma.done [#allocation4], 10240
    $region45: #{tpu_custom_call.1} parent=1 // pred_fallthru
      _
    %2231 = vsyncpa [#allocation3], 1
    %2232 = vsyncpa [#allocation6], 1
    %2233 = vsyncpa [#allocation9], 1
    %2234 = vsyncpa [#allocation4], 1

</llo_original>
